<compile_context>
chip_gen: v5e
topology: v5e:2x2
jax: 0.10.0
libtpu: 0.0.40
codegen_flags: <defaults>
</compile_context>

<pallas_src>
import functools

import numpy as np
import jax
import jax.numpy as jnp
from jax import lax
from jax.experimental import pallas as pl
from jax.experimental.pallas import tpu as pltpu

LANE = 128
SUBLANE = 8


def _round_up(x, m):
    return ((x + m - 1) // m) * m


# ----------------------------------------------------------------------------
# Weight-slab layout (static, derived from the model dims only)
# ----------------------------------------------------------------------------
def _slab_layout(n_features, embedding_dim):
    E = embedding_dim
    H1, H2 = 4 * E, 2 * E
    f_pad = _round_up(max(n_features, 1), LANE)          # lane-dense head
    blocks = [
        ("e1_wih", n_features, 4 * H1),
        ("e1_whh", H1, 4 * H1),
        ("e1_b", 1, 4 * H1),
        ("e2_wih", H1, 4 * H2),
        ("e2_whh", H2, 4 * H2),
        ("e2_b", 1, 4 * H2),
        ("e3_wih", H2, 4 * E),
        ("e3_whh", E, 4 * E),
        ("e3_b", 1, 4 * E),
        ("d1_wih", E, 4 * H2),
        ("d1_whh", H2, 4 * H2),
        ("d1_b", 1, 4 * H2),
        ("d2_wih", H2, 4 * H1),
        ("d2_whh", H1, 4 * H1),
        ("d2_b", 1, 4 * H1),
        ("o_w", H1, f_pad),
        ("o_b", 1, f_pad),
    ]
    layout = {}
    row = 0
    width = LANE
    for name, r, c in blocks:
        layout[name] = (row, r, c)          # every block starts sublane-aligned
        row += _round_up(r, SUBLANE)
        width = max(width, _round_up(c, LANE))
    total_rows = _round_up(row, SUBLANE)
    return layout, total_rows, width, f_pad


# ----------------------------------------------------------------------------
# Fused autoencoder kernel
# ----------------------------------------------------------------------------
def _lstm_cell(gates, c, H):
    """One LSTM cell update; gate columns pre-ordered [i | f | o | g]."""
    sig = jax.nn.sigmoid(gates[:, :3 * H])     # one sigmoid over i|f|o
    i_g = sig[:, 0 * H:1 * H]
    f_g = sig[:, 1 * H:2 * H]
    o_g = sig[:, 2 * H:3 * H]
    g_g = jnp.tanh(gates[:, 3 * H:])           # one tanh over g
    c_new = f_g * c + i_g * g_g
    h_new = o_g * jnp.tanh(c_new)
    return h_new, c_new


def _autoencoder_kernel(layout, T, B, Bp, E, f_pad, x_ref, w_ref, out_ref):
    H1, H2 = 4 * E, 2 * E
    f32 = jnp.float32

    def blk(name):
        r0, r, c = layout[name]
        return w_ref[r0:r0 + r, :c]            # static view of the weight slab

    w_e1_ih, w_e1_hh, b_e1 = blk("e1_wih"), blk("e1_whh"), blk("e1_b")
    w_e2_ih, w_e2_hh, b_e2 = blk("e2_wih"), blk("e2_whh"), blk("e2_b")
    w_e3_ih, w_e3_hh, b_e3 = blk("e3_wih"), blk("e3_whh"), blk("e3_b")
    w_d1_ih, w_d1_hh, b_d1 = blk("d1_wih"), blk("d1_whh"), blk("d1_b")
    w_d2_ih, w_d2_hh, b_d2 = blk("d2_wih"), blk("d2_whh"), blk("d2_b")
    w_o, b_o = blk("o_w"), blk("o_b")

    def mm(a, b):
        return jnp.dot(a, b, preferred_element_type=f32)

    # Hoisted enc1 input projection: x exists at kernel entry, so this single
    # batched matmul is off the recurrent critical path.  Rows are batch-major
    # (row = b*T + t), matching x.reshape(B*T, F) with zero wrapper work.
    proj1 = mm(x_ref[...], w_e1_ih) + b_e1                 # (B*T, 4*H1)

    # Sublane index, used to scatter/select rows into the padded (Bp, .) tiles.
    n_idx = lax.broadcasted_iota(jnp.int32, (Bp, 1), 0)

    def select_rows(src, row_for, width):
        """out[n, :] = src[row_for(n), :] for n < B; zeros for padded rows."""
        acc = jnp.zeros((Bp, width), f32)
        for n in range(B):                                 # static, tiny
            r = row_for(n)                                 # static int
            acc = jnp.where(n_idx == n, src[r:r + 1, :], acc)
        return acc

    def zeros(H):
        return jnp.zeros((Bp, H), f32)

    # ------------------------- Encoder wavefront -------------------------
    h1, c1 = zeros(H1), zeros(H1)
    h2, c2 = zeros(H2), zeros(H2)
    h3, c3 = zeros(E), zeros(E)
    for t in range(T):                                     # T static -> unrolled
        p1_t = select_rows(proj1, lambda n: n * T + t, 4 * H1)
        h1, c1 = _lstm_cell(p1_t + mm(h1, w_e1_hh), c1, H1)
        g2 = mm(h1, w_e2_ih) + mm(h2, w_e2_hh) + b_e2
        h2, c2 = _lstm_cell(g2, c2, H2)
        g3 = mm(h2, w_e3_ih) + mm(h3, w_e3_hh) + b_e3
        h3, c3 = _lstm_cell(g3, c3, E)
    h_n = h3                                               # (Bp, E); only rows < B valid

    # --------------------- Decoder wavefront + head ----------------------
    hd1, cd1 = zeros(H2), zeros(H2)
    hd2, cd2 = zeros(H1), zeros(H1)
    for t in range(T):
        # torch: hidden.repeat(seq_len,1,1).reshape(-1, seq_len, E) =>
        #   dec_in[n, t] = h_n[(n*T + t) % B]  -- pure VPU select, no matmul.
        x_d = select_rows(h_n, lambda n: (n * T + t) % B, E)
        gd1 = mm(x_d, w_d1_ih) + mm(hd1, w_d1_hh) + b_d1
        hd1, cd1 = _lstm_cell(gd1, cd1, H2)
        gd2 = mm(hd1, w_d2_ih) + mm(hd2, w_d2_hh) + b_d2
        hd2, cd2 = _lstm_cell(gd2, cd2, H1)
        # Per-step linear head; lane-dense unmasked (Bp, f_pad) store at a
        # 128-aligned lane offset of the (Bp, T*f_pad) output slab.
        out_ref[:, t * f_pad:(t + 1) * f_pad] = mm(hd2, w_o) + b_o


# ----------------------------------------------------------------------------
# Parameter initialization (torch-style layout, gate order [i, f, g, o])
# ----------------------------------------------------------------------------
def init_lstm_params(key, in_dim, hidden):
    k1, k2, k3, k4 = jax.random.split(key, 4)
    s = 1.0 / np.sqrt(hidden)
    w_ih = jax.random.uniform(k1, (4 * hidden, in_dim), jnp.float32, -s, s)
    w_hh = jax.random.uniform(k2, (4 * hidden, hidden), jnp.float32, -s, s)
    b_ih = jax.random.uniform(k3, (4 * hidden,), jnp.float32, -s, s)
    b_hh = jax.random.uniform(k4, (4 * hidden,), jnp.float32, -s, s)
    return (w_ih, w_hh, b_ih, b_hh)


def init_params(key, seq_len, n_features, embedding_dim):
    hidden_dim2 = 2 * embedding_dim
    hidden_dim = 2 * hidden_dim2
    keys = jax.random.split(key, 7)
    params = {
        "enc1": init_lstm_params(keys[0], n_features, hidden_dim),
        "enc2": init_lstm_params(keys[1], hidden_dim, hidden_dim2),
        "enc3": init_lstm_params(keys[2], hidden_dim2, embedding_dim),
        "dec1": init_lstm_params(keys[3], embedding_dim, hidden_dim2),
        "dec2": init_lstm_params(keys[4], hidden_dim2, hidden_dim),
    }
    s = 1.0 / np.sqrt(hidden_dim)
    params["out_w"] = jax.random.uniform(keys[5], (n_features, hidden_dim),
                                         jnp.float32, -s, s)
    params["out_b"] = jax.random.uniform(keys[6], (n_features,),
                                         jnp.float32, -s, s)
    return params


# ----------------------------------------------------------------------------
# One-time parameter prep: transpose, combine biases, reorder gates, pack slab
# ----------------------------------------------------------------------------
def _gate_perm(hidden):
    # torch gate order [i, f, g, o] -> kernel order [i, f, o, g]
    return np.concatenate([np.arange(0, 2 * hidden),
                           np.arange(3 * hidden, 4 * hidden),
                           np.arange(2 * hidden, 3 * hidden)])


def prepare_params(params, n_features, embedding_dim):
    """Pack all weights into one f32 (rows, 128k) slab -> one HBM->VMEM DMA."""
    layout, total_rows, width, f_pad = _slab_layout(n_features, embedding_dim)
    slab = np.zeros((total_rows, width), np.float32)

    def put(name, mat):
        r0, r, c = layout[name]
        mat = np.asarray(mat, np.float32)
        assert mat.shape == (r, c), (name, mat.shape, (r, c))
        slab[r0:r0 + r, :c] = mat

    def put_lstm(prefix, w_ih, w_hh, b_ih, b_hh):
        H = w_ih.shape[0] // 4
        perm = _gate_perm(H)
        put(prefix + "_wih", np.asarray(w_ih)[perm].T)     # (D_in, 4H)
        put(prefix + "_whh", np.asarray(w_hh)[perm].T)     # (H, 4H)
        put(prefix + "_b", (np.asarray(b_ih) + np.asarray(b_hh))[perm][None, :])

    put_lstm("e1", *params["enc1"])
    put_lstm("e2", *params["enc2"])
    put_lstm("e3", *params["enc3"])
    put_lstm("d1", *params["dec1"])
    put_lstm("d2", *params["dec2"])

    hidden_dim = params["out_w"].shape[1]
    o_w = np.zeros((hidden_dim, f_pad), np.float32)
    o_w[:, :n_features] = np.asarray(params["out_w"]).T
    put("o_w", o_w)
    o_b = np.zeros((1, f_pad), np.float32)
    o_b[0, :n_features] = np.asarray(params["out_b"])
    put("o_b", o_b)

    return jnp.asarray(slab)


# ----------------------------------------------------------------------------
# Forward pass (matches LSTMAutoencoder.forward)
# ----------------------------------------------------------------------------
@functools.partial(jax.jit, static_argnames=("seq_len", "n_features",
                                             "embedding_dim"))
def lstm_autoencoder(x, w_slab, *, seq_len, n_features, embedding_dim):
    B, T, F = x.shape
    assert T == seq_len and F == n_features
    Bp = _round_up(max(B, 1), SUBLANE)                     # pad batch to sublanes
    layout, total_rows, width, f_pad = _slab_layout(n_features, embedding_dim)
    assert w_slab.shape == (total_rows, width)

    # Free layout change only (no transpose/pad on the host side).
    x_flat = x.reshape(B * T, F).astype(jnp.float32)

    kernel = functools.partial(_autoencoder_kernel, layout, T, B, Bp,
                               embedding_dim, f_pad)
    out = pl.pallas_call(
        kernel,
        out_shape=jax.ShapeDtypeStruct((Bp, T * f_pad), jnp.float32),
        in_specs=[pl.BlockSpec(memory_space=pltpu.MemorySpace.VMEM),
                  pl.BlockSpec(memory_space=pltpu.MemorySpace.VMEM)],
        out_specs=pl.BlockSpec(memory_space=pltpu.MemorySpace.VMEM),
    )(x_flat, w_slab)

    # (Bp, T*f_pad) -> (Bp, T, f_pad) is a free contiguous reshape; the only
    # real post-op is this single slice (no transpose).
    return out.reshape(Bp, T, f_pad)[:B, :, :n_features]


# ----------------------------------------------------------------------------
# Pure-JAX reference (torch semantics) for correctness checking
# ----------------------------------------------------------------------------
def _ref_lstm_layer(x_bf, w_ih, w_hh, b_ih, b_hh):
    B = x_bf.shape[0]
    H = w_ih.shape[0] // 4

    def cell(carry, x_t):
        h, c = carry
        gates = x_t @ w_ih.T + h @ w_hh.T + b_ih + b_hh
        i = jax.nn.sigmoid(gates[:, :H])
        f = jax.nn.sigmoid(gates[:, H:2 * H])
        g = jnp.tanh(gates[:, 2 * H:3 * H])
        o = jax.nn.sigmoid(gates[:, 3 * H:])
        c = f * c + i * g
        h = o * jnp.tanh(c)
        return (h, c), h

    init = (jnp.zeros((B, H), jnp.float32), jnp.zeros((B, H), jnp.float32))
    _, ys = lax.scan(cell, init, jnp.transpose(x_bf, (1, 0, 2)))
    return jnp.transpose(ys, (1, 0, 2))


def lstm_autoencoder_ref(x, params, seq_len, n_features, embedding_dim):
    y = _ref_lstm_layer(x, *params["enc1"])
    y = _ref_lstm_layer(y, *params["enc2"])
    y = _ref_lstm_layer(y, *params["enc3"])
    hidden_n = y[:, -1, :][None]                            # (1, B, E)
    i = jnp.tile(hidden_n, (seq_len, 1, 1)).reshape(-1, seq_len, embedding_dim)
    y = _ref_lstm_layer(i, *params["dec1"])
    y = _ref_lstm_layer(y, *params["dec2"])
    return y @ params["out_w"].T + params["out_b"]


# ----------------------------------------------------------------------------
if __name__ == "__main__":
    B, T, F, E = 2, 8, 4, 8
    key = jax.random.PRNGKey(0)
    kx, kp = jax.random.split(key)
    x = jax.random.normal(kx, (B, T, F), dtype=jnp.float32)
    params = init_params(kp, T, F, E)
    w_slab = prepare_params(params, F, E)

    out = lstm_autoencoder(x, w_slab, seq_len=T, n_features=F,
                           embedding_dim=E)
    out = jax.block_until_ready(out)
    assert out.shape == (B, T, F), out.shape

    ref = lstm_autoencoder_ref(x, params, T, F, E)
    err = float(jnp.max(jnp.abs(out - ref)))
    # Tolerance documents the expected default-precision (bf16-pass) MXU error
    # on O(0.1-1) post-tanh values; both kernel and reference run at default
    # matmul precision.
    assert err < 5e-2, f"max abs error vs reference: {err}"

    print("KERNEL_OK")
</pallas_src>

<mosaic_0001>
module attributes {stable_mosaic.version = 11 : i64} {
  func.func @_autoencoder_kernel(%arg0: memref<16x4xf32, #tpu.memory_space<vmem>>, %arg1: memref<264x128xf32, #tpu.memory_space<vmem>>, %arg2: memref<8x1024xf32, #tpu.memory_space<vmem>>) attributes {dimension_semantics = [], scalar_prefetch = 0 : i64, scratch_operands = 0 : i64, tpu.core_type = #tpu.core_type<tc>} {
    %c0 = arith.constant 0 : index
    %c0_0 = arith.constant 0 : index
    %0 = vector.load %arg1[%c0, %c0_0] : memref<264x128xf32, #tpu.memory_space<vmem>>, vector<4x128xf32>
    %c8 = arith.constant 8 : index
    %c0_1 = arith.constant 0 : index
    %1 = vector.load %arg1[%c8, %c0_1] : memref<264x128xf32, #tpu.memory_space<vmem>>, vector<32x128xf32>
    %c40 = arith.constant 40 : index
    %c0_2 = arith.constant 0 : index
    %2 = vector.load %arg1[%c40, %c0_2] : memref<264x128xf32, #tpu.memory_space<vmem>>, vector<1x128xf32>
    %c48 = arith.constant 48 : index
    %c0_3 = arith.constant 0 : index
    %3 = vector.load %arg1[%c48, %c0_3] : memref<264x128xf32, #tpu.memory_space<vmem>>, vector<32x64xf32>
    %c80 = arith.constant 80 : index
    %c0_4 = arith.constant 0 : index
    %4 = vector.load %arg1[%c80, %c0_4] : memref<264x128xf32, #tpu.memory_space<vmem>>, vector<16x64xf32>
    %c96 = arith.constant 96 : index
    %c0_5 = arith.constant 0 : index
    %5 = vector.load %arg1[%c96, %c0_5] : memref<264x128xf32, #tpu.memory_space<vmem>>, vector<1x64xf32>
    %c104 = arith.constant 104 : index
    %c0_6 = arith.constant 0 : index
    %6 = vector.load %arg1[%c104, %c0_6] : memref<264x128xf32, #tpu.memory_space<vmem>>, vector<16x32xf32>
    %c120 = arith.constant 120 : index
    %c0_7 = arith.constant 0 : index
    %7 = vector.load %arg1[%c120, %c0_7] : memref<264x128xf32, #tpu.memory_space<vmem>>, vector<8x32xf32>
    %c128 = arith.constant 128 : index
    %c0_8 = arith.constant 0 : index
    %8 = vector.load %arg1[%c128, %c0_8] : memref<264x128xf32, #tpu.memory_space<vmem>>, vector<1x32xf32>
    %c136 = arith.constant 136 : index
    %c0_9 = arith.constant 0 : index
    %9 = vector.load %arg1[%c136, %c0_9] : memref<264x128xf32, #tpu.memory_space<vmem>>, vector<8x64xf32>
    %c144 = arith.constant 144 : index
    %c0_10 = arith.constant 0 : index
    %10 = vector.load %arg1[%c144, %c0_10] : memref<264x128xf32, #tpu.memory_space<vmem>>, vector<16x64xf32>
    %c160 = arith.constant 160 : index
    %c0_11 = arith.constant 0 : index
    %11 = vector.load %arg1[%c160, %c0_11] : memref<264x128xf32, #tpu.memory_space<vmem>>, vector<1x64xf32>
    %c168 = arith.constant 168 : index
    %c0_12 = arith.constant 0 : index
    %12 = vector.load %arg1[%c168, %c0_12] : memref<264x128xf32, #tpu.memory_space<vmem>>, vector<16x128xf32>
    %c184 = arith.constant 184 : index
    %c0_13 = arith.constant 0 : index
    %13 = vector.load %arg1[%c184, %c0_13] : memref<264x128xf32, #tpu.memory_space<vmem>>, vector<32x128xf32>
    %c216 = arith.constant 216 : index
    %c0_14 = arith.constant 0 : index
    %14 = vector.load %arg1[%c216, %c0_14] : memref<264x128xf32, #tpu.memory_space<vmem>>, vector<1x128xf32>
    %c224 = arith.constant 224 : index
    %c0_15 = arith.constant 0 : index
    %15 = vector.load %arg1[%c224, %c0_15] : memref<264x128xf32, #tpu.memory_space<vmem>>, vector<32x128xf32>
    %c256 = arith.constant 256 : index
    %c0_16 = arith.constant 0 : index
    %16 = vector.load %arg1[%c256, %c0_16] : memref<264x128xf32, #tpu.memory_space<vmem>>, vector<1x128xf32>
    %c0_17 = arith.constant 0 : index
    %c0_18 = arith.constant 0 : index
    %17 = vector.load %arg0[%c0_17, %c0_18] : memref<16x4xf32, #tpu.memory_space<vmem>>, vector<16x4xf32>
    %cst = arith.constant dense<0.000000e+00> : vector<16x128xf32>
    %18 = tpu.matmul %17, %0, %cst {dimension_numbers = #tpu.dot_dimension_numbers<[1], [0], [0], [1], [0, 0, 1, 1], [], []>} : vector<16x4xf32>, vector<4x128xf32>, vector<16x128xf32> -> vector<16x128xf32>
    %19 = vector.broadcast %2 : vector<1x128xf32> to vector<16x128xf32>
    %20 = arith.addf %18, %19 : vector<16x128xf32>
    %21 = tpu.iota {dimensions = array<i32: 0>} : vector<8x1xi32>
    %cst_19 = arith.constant 0.000000e+00 : f32
    %22 = vector.broadcast %cst_19 : f32 to vector<8x32xf32>
    %cst_20 = arith.constant 0.000000e+00 : f32
    %23 = vector.broadcast %cst_20 : f32 to vector<8x32xf32>
    %cst_21 = arith.constant 0.000000e+00 : f32
    %24 = vector.broadcast %cst_21 : f32 to vector<8x16xf32>
    %cst_22 = arith.constant 0.000000e+00 : f32
    %25 = vector.broadcast %cst_22 : f32 to vector<8x16xf32>
    %cst_23 = arith.constant 0.000000e+00 : f32
    %26 = vector.broadcast %cst_23 : f32 to vector<8x8xf32>
    %cst_24 = arith.constant 0.000000e+00 : f32
    %27 = vector.broadcast %cst_24 : f32 to vector<8x8xf32>
    %cst_25 = arith.constant 0.000000e+00 : f32
    %28 = vector.broadcast %cst_25 : f32 to vector<8x128xf32>
    %c0_i32 = arith.constant 0 : i32
    %29 = vector.broadcast %c0_i32 : i32 to vector<8x1xi32>
    %30 = arith.cmpi eq, %21, %29 : vector<8x1xi32>
    %31 = vector.extract_strided_slice %20 {offsets = [0, 0], sizes = [1, 128], strides = [1, 1]} : vector<16x128xf32> to vector<1x128xf32>
    %32 = vector.shape_cast %30 : vector<8x1xi1> to vector<8x1xi1>
    %33 = vector.broadcast %32 : vector<8x1xi1> to vector<8x128xi1>
    %34 = vector.shape_cast %31 : vector<1x128xf32> to vector<1x128xf32>
    %35 = vector.broadcast %34 : vector<1x128xf32> to vector<8x128xf32>
    %36 = arith.select %33, %35, %28 : vector<8x128xi1>, vector<8x128xf32>
    %c1_i32 = arith.constant 1 : i32
    %37 = vector.broadcast %c1_i32 : i32 to vector<8x1xi32>
    %38 = arith.cmpi eq, %21, %37 : vector<8x1xi32>
    %39 = vector.extract_strided_slice %20 {offsets = [8, 0], sizes = [1, 128], strides = [1, 1]} : vector<16x128xf32> to vector<1x128xf32>
    %40 = vector.shape_cast %38 : vector<8x1xi1> to vector<8x1xi1>
    %41 = vector.broadcast %40 : vector<8x1xi1> to vector<8x128xi1>
    %42 = vector.shape_cast %39 : vector<1x128xf32> to vector<1x128xf32>
    %43 = vector.broadcast %42 : vector<1x128xf32> to vector<8x128xf32>
    %44 = arith.select %41, %43, %36 : vector<8x128xi1>, vector<8x128xf32>
    %cst_26 = arith.constant dense<0.000000e+00> : vector<8x128xf32>
    %45 = tpu.matmul %22, %1, %cst_26 {dimension_numbers = #tpu.dot_dimension_numbers<[1], [0], [0], [1], [0, 0, 1, 1], [], []>} : vector<8x32xf32>, vector<32x128xf32>, vector<8x128xf32> -> vector<8x128xf32>
    %46 = arith.addf %44, %45 : vector<8x128xf32>
    %47 = vector.extract_strided_slice %46 {offsets = [0, 0], sizes = [8, 96], strides = [1, 1]} : vector<8x128xf32> to vector<8x96xf32>
    %48 = arith.negf %47 : vector<8x96xf32>
    %49 = math.exp %48 : vector<8x96xf32>
    %cst_27 = arith.constant 1.000000e+00 : f32
    %50 = vector.broadcast %cst_27 : f32 to vector<8x96xf32>
    %51 = arith.addf %50, %49 : vector<8x96xf32>
    %52 = arith.divf %50, %51 : vector<8x96xf32>
    %53 = vector.extract_strided_slice %52 {offsets = [0, 0], sizes = [8, 32], strides = [1, 1]} : vector<8x96xf32> to vector<8x32xf32>
    %54 = vector.extract_strided_slice %52 {offsets = [0, 32], sizes = [8, 32], strides = [1, 1]} : vector<8x96xf32> to vector<8x32xf32>
    %55 = vector.extract_strided_slice %52 {offsets = [0, 64], sizes = [8, 32], strides = [1, 1]} : vector<8x96xf32> to vector<8x32xf32>
    %56 = vector.extract_strided_slice %46 {offsets = [0, 96], sizes = [8, 32], strides = [1, 1]} : vector<8x128xf32> to vector<8x32xf32>
    %57 = math.tanh %56 : vector<8x32xf32>
    %58 = arith.mulf %54, %23 : vector<8x32xf32>
    %59 = arith.mulf %53, %57 : vector<8x32xf32>
    %60 = arith.addf %58, %59 : vector<8x32xf32>
    %61 = math.tanh %60 : vector<8x32xf32>
    %62 = arith.mulf %55, %61 : vector<8x32xf32>
    %cst_28 = arith.constant dense<0.000000e+00> : vector<8x64xf32>
    %63 = tpu.matmul %62, %3, %cst_28 {dimension_numbers = #tpu.dot_dimension_numbers<[1], [0], [0], [1], [0, 0, 1, 1], [], []>} : vector<8x32xf32>, vector<32x64xf32>, vector<8x64xf32> -> vector<8x64xf32>
    %cst_29 = arith.constant dense<0.000000e+00> : vector<8x64xf32>
    %64 = tpu.matmul %24, %4, %cst_29 {dimension_numbers = #tpu.dot_dimension_numbers<[1], [0], [0], [1], [0, 0, 1, 1], [], []>} : vector<8x16xf32>, vector<16x64xf32>, vector<8x64xf32> -> vector<8x64xf32>
    %65 = arith.addf %63, %64 : vector<8x64xf32>
    %66 = vector.broadcast %5 : vector<1x64xf32> to vector<8x64xf32>
    %67 = arith.addf %65, %66 : vector<8x64xf32>
    %68 = vector.extract_strided_slice %67 {offsets = [0, 0], sizes = [8, 48], strides = [1, 1]} : vector<8x64xf32> to vector<8x48xf32>
    %69 = arith.negf %68 : vector<8x48xf32>
    %70 = math.exp %69 : vector<8x48xf32>
    %cst_30 = arith.constant 1.000000e+00 : f32
    %71 = vector.broadcast %cst_30 : f32 to vector<8x48xf32>
    %72 = arith.addf %71, %70 : vector<8x48xf32>
    %73 = arith.divf %71, %72 : vector<8x48xf32>
    %74 = vector.extract_strided_slice %73 {offsets = [0, 0], sizes = [8, 16], strides = [1, 1]} : vector<8x48xf32> to vector<8x16xf32>
    %75 = vector.extract_strided_slice %73 {offsets = [0, 16], sizes = [8, 16], strides = [1, 1]} : vector<8x48xf32> to vector<8x16xf32>
    %76 = vector.extract_strided_slice %73 {offsets = [0, 32], sizes = [8, 16], strides = [1, 1]} : vector<8x48xf32> to vector<8x16xf32>
    %77 = vector.extract_strided_slice %67 {offsets = [0, 48], sizes = [8, 16], strides = [1, 1]} : vector<8x64xf32> to vector<8x16xf32>
    %78 = math.tanh %77 : vector<8x16xf32>
    %79 = arith.mulf %75, %25 : vector<8x16xf32>
    %80 = arith.mulf %74, %78 : vector<8x16xf32>
    %81 = arith.addf %79, %80 : vector<8x16xf32>
    %82 = math.tanh %81 : vector<8x16xf32>
    %83 = arith.mulf %76, %82 : vector<8x16xf32>
    %cst_31 = arith.constant dense<0.000000e+00> : vector<8x32xf32>
    %84 = tpu.matmul %83, %6, %cst_31 {dimension_numbers = #tpu.dot_dimension_numbers<[1], [0], [0], [1], [0, 0, 1, 1], [], []>} : vector<8x16xf32>, vector<16x32xf32>, vector<8x32xf32> -> vector<8x32xf32>
    %cst_32 = arith.constant dense<0.000000e+00> : vector<8x32xf32>
    %85 = tpu.matmul %26, %7, %cst_32 {dimension_numbers = #tpu.dot_dimension_numbers<[1], [0], [0], [1], [0, 0, 1, 1], [], []>} : vector<8x8xf32>, vector<8x32xf32>, vector<8x32xf32> -> vector<8x32xf32>
    %86 = arith.addf %84, %85 : vector<8x32xf32>
    %87 = vector.broadcast %8 : vector<1x32xf32> to vector<8x32xf32>
    %88 = arith.addf %86, %87 : vector<8x32xf32>
    %89 = vector.extract_strided_slice %88 {offsets = [0, 0], sizes = [8, 24], strides = [1, 1]} : vector<8x32xf32> to vector<8x24xf32>
    %90 = arith.negf %89 : vector<8x24xf32>
    %91 = math.exp %90 : vector<8x24xf32>
    %cst_33 = arith.constant 1.000000e+00 : f32
    %92 = vector.broadcast %cst_33 : f32 to vector<8x24xf32>
    %93 = arith.addf %92, %91 : vector<8x24xf32>
    %94 = arith.divf %92, %93 : vector<8x24xf32>
    %95 = vector.extract_strided_slice %94 {offsets = [0, 0], sizes = [8, 8], strides = [1, 1]} : vector<8x24xf32> to vector<8x8xf32>
    %96 = vector.extract_strided_slice %94 {offsets = [0, 8], sizes = [8, 8], strides = [1, 1]} : vector<8x24xf32> to vector<8x8xf32>
    %97 = vector.extract_strided_slice %94 {offsets = [0, 16], sizes = [8, 8], strides = [1, 1]} : vector<8x24xf32> to vector<8x8xf32>
    %98 = vector.extract_strided_slice %88 {offsets = [0, 24], sizes = [8, 8], strides = [1, 1]} : vector<8x32xf32> to vector<8x8xf32>
    %99 = math.tanh %98 : vector<8x8xf32>
    %100 = arith.mulf %96, %27 : vector<8x8xf32>
    %101 = arith.mulf %95, %99 : vector<8x8xf32>
    %102 = arith.addf %100, %101 : vector<8x8xf32>
    %103 = math.tanh %102 : vector<8x8xf32>
    %104 = arith.mulf %97, %103 : vector<8x8xf32>
    %cst_34 = arith.constant 0.000000e+00 : f32
    %105 = vector.broadcast %cst_34 : f32 to vector<8x128xf32>
    %c0_i32_35 = arith.constant 0 : i32
    %106 = vector.broadcast %c0_i32_35 : i32 to vector<8x1xi32>
    %107 = arith.cmpi eq, %21, %106 : vector<8x1xi32>
    %108 = vector.extract_strided_slice %20 {offsets = [1, 0], sizes = [1, 128], strides = [1, 1]} : vector<16x128xf32> to vector<1x128xf32>
    %109 = vector.shape_cast %107 : vector<8x1xi1> to vector<8x1xi1>
    %110 = vector.broadcast %109 : vector<8x1xi1> to vector<8x128xi1>
    %111 = vector.shape_cast %108 : vector<1x128xf32> to vector<1x128xf32>
    %112 = vector.broadcast %111 : vector<1x128xf32> to vector<8x128xf32>
    %113 = arith.select %110, %112, %105 : vector<8x128xi1>, vector<8x128xf32>
    %c1_i32_36 = arith.constant 1 : i32
    %114 = vector.broadcast %c1_i32_36 : i32 to vector<8x1xi32>
    %115 = arith.cmpi eq, %21, %114 : vector<8x1xi32>
    %116 = vector.extract_strided_slice %20 {offsets = [9, 0], sizes = [1, 128], strides = [1, 1]} : vector<16x128xf32> to vector<1x128xf32>
    %117 = vector.shape_cast %115 : vector<8x1xi1> to vector<8x1xi1>
    %118 = vector.broadcast %117 : vector<8x1xi1> to vector<8x128xi1>
    %119 = vector.shape_cast %116 : vector<1x128xf32> to vector<1x128xf32>
    %120 = vector.broadcast %119 : vector<1x128xf32> to vector<8x128xf32>
    %121 = arith.select %118, %120, %113 : vector<8x128xi1>, vector<8x128xf32>
    %cst_37 = arith.constant dense<0.000000e+00> : vector<8x128xf32>
    %122 = tpu.matmul %62, %1, %cst_37 {dimension_numbers = #tpu.dot_dimension_numbers<[1], [0], [0], [1], [0, 0, 1, 1], [], []>} : vector<8x32xf32>, vector<32x128xf32>, vector<8x128xf32> -> vector<8x128xf32>
    %123 = arith.addf %121, %122 : vector<8x128xf32>
    %124 = vector.extract_strided_slice %123 {offsets = [0, 0], sizes = [8, 96], strides = [1, 1]} : vector<8x128xf32> to vector<8x96xf32>
    %125 = arith.negf %124 : vector<8x96xf32>
    %126 = math.exp %125 : vector<8x96xf32>
    %cst_38 = arith.constant 1.000000e+00 : f32
    %127 = vector.broadcast %cst_38 : f32 to vector<8x96xf32>
    %128 = arith.addf %127, %126 : vector<8x96xf32>
    %129 = arith.divf %127, %128 : vector<8x96xf32>
    %130 = vector.extract_strided_slice %129 {offsets = [0, 0], sizes = [8, 32], strides = [1, 1]} : vector<8x96xf32> to vector<8x32xf32>
    %131 = vector.extract_strided_slice %129 {offsets = [0, 32], sizes = [8, 32], strides = [1, 1]} : vector<8x96xf32> to vector<8x32xf32>
    %132 = vector.extract_strided_slice %129 {offsets = [0, 64], sizes = [8, 32], strides = [1, 1]} : vector<8x96xf32> to vector<8x32xf32>
    %133 = vector.extract_strided_slice %123 {offsets = [0, 96], sizes = [8, 32], strides = [1, 1]} : vector<8x128xf32> to vector<8x32xf32>
    %134 = math.tanh %133 : vector<8x32xf32>
    %135 = arith.mulf %131, %60 : vector<8x32xf32>
    %136 = arith.mulf %130, %134 : vector<8x32xf32>
    %137 = arith.addf %135, %136 : vector<8x32xf32>
    %138 = math.tanh %137 : vector<8x32xf32>
    %139 = arith.mulf %132, %138 : vector<8x32xf32>
    %cst_39 = arith.constant dense<0.000000e+00> : vector<8x64xf32>
    %140 = tpu.matmul %139, %3, %cst_39 {dimension_numbers = #tpu.dot_dimension_numbers<[1], [0], [0], [1], [0, 0, 1, 1], [], []>} : vector<8x32xf32>, vector<32x64xf32>, vector<8x64xf32> -> vector<8x64xf32>
    %cst_40 = arith.constant dense<0.000000e+00> : vector<8x64xf32>
    %141 = tpu.matmul %83, %4, %cst_40 {dimension_numbers = #tpu.dot_dimension_numbers<[1], [0], [0], [1], [0, 0, 1, 1], [], []>} : vector<8x16xf32>, vector<16x64xf32>, vector<8x64xf32> -> vector<8x64xf32>
    %142 = arith.addf %140, %141 : vector<8x64xf32>
    %143 = vector.broadcast %5 : vector<1x64xf32> to vector<8x64xf32>
    %144 = arith.addf %142, %143 : vector<8x64xf32>
    %145 = vector.extract_strided_slice %144 {offsets = [0, 0], sizes = [8, 48], strides = [1, 1]} : vector<8x64xf32> to vector<8x48xf32>
    %146 = arith.negf %145 : vector<8x48xf32>
    %147 = math.exp %146 : vector<8x48xf32>
    %cst_41 = arith.constant 1.000000e+00 : f32
    %148 = vector.broadcast %cst_41 : f32 to vector<8x48xf32>
    %149 = arith.addf %148, %147 : vector<8x48xf32>
    %150 = arith.divf %148, %149 : vector<8x48xf32>
    %151 = vector.extract_strided_slice %150 {offsets = [0, 0], sizes = [8, 16], strides = [1, 1]} : vector<8x48xf32> to vector<8x16xf32>
    %152 = vector.extract_strided_slice %150 {offsets = [0, 16], sizes = [8, 16], strides = [1, 1]} : vector<8x48xf32> to vector<8x16xf32>
    %153 = vector.extract_strided_slice %150 {offsets = [0, 32], sizes = [8, 16], strides = [1, 1]} : vector<8x48xf32> to vector<8x16xf32>
    %154 = vector.extract_strided_slice %144 {offsets = [0, 48], sizes = [8, 16], strides = [1, 1]} : vector<8x64xf32> to vector<8x16xf32>
    %155 = math.tanh %154 : vector<8x16xf32>
    %156 = arith.mulf %152, %81 : vector<8x16xf32>
    %157 = arith.mulf %151, %155 : vector<8x16xf32>
    %158 = arith.addf %156, %157 : vector<8x16xf32>
    %159 = math.tanh %158 : vector<8x16xf32>
    %160 = arith.mulf %153, %159 : vector<8x16xf32>
    %cst_42 = arith.constant dense<0.000000e+00> : vector<8x32xf32>
    %161 = tpu.matmul %160, %6, %cst_42 {dimension_numbers = #tpu.dot_dimension_numbers<[1], [0], [0], [1], [0, 0, 1, 1], [], []>} : vector<8x16xf32>, vector<16x32xf32>, vector<8x32xf32> -> vector<8x32xf32>
    %cst_43 = arith.constant dense<0.000000e+00> : vector<8x32xf32>
    %162 = tpu.matmul %104, %7, %cst_43 {dimension_numbers = #tpu.dot_dimension_numbers<[1], [0], [0], [1], [0, 0, 1, 1], [], []>} : vector<8x8xf32>, vector<8x32xf32>, vector<8x32xf32> -> vector<8x32xf32>
    %163 = arith.addf %161, %162 : vector<8x32xf32>
    %164 = vector.broadcast %8 : vector<1x32xf32> to vector<8x32xf32>
    %165 = arith.addf %163, %164 : vector<8x32xf32>
    %166 = vector.extract_strided_slice %165 {offsets = [0, 0], sizes = [8, 24], strides = [1, 1]} : vector<8x32xf32> to vector<8x24xf32>
    %167 = arith.negf %166 : vector<8x24xf32>
    %168 = math.exp %167 : vector<8x24xf32>
    %cst_44 = arith.constant 1.000000e+00 : f32
    %169 = vector.broadcast %cst_44 : f32 to vector<8x24xf32>
    %170 = arith.addf %169, %168 : vector<8x24xf32>
    %171 = arith.divf %169, %170 : vector<8x24xf32>
    %172 = vector.extract_strided_slice %171 {offsets = [0, 0], sizes = [8, 8], strides = [1, 1]} : vector<8x24xf32> to vector<8x8xf32>
    %173 = vector.extract_strided_slice %171 {offsets = [0, 8], sizes = [8, 8], strides = [1, 1]} : vector<8x24xf32> to vector<8x8xf32>
    %174 = vector.extract_strided_slice %171 {offsets = [0, 16], sizes = [8, 8], strides = [1, 1]} : vector<8x24xf32> to vector<8x8xf32>
    %175 = vector.extract_strided_slice %165 {offsets = [0, 24], sizes = [8, 8], strides = [1, 1]} : vector<8x32xf32> to vector<8x8xf32>
    %176 = math.tanh %175 : vector<8x8xf32>
    %177 = arith.mulf %173, %102 : vector<8x8xf32>
    %178 = arith.mulf %172, %176 : vector<8x8xf32>
    %179 = arith.addf %177, %178 : vector<8x8xf32>
    %180 = math.tanh %179 : vector<8x8xf32>
    %181 = arith.mulf %174, %180 : vector<8x8xf32>
    %cst_45 = arith.constant 0.000000e+00 : f32
    %182 = vector.broadcast %cst_45 : f32 to vector<8x128xf32>
    %c0_i32_46 = arith.constant 0 : i32
    %183 = vector.broadcast %c0_i32_46 : i32 to vector<8x1xi32>
    %184 = arith.cmpi eq, %21, %183 : vector<8x1xi32>
    %185 = vector.extract_strided_slice %20 {offsets = [2, 0], sizes = [1, 128], strides = [1, 1]} : vector<16x128xf32> to vector<1x128xf32>
    %186 = vector.shape_cast %184 : vector<8x1xi1> to vector<8x1xi1>
    %187 = vector.broadcast %186 : vector<8x1xi1> to vector<8x128xi1>
    %188 = vector.shape_cast %185 : vector<1x128xf32> to vector<1x128xf32>
    %189 = vector.broadcast %188 : vector<1x128xf32> to vector<8x128xf32>
    %190 = arith.select %187, %189, %182 : vector<8x128xi1>, vector<8x128xf32>
    %c1_i32_47 = arith.constant 1 : i32
    %191 = vector.broadcast %c1_i32_47 : i32 to vector<8x1xi32>
    %192 = arith.cmpi eq, %21, %191 : vector<8x1xi32>
    %193 = vector.extract_strided_slice %20 {offsets = [10, 0], sizes = [1, 128], strides = [1, 1]} : vector<16x128xf32> to vector<1x128xf32>
    %194 = vector.shape_cast %192 : vector<8x1xi1> to vector<8x1xi1>
    %195 = vector.broadcast %194 : vector<8x1xi1> to vector<8x128xi1>
    %196 = vector.shape_cast %193 : vector<1x128xf32> to vector<1x128xf32>
    %197 = vector.broadcast %196 : vector<1x128xf32> to vector<8x128xf32>
    %198 = arith.select %195, %197, %190 : vector<8x128xi1>, vector<8x128xf32>
    %cst_48 = arith.constant dense<0.000000e+00> : vector<8x128xf32>
    %199 = tpu.matmul %139, %1, %cst_48 {dimension_numbers = #tpu.dot_dimension_numbers<[1], [0], [0], [1], [0, 0, 1, 1], [], []>} : vector<8x32xf32>, vector<32x128xf32>, vector<8x128xf32> -> vector<8x128xf32>
    %200 = arith.addf %198, %199 : vector<8x128xf32>
    %201 = vector.extract_strided_slice %200 {offsets = [0, 0], sizes = [8, 96], strides = [1, 1]} : vector<8x128xf32> to vector<8x96xf32>
    %202 = arith.negf %201 : vector<8x96xf32>
    %203 = math.exp %202 : vector<8x96xf32>
    %cst_49 = arith.constant 1.000000e+00 : f32
    %204 = vector.broadcast %cst_49 : f32 to vector<8x96xf32>
    %205 = arith.addf %204, %203 : vector<8x96xf32>
    %206 = arith.divf %204, %205 : vector<8x96xf32>
    %207 = vector.extract_strided_slice %206 {offsets = [0, 0], sizes = [8, 32], strides = [1, 1]} : vector<8x96xf32> to vector<8x32xf32>
    %208 = vector.extract_strided_slice %206 {offsets = [0, 32], sizes = [8, 32], strides = [1, 1]} : vector<8x96xf32> to vector<8x32xf32>
    %209 = vector.extract_strided_slice %206 {offsets = [0, 64], sizes = [8, 32], strides = [1, 1]} : vector<8x96xf32> to vector<8x32xf32>
    %210 = vector.extract_strided_slice %200 {offsets = [0, 96], sizes = [8, 32], strides = [1, 1]} : vector<8x128xf32> to vector<8x32xf32>
    %211 = math.tanh %210 : vector<8x32xf32>
    %212 = arith.mulf %208, %137 : vector<8x32xf32>
    %213 = arith.mulf %207, %211 : vector<8x32xf32>
    %214 = arith.addf %212, %213 : vector<8x32xf32>
    %215 = math.tanh %214 : vector<8x32xf32>
    %216 = arith.mulf %209, %215 : vector<8x32xf32>
    %cst_50 = arith.constant dense<0.000000e+00> : vector<8x64xf32>
    %217 = tpu.matmul %216, %3, %cst_50 {dimension_numbers = #tpu.dot_dimension_numbers<[1], [0], [0], [1], [0, 0, 1, 1], [], []>} : vector<8x32xf32>, vector<32x64xf32>, vector<8x64xf32> -> vector<8x64xf32>
    %cst_51 = arith.constant dense<0.000000e+00> : vector<8x64xf32>
    %218 = tpu.matmul %160, %4, %cst_51 {dimension_numbers = #tpu.dot_dimension_numbers<[1], [0], [0], [1], [0, 0, 1, 1], [], []>} : vector<8x16xf32>, vector<16x64xf32>, vector<8x64xf32> -> vector<8x64xf32>
    %219 = arith.addf %217, %218 : vector<8x64xf32>
    %220 = vector.broadcast %5 : vector<1x64xf32> to vector<8x64xf32>
    %221 = arith.addf %219, %220 : vector<8x64xf32>
    %222 = vector.extract_strided_slice %221 {offsets = [0, 0], sizes = [8, 48], strides = [1, 1]} : vector<8x64xf32> to vector<8x48xf32>
    %223 = arith.negf %222 : vector<8x48xf32>
    %224 = math.exp %223 : vector<8x48xf32>
    %cst_52 = arith.constant 1.000000e+00 : f32
    %225 = vector.broadcast %cst_52 : f32 to vector<8x48xf32>
    %226 = arith.addf %225, %224 : vector<8x48xf32>
    %227 = arith.divf %225, %226 : vector<8x48xf32>
    %228 = vector.extract_strided_slice %227 {offsets = [0, 0], sizes = [8, 16], strides = [1, 1]} : vector<8x48xf32> to vector<8x16xf32>
    %229 = vector.extract_strided_slice %227 {offsets = [0, 16], sizes = [8, 16], strides = [1, 1]} : vector<8x48xf32> to vector<8x16xf32>
    %230 = vector.extract_strided_slice %227 {offsets = [0, 32], sizes = [8, 16], strides = [1, 1]} : vector<8x48xf32> to vector<8x16xf32>
    %231 = vector.extract_strided_slice %221 {offsets = [0, 48], sizes = [8, 16], strides = [1, 1]} : vector<8x64xf32> to vector<8x16xf32>
    %232 = math.tanh %231 : vector<8x16xf32>
    %233 = arith.mulf %229, %158 : vector<8x16xf32>
    %234 = arith.mulf %228, %232 : vector<8x16xf32>
    %235 = arith.addf %233, %234 : vector<8x16xf32>
    %236 = math.tanh %235 : vector<8x16xf32>
    %237 = arith.mulf %230, %236 : vector<8x16xf32>
    %cst_53 = arith.constant dense<0.000000e+00> : vector<8x32xf32>
    %238 = tpu.matmul %237, %6, %cst_53 {dimension_numbers = #tpu.dot_dimension_numbers<[1], [0], [0], [1], [0, 0, 1, 1], [], []>} : vector<8x16xf32>, vector<16x32xf32>, vector<8x32xf32> -> vector<8x32xf32>
    %cst_54 = arith.constant dense<0.000000e+00> : vector<8x32xf32>
    %239 = tpu.matmul %181, %7, %cst_54 {dimension_numbers = #tpu.dot_dimension_numbers<[1], [0], [0], [1], [0, 0, 1, 1], [], []>} : vector<8x8xf32>, vector<8x32xf32>, vector<8x32xf32> -> vector<8x32xf32>
    %240 = arith.addf %238, %239 : vector<8x32xf32>
    %241 = vector.broadcast %8 : vector<1x32xf32> to vector<8x32xf32>
    %242 = arith.addf %240, %241 : vector<8x32xf32>
    %243 = vector.extract_strided_slice %242 {offsets = [0, 0], sizes = [8, 24], strides = [1, 1]} : vector<8x32xf32> to vector<8x24xf32>
    %244 = arith.negf %243 : vector<8x24xf32>
    %245 = math.exp %244 : vector<8x24xf32>
    %cst_55 = arith.constant 1.000000e+00 : f32
    %246 = vector.broadcast %cst_55 : f32 to vector<8x24xf32>
    %247 = arith.addf %246, %245 : vector<8x24xf32>
    %248 = arith.divf %246, %247 : vector<8x24xf32>
    %249 = vector.extract_strided_slice %248 {offsets = [0, 0], sizes = [8, 8], strides = [1, 1]} : vector<8x24xf32> to vector<8x8xf32>
    %250 = vector.extract_strided_slice %248 {offsets = [0, 8], sizes = [8, 8], strides = [1, 1]} : vector<8x24xf32> to vector<8x8xf32>
    %251 = vector.extract_strided_slice %248 {offsets = [0, 16], sizes = [8, 8], strides = [1, 1]} : vector<8x24xf32> to vector<8x8xf32>
    %252 = vector.extract_strided_slice %242 {offsets = [0, 24], sizes = [8, 8], strides = [1, 1]} : vector<8x32xf32> to vector<8x8xf32>
    %253 = math.tanh %252 : vector<8x8xf32>
    %254 = arith.mulf %250, %179 : vector<8x8xf32>
    %255 = arith.mulf %249, %253 : vector<8x8xf32>
    %256 = arith.addf %254, %255 : vector<8x8xf32>
    %257 = math.tanh %256 : vector<8x8xf32>
    %258 = arith.mulf %251, %257 : vector<8x8xf32>
    %cst_56 = arith.constant 0.000000e+00 : f32
    %259 = vector.broadcast %cst_56 : f32 to vector<8x128xf32>
    %c0_i32_57 = arith.constant 0 : i32
    %260 = vector.broadcast %c0_i32_57 : i32 to vector<8x1xi32>
    %261 = arith.cmpi eq, %21, %260 : vector<8x1xi32>
    %262 = vector.extract_strided_slice %20 {offsets = [3, 0], sizes = [1, 128], strides = [1, 1]} : vector<16x128xf32> to vector<1x128xf32>
    %263 = vector.shape_cast %261 : vector<8x1xi1> to vector<8x1xi1>
    %264 = vector.broadcast %263 : vector<8x1xi1> to vector<8x128xi1>
    %265 = vector.shape_cast %262 : vector<1x128xf32> to vector<1x128xf32>
    %266 = vector.broadcast %265 : vector<1x128xf32> to vector<8x128xf32>
    %267 = arith.select %264, %266, %259 : vector<8x128xi1>, vector<8x128xf32>
    %c1_i32_58 = arith.constant 1 : i32
    %268 = vector.broadcast %c1_i32_58 : i32 to vector<8x1xi32>
    %269 = arith.cmpi eq, %21, %268 : vector<8x1xi32>
    %270 = vector.extract_strided_slice %20 {offsets = [11, 0], sizes = [1, 128], strides = [1, 1]} : vector<16x128xf32> to vector<1x128xf32>
    %271 = vector.shape_cast %269 : vector<8x1xi1> to vector<8x1xi1>
    %272 = vector.broadcast %271 : vector<8x1xi1> to vector<8x128xi1>
    %273 = vector.shape_cast %270 : vector<1x128xf32> to vector<1x128xf32>
    %274 = vector.broadcast %273 : vector<1x128xf32> to vector<8x128xf32>
    %275 = arith.select %272, %274, %267 : vector<8x128xi1>, vector<8x128xf32>
    %cst_59 = arith.constant dense<0.000000e+00> : vector<8x128xf32>
    %276 = tpu.matmul %216, %1, %cst_59 {dimension_numbers = #tpu.dot_dimension_numbers<[1], [0], [0], [1], [0, 0, 1, 1], [], []>} : vector<8x32xf32>, vector<32x128xf32>, vector<8x128xf32> -> vector<8x128xf32>
    %277 = arith.addf %275, %276 : vector<8x128xf32>
    %278 = vector.extract_strided_slice %277 {offsets = [0, 0], sizes = [8, 96], strides = [1, 1]} : vector<8x128xf32> to vector<8x96xf32>
    %279 = arith.negf %278 : vector<8x96xf32>
    %280 = math.exp %279 : vector<8x96xf32>
    %cst_60 = arith.constant 1.000000e+00 : f32
    %281 = vector.broadcast %cst_60 : f32 to vector<8x96xf32>
    %282 = arith.addf %281, %280 : vector<8x96xf32>
    %283 = arith.divf %281, %282 : vector<8x96xf32>
    %284 = vector.extract_strided_slice %283 {offsets = [0, 0], sizes = [8, 32], strides = [1, 1]} : vector<8x96xf32> to vector<8x32xf32>
    %285 = vector.extract_strided_slice %283 {offsets = [0, 32], sizes = [8, 32], strides = [1, 1]} : vector<8x96xf32> to vector<8x32xf32>
    %286 = vector.extract_strided_slice %283 {offsets = [0, 64], sizes = [8, 32], strides = [1, 1]} : vector<8x96xf32> to vector<8x32xf32>
    %287 = vector.extract_strided_slice %277 {offsets = [0, 96], sizes = [8, 32], strides = [1, 1]} : vector<8x128xf32> to vector<8x32xf32>
    %288 = math.tanh %287 : vector<8x32xf32>
    %289 = arith.mulf %285, %214 : vector<8x32xf32>
    %290 = arith.mulf %284, %288 : vector<8x32xf32>
    %291 = arith.addf %289, %290 : vector<8x32xf32>
    %292 = math.tanh %291 : vector<8x32xf32>
    %293 = arith.mulf %286, %292 : vector<8x32xf32>
    %cst_61 = arith.constant dense<0.000000e+00> : vector<8x64xf32>
    %294 = tpu.matmul %293, %3, %cst_61 {dimension_numbers = #tpu.dot_dimension_numbers<[1], [0], [0], [1], [0, 0, 1, 1], [], []>} : vector<8x32xf32>, vector<32x64xf32>, vector<8x64xf32> -> vector<8x64xf32>
    %cst_62 = arith.constant dense<0.000000e+00> : vector<8x64xf32>
    %295 = tpu.matmul %237, %4, %cst_62 {dimension_numbers = #tpu.dot_dimension_numbers<[1], [0], [0], [1], [0, 0, 1, 1], [], []>} : vector<8x16xf32>, vector<16x64xf32>, vector<8x64xf32> -> vector<8x64xf32>
    %296 = arith.addf %294, %295 : vector<8x64xf32>
    %297 = vector.broadcast %5 : vector<1x64xf32> to vector<8x64xf32>
    %298 = arith.addf %296, %297 : vector<8x64xf32>
    %299 = vector.extract_strided_slice %298 {offsets = [0, 0], sizes = [8, 48], strides = [1, 1]} : vector<8x64xf32> to vector<8x48xf32>
    %300 = arith.negf %299 : vector<8x48xf32>
    %301 = math.exp %300 : vector<8x48xf32>
    %cst_63 = arith.constant 1.000000e+00 : f32
    %302 = vector.broadcast %cst_63 : f32 to vector<8x48xf32>
    %303 = arith.addf %302, %301 : vector<8x48xf32>
    %304 = arith.divf %302, %303 : vector<8x48xf32>
    %305 = vector.extract_strided_slice %304 {offsets = [0, 0], sizes = [8, 16], strides = [1, 1]} : vector<8x48xf32> to vector<8x16xf32>
    %306 = vector.extract_strided_slice %304 {offsets = [0, 16], sizes = [8, 16], strides = [1, 1]} : vector<8x48xf32> to vector<8x16xf32>
    %307 = vector.extract_strided_slice %304 {offsets = [0, 32], sizes = [8, 16], strides = [1, 1]} : vector<8x48xf32> to vector<8x16xf32>
    %308 = vector.extract_strided_slice %298 {offsets = [0, 48], sizes = [8, 16], strides = [1, 1]} : vector<8x64xf32> to vector<8x16xf32>
    %309 = math.tanh %308 : vector<8x16xf32>
    %310 = arith.mulf %306, %235 : vector<8x16xf32>
    %311 = arith.mulf %305, %309 : vector<8x16xf32>
    %312 = arith.addf %310, %311 : vector<8x16xf32>
    %313 = math.tanh %312 : vector<8x16xf32>
    %314 = arith.mulf %307, %313 : vector<8x16xf32>
    %cst_64 = arith.constant dense<0.000000e+00> : vector<8x32xf32>
    %315 = tpu.matmul %314, %6, %cst_64 {dimension_numbers = #tpu.dot_dimension_numbers<[1], [0], [0], [1], [0, 0, 1, 1], [], []>} : vector<8x16xf32>, vector<16x32xf32>, vector<8x32xf32> -> vector<8x32xf32>
    %cst_65 = arith.constant dense<0.000000e+00> : vector<8x32xf32>
    %316 = tpu.matmul %258, %7, %cst_65 {dimension_numbers = #tpu.dot_dimension_numbers<[1], [0], [0], [1], [0, 0, 1, 1], [], []>} : vector<8x8xf32>, vector<8x32xf32>, vector<8x32xf32> -> vector<8x32xf32>
    %317 = arith.addf %315, %316 : vector<8x32xf32>
    %318 = vector.broadcast %8 : vector<1x32xf32> to vector<8x32xf32>
    %319 = arith.addf %317, %318 : vector<8x32xf32>
    %320 = vector.extract_strided_slice %319 {offsets = [0, 0], sizes = [8, 24], strides = [1, 1]} : vector<8x32xf32> to vector<8x24xf32>
    %321 = arith.negf %320 : vector<8x24xf32>
    %322 = math.exp %321 : vector<8x24xf32>
    %cst_66 = arith.constant 1.000000e+00 : f32
    %323 = vector.broadcast %cst_66 : f32 to vector<8x24xf32>
    %324 = arith.addf %323, %322 : vector<8x24xf32>
    %325 = arith.divf %323, %324 : vector<8x24xf32>
    %326 = vector.extract_strided_slice %325 {offsets = [0, 0], sizes = [8, 8], strides = [1, 1]} : vector<8x24xf32> to vector<8x8xf32>
    %327 = vector.extract_strided_slice %325 {offsets = [0, 8], sizes = [8, 8], strides = [1, 1]} : vector<8x24xf32> to vector<8x8xf32>
    %328 = vector.extract_strided_slice %325 {offsets = [0, 16], sizes = [8, 8], strides = [1, 1]} : vector<8x24xf32> to vector<8x8xf32>
    %329 = vector.extract_strided_slice %319 {offsets = [0, 24], sizes = [8, 8], strides = [1, 1]} : vector<8x32xf32> to vector<8x8xf32>
    %330 = math.tanh %329 : vector<8x8xf32>
    %331 = arith.mulf %327, %256 : vector<8x8xf32>
    %332 = arith.mulf %326, %330 : vector<8x8xf32>
    %333 = arith.addf %331, %332 : vector<8x8xf32>
    %334 = math.tanh %333 : vector<8x8xf32>
    %335 = arith.mulf %328, %334 : vector<8x8xf32>
    %cst_67 = arith.constant 0.000000e+00 : f32
    %336 = vector.broadcast %cst_67 : f32 to vector<8x128xf32>
    %c0_i32_68 = arith.constant 0 : i32
    %337 = vector.broadcast %c0_i32_68 : i32 to vector<8x1xi32>
    %338 = arith.cmpi eq, %21, %337 : vector<8x1xi32>
    %339 = vector.extract_strided_slice %20 {offsets = [4, 0], sizes = [1, 128], strides = [1, 1]} : vector<16x128xf32> to vector<1x128xf32>
    %340 = vector.shape_cast %338 : vector<8x1xi1> to vector<8x1xi1>
    %341 = vector.broadcast %340 : vector<8x1xi1> to vector<8x128xi1>
    %342 = vector.shape_cast %339 : vector<1x128xf32> to vector<1x128xf32>
    %343 = vector.broadcast %342 : vector<1x128xf32> to vector<8x128xf32>
    %344 = arith.select %341, %343, %336 : vector<8x128xi1>, vector<8x128xf32>
    %c1_i32_69 = arith.constant 1 : i32
    %345 = vector.broadcast %c1_i32_69 : i32 to vector<8x1xi32>
    %346 = arith.cmpi eq, %21, %345 : vector<8x1xi32>
    %347 = vector.extract_strided_slice %20 {offsets = [12, 0], sizes = [1, 128], strides = [1, 1]} : vector<16x128xf32> to vector<1x128xf32>
    %348 = vector.shape_cast %346 : vector<8x1xi1> to vector<8x1xi1>
    %349 = vector.broadcast %348 : vector<8x1xi1> to vector<8x128xi1>
    %350 = vector.shape_cast %347 : vector<1x128xf32> to vector<1x128xf32>
    %351 = vector.broadcast %350 : vector<1x128xf32> to vector<8x128xf32>
    %352 = arith.select %349, %351, %344 : vector<8x128xi1>, vector<8x128xf32>
    %cst_70 = arith.constant dense<0.000000e+00> : vector<8x128xf32>
    %353 = tpu.matmul %293, %1, %cst_70 {dimension_numbers = #tpu.dot_dimension_numbers<[1], [0], [0], [1], [0, 0, 1, 1], [], []>} : vector<8x32xf32>, vector<32x128xf32>, vector<8x128xf32> -> vector<8x128xf32>
    %354 = arith.addf %352, %353 : vector<8x128xf32>
    %355 = vector.extract_strided_slice %354 {offsets = [0, 0], sizes = [8, 96], strides = [1, 1]} : vector<8x128xf32> to vector<8x96xf32>
    %356 = arith.negf %355 : vector<8x96xf32>
    %357 = math.exp %356 : vector<8x96xf32>
    %cst_71 = arith.constant 1.000000e+00 : f32
    %358 = vector.broadcast %cst_71 : f32 to vector<8x96xf32>
    %359 = arith.addf %358, %357 : vector<8x96xf32>
    %360 = arith.divf %358, %359 : vector<8x96xf32>
    %361 = vector.extract_strided_slice %360 {offsets = [0, 0], sizes = [8, 32], strides = [1, 1]} : vector<8x96xf32> to vector<8x32xf32>
    %362 = vector.extract_strided_slice %360 {offsets = [0, 32], sizes = [8, 32], strides = [1, 1]} : vector<8x96xf32> to vector<8x32xf32>
    %363 = vector.extract_strided_slice %360 {offsets = [0, 64], sizes = [8, 32], strides = [1, 1]} : vector<8x96xf32> to vector<8x32xf32>
    %364 = vector.extract_strided_slice %354 {offsets = [0, 96], sizes = [8, 32], strides = [1, 1]} : vector<8x128xf32> to vector<8x32xf32>
    %365 = math.tanh %364 : vector<8x32xf32>
    %366 = arith.mulf %362, %291 : vector<8x32xf32>
    %367 = arith.mulf %361, %365 : vector<8x32xf32>
    %368 = arith.addf %366, %367 : vector<8x32xf32>
    %369 = math.tanh %368 : vector<8x32xf32>
    %370 = arith.mulf %363, %369 : vector<8x32xf32>
    %cst_72 = arith.constant dense<0.000000e+00> : vector<8x64xf32>
    %371 = tpu.matmul %370, %3, %cst_72 {dimension_numbers = #tpu.dot_dimension_numbers<[1], [0], [0], [1], [0, 0, 1, 1], [], []>} : vector<8x32xf32>, vector<32x64xf32>, vector<8x64xf32> -> vector<8x64xf32>
    %cst_73 = arith.constant dense<0.000000e+00> : vector<8x64xf32>
    %372 = tpu.matmul %314, %4, %cst_73 {dimension_numbers = #tpu.dot_dimension_numbers<[1], [0], [0], [1], [0, 0, 1, 1], [], []>} : vector<8x16xf32>, vector<16x64xf32>, vector<8x64xf32> -> vector<8x64xf32>
    %373 = arith.addf %371, %372 : vector<8x64xf32>
    %374 = vector.broadcast %5 : vector<1x64xf32> to vector<8x64xf32>
    %375 = arith.addf %373, %374 : vector<8x64xf32>
    %376 = vector.extract_strided_slice %375 {offsets = [0, 0], sizes = [8, 48], strides = [1, 1]} : vector<8x64xf32> to vector<8x48xf32>
    %377 = arith.negf %376 : vector<8x48xf32>
    %378 = math.exp %377 : vector<8x48xf32>
    %cst_74 = arith.constant 1.000000e+00 : f32
    %379 = vector.broadcast %cst_74 : f32 to vector<8x48xf32>
    %380 = arith.addf %379, %378 : vector<8x48xf32>
    %381 = arith.divf %379, %380 : vector<8x48xf32>
    %382 = vector.extract_strided_slice %381 {offsets = [0, 0], sizes = [8, 16], strides = [1, 1]} : vector<8x48xf32> to vector<8x16xf32>
    %383 = vector.extract_strided_slice %381 {offsets = [0, 16], sizes = [8, 16], strides = [1, 1]} : vector<8x48xf32> to vector<8x16xf32>
    %384 = vector.extract_strided_slice %381 {offsets = [0, 32], sizes = [8, 16], strides = [1, 1]} : vector<8x48xf32> to vector<8x16xf32>
    %385 = vector.extract_strided_slice %375 {offsets = [0, 48], sizes = [8, 16], strides = [1, 1]} : vector<8x64xf32> to vector<8x16xf32>
    %386 = math.tanh %385 : vector<8x16xf32>
    %387 = arith.mulf %383, %312 : vector<8x16xf32>
    %388 = arith.mulf %382, %386 : vector<8x16xf32>
    %389 = arith.addf %387, %388 : vector<8x16xf32>
    %390 = math.tanh %389 : vector<8x16xf32>
    %391 = arith.mulf %384, %390 : vector<8x16xf32>
    %cst_75 = arith.constant dense<0.000000e+00> : vector<8x32xf32>
    %392 = tpu.matmul %391, %6, %cst_75 {dimension_numbers = #tpu.dot_dimension_numbers<[1], [0], [0], [1], [0, 0, 1, 1], [], []>} : vector<8x16xf32>, vector<16x32xf32>, vector<8x32xf32> -> vector<8x32xf32>
    %cst_76 = arith.constant dense<0.000000e+00> : vector<8x32xf32>
    %393 = tpu.matmul %335, %7, %cst_76 {dimension_numbers = #tpu.dot_dimension_numbers<[1], [0], [0], [1], [0, 0, 1, 1], [], []>} : vector<8x8xf32>, vector<8x32xf32>, vector<8x32xf32> -> vector<8x32xf32>
    %394 = arith.addf %392, %393 : vector<8x32xf32>
    %395 = vector.broadcast %8 : vector<1x32xf32> to vector<8x32xf32>
    %396 = arith.addf %394, %395 : vector<8x32xf32>
    %397 = vector.extract_strided_slice %396 {offsets = [0, 0], sizes = [8, 24], strides = [1, 1]} : vector<8x32xf32> to vector<8x24xf32>
    %398 = arith.negf %397 : vector<8x24xf32>
    %399 = math.exp %398 : vector<8x24xf32>
    %cst_77 = arith.constant 1.000000e+00 : f32
    %400 = vector.broadcast %cst_77 : f32 to vector<8x24xf32>
    %401 = arith.addf %400, %399 : vector<8x24xf32>
    %402 = arith.divf %400, %401 : vector<8x24xf32>
    %403 = vector.extract_strided_slice %402 {offsets = [0, 0], sizes = [8, 8], strides = [1, 1]} : vector<8x24xf32> to vector<8x8xf32>
    %404 = vector.extract_strided_slice %402 {offsets = [0, 8], sizes = [8, 8], strides = [1, 1]} : vector<8x24xf32> to vector<8x8xf32>
    %405 = vector.extract_strided_slice %402 {offsets = [0, 16], sizes = [8, 8], strides = [1, 1]} : vector<8x24xf32> to vector<8x8xf32>
    %406 = vector.extract_strided_slice %396 {offsets = [0, 24], sizes = [8, 8], strides = [1, 1]} : vector<8x32xf32> to vector<8x8xf32>
    %407 = math.tanh %406 : vector<8x8xf32>
    %408 = arith.mulf %404, %333 : vector<8x8xf32>
    %409 = arith.mulf %403, %407 : vector<8x8xf32>
    %410 = arith.addf %408, %409 : vector<8x8xf32>
    %411 = math.tanh %410 : vector<8x8xf32>
    %412 = arith.mulf %405, %411 : vector<8x8xf32>
    %cst_78 = arith.constant 0.000000e+00 : f32
    %413 = vector.broadcast %cst_78 : f32 to vector<8x128xf32>
    %c0_i32_79 = arith.constant 0 : i32
    %414 = vector.broadcast %c0_i32_79 : i32 to vector<8x1xi32>
    %415 = arith.cmpi eq, %21, %414 : vector<8x1xi32>
    %416 = vector.extract_strided_slice %20 {offsets = [5, 0], sizes = [1, 128], strides = [1, 1]} : vector<16x128xf32> to vector<1x128xf32>
    %417 = vector.shape_cast %415 : vector<8x1xi1> to vector<8x1xi1>
    %418 = vector.broadcast %417 : vector<8x1xi1> to vector<8x128xi1>
    %419 = vector.shape_cast %416 : vector<1x128xf32> to vector<1x128xf32>
    %420 = vector.broadcast %419 : vector<1x128xf32> to vector<8x128xf32>
    %421 = arith.select %418, %420, %413 : vector<8x128xi1>, vector<8x128xf32>
    %c1_i32_80 = arith.constant 1 : i32
    %422 = vector.broadcast %c1_i32_80 : i32 to vector<8x1xi32>
    %423 = arith.cmpi eq, %21, %422 : vector<8x1xi32>
    %424 = vector.extract_strided_slice %20 {offsets = [13, 0], sizes = [1, 128], strides = [1, 1]} : vector<16x128xf32> to vector<1x128xf32>
    %425 = vector.shape_cast %423 : vector<8x1xi1> to vector<8x1xi1>
    %426 = vector.broadcast %425 : vector<8x1xi1> to vector<8x128xi1>
    %427 = vector.shape_cast %424 : vector<1x128xf32> to vector<1x128xf32>
    %428 = vector.broadcast %427 : vector<1x128xf32> to vector<8x128xf32>
    %429 = arith.select %426, %428, %421 : vector<8x128xi1>, vector<8x128xf32>
    %cst_81 = arith.constant dense<0.000000e+00> : vector<8x128xf32>
    %430 = tpu.matmul %370, %1, %cst_81 {dimension_numbers = #tpu.dot_dimension_numbers<[1], [0], [0], [1], [0, 0, 1, 1], [], []>} : vector<8x32xf32>, vector<32x128xf32>, vector<8x128xf32> -> vector<8x128xf32>
    %431 = arith.addf %429, %430 : vector<8x128xf32>
    %432 = vector.extract_strided_slice %431 {offsets = [0, 0], sizes = [8, 96], strides = [1, 1]} : vector<8x128xf32> to vector<8x96xf32>
    %433 = arith.negf %432 : vector<8x96xf32>
    %434 = math.exp %433 : vector<8x96xf32>
    %cst_82 = arith.constant 1.000000e+00 : f32
    %435 = vector.broadcast %cst_82 : f32 to vector<8x96xf32>
    %436 = arith.addf %435, %434 : vector<8x96xf32>
    %437 = arith.divf %435, %436 : vector<8x96xf32>
    %438 = vector.extract_strided_slice %437 {offsets = [0, 0], sizes = [8, 32], strides = [1, 1]} : vector<8x96xf32> to vector<8x32xf32>
    %439 = vector.extract_strided_slice %437 {offsets = [0, 32], sizes = [8, 32], strides = [1, 1]} : vector<8x96xf32> to vector<8x32xf32>
    %440 = vector.extract_strided_slice %437 {offsets = [0, 64], sizes = [8, 32], strides = [1, 1]} : vector<8x96xf32> to vector<8x32xf32>
    %441 = vector.extract_strided_slice %431 {offsets = [0, 96], sizes = [8, 32], strides = [1, 1]} : vector<8x128xf32> to vector<8x32xf32>
    %442 = math.tanh %441 : vector<8x32xf32>
    %443 = arith.mulf %439, %368 : vector<8x32xf32>
    %444 = arith.mulf %438, %442 : vector<8x32xf32>
    %445 = arith.addf %443, %444 : vector<8x32xf32>
    %446 = math.tanh %445 : vector<8x32xf32>
    %447 = arith.mulf %440, %446 : vector<8x32xf32>
    %cst_83 = arith.constant dense<0.000000e+00> : vector<8x64xf32>
    %448 = tpu.matmul %447, %3, %cst_83 {dimension_numbers = #tpu.dot_dimension_numbers<[1], [0], [0], [1], [0, 0, 1, 1], [], []>} : vector<8x32xf32>, vector<32x64xf32>, vector<8x64xf32> -> vector<8x64xf32>
    %cst_84 = arith.constant dense<0.000000e+00> : vector<8x64xf32>
    %449 = tpu.matmul %391, %4, %cst_84 {dimension_numbers = #tpu.dot_dimension_numbers<[1], [0], [0], [1], [0, 0, 1, 1], [], []>} : vector<8x16xf32>, vector<16x64xf32>, vector<8x64xf32> -> vector<8x64xf32>
    %450 = arith.addf %448, %449 : vector<8x64xf32>
    %451 = vector.broadcast %5 : vector<1x64xf32> to vector<8x64xf32>
    %452 = arith.addf %450, %451 : vector<8x64xf32>
    %453 = vector.extract_strided_slice %452 {offsets = [0, 0], sizes = [8, 48], strides = [1, 1]} : vector<8x64xf32> to vector<8x48xf32>
    %454 = arith.negf %453 : vector<8x48xf32>
    %455 = math.exp %454 : vector<8x48xf32>
    %cst_85 = arith.constant 1.000000e+00 : f32
    %456 = vector.broadcast %cst_85 : f32 to vector<8x48xf32>
    %457 = arith.addf %456, %455 : vector<8x48xf32>
    %458 = arith.divf %456, %457 : vector<8x48xf32>
    %459 = vector.extract_strided_slice %458 {offsets = [0, 0], sizes = [8, 16], strides = [1, 1]} : vector<8x48xf32> to vector<8x16xf32>
    %460 = vector.extract_strided_slice %458 {offsets = [0, 16], sizes = [8, 16], strides = [1, 1]} : vector<8x48xf32> to vector<8x16xf32>
    %461 = vector.extract_strided_slice %458 {offsets = [0, 32], sizes = [8, 16], strides = [1, 1]} : vector<8x48xf32> to vector<8x16xf32>
    %462 = vector.extract_strided_slice %452 {offsets = [0, 48], sizes = [8, 16], strides = [1, 1]} : vector<8x64xf32> to vector<8x16xf32>
    %463 = math.tanh %462 : vector<8x16xf32>
    %464 = arith.mulf %460, %389 : vector<8x16xf32>
    %465 = arith.mulf %459, %463 : vector<8x16xf32>
    %466 = arith.addf %464, %465 : vector<8x16xf32>
    %467 = math.tanh %466 : vector<8x16xf32>
    %468 = arith.mulf %461, %467 : vector<8x16xf32>
    %cst_86 = arith.constant dense<0.000000e+00> : vector<8x32xf32>
    %469 = tpu.matmul %468, %6, %cst_86 {dimension_numbers = #tpu.dot_dimension_numbers<[1], [0], [0], [1], [0, 0, 1, 1], [], []>} : vector<8x16xf32>, vector<16x32xf32>, vector<8x32xf32> -> vector<8x32xf32>
    %cst_87 = arith.constant dense<0.000000e+00> : vector<8x32xf32>
    %470 = tpu.matmul %412, %7, %cst_87 {dimension_numbers = #tpu.dot_dimension_numbers<[1], [0], [0], [1], [0, 0, 1, 1], [], []>} : vector<8x8xf32>, vector<8x32xf32>, vector<8x32xf32> -> vector<8x32xf32>
    %471 = arith.addf %469, %470 : vector<8x32xf32>
    %472 = vector.broadcast %8 : vector<1x32xf32> to vector<8x32xf32>
    %473 = arith.addf %471, %472 : vector<8x32xf32>
    %474 = vector.extract_strided_slice %473 {offsets = [0, 0], sizes = [8, 24], strides = [1, 1]} : vector<8x32xf32> to vector<8x24xf32>
    %475 = arith.negf %474 : vector<8x24xf32>
    %476 = math.exp %475 : vector<8x24xf32>
    %cst_88 = arith.constant 1.000000e+00 : f32
    %477 = vector.broadcast %cst_88 : f32 to vector<8x24xf32>
    %478 = arith.addf %477, %476 : vector<8x24xf32>
    %479 = arith.divf %477, %478 : vector<8x24xf32>
    %480 = vector.extract_strided_slice %479 {offsets = [0, 0], sizes = [8, 8], strides = [1, 1]} : vector<8x24xf32> to vector<8x8xf32>
    %481 = vector.extract_strided_slice %479 {offsets = [0, 8], sizes = [8, 8], strides = [1, 1]} : vector<8x24xf32> to vector<8x8xf32>
    %482 = vector.extract_strided_slice %479 {offsets = [0, 16], sizes = [8, 8], strides = [1, 1]} : vector<8x24xf32> to vector<8x8xf32>
    %483 = vector.extract_strided_slice %473 {offsets = [0, 24], sizes = [8, 8], strides = [1, 1]} : vector<8x32xf32> to vector<8x8xf32>
    %484 = math.tanh %483 : vector<8x8xf32>
    %485 = arith.mulf %481, %410 : vector<8x8xf32>
    %486 = arith.mulf %480, %484 : vector<8x8xf32>
    %487 = arith.addf %485, %486 : vector<8x8xf32>
    %488 = math.tanh %487 : vector<8x8xf32>
    %489 = arith.mulf %482, %488 : vector<8x8xf32>
    %cst_89 = arith.constant 0.000000e+00 : f32
    %490 = vector.broadcast %cst_89 : f32 to vector<8x128xf32>
    %c0_i32_90 = arith.constant 0 : i32
    %491 = vector.broadcast %c0_i32_90 : i32 to vector<8x1xi32>
    %492 = arith.cmpi eq, %21, %491 : vector<8x1xi32>
    %493 = vector.extract_strided_slice %20 {offsets = [6, 0], sizes = [1, 128], strides = [1, 1]} : vector<16x128xf32> to vector<1x128xf32>
    %494 = vector.shape_cast %492 : vector<8x1xi1> to vector<8x1xi1>
    %495 = vector.broadcast %494 : vector<8x1xi1> to vector<8x128xi1>
    %496 = vector.shape_cast %493 : vector<1x128xf32> to vector<1x128xf32>
    %497 = vector.broadcast %496 : vector<1x128xf32> to vector<8x128xf32>
    %498 = arith.select %495, %497, %490 : vector<8x128xi1>, vector<8x128xf32>
    %c1_i32_91 = arith.constant 1 : i32
    %499 = vector.broadcast %c1_i32_91 : i32 to vector<8x1xi32>
    %500 = arith.cmpi eq, %21, %499 : vector<8x1xi32>
    %501 = vector.extract_strided_slice %20 {offsets = [14, 0], sizes = [1, 128], strides = [1, 1]} : vector<16x128xf32> to vector<1x128xf32>
    %502 = vector.shape_cast %500 : vector<8x1xi1> to vector<8x1xi1>
    %503 = vector.broadcast %502 : vector<8x1xi1> to vector<8x128xi1>
    %504 = vector.shape_cast %501 : vector<1x128xf32> to vector<1x128xf32>
    %505 = vector.broadcast %504 : vector<1x128xf32> to vector<8x128xf32>
    %506 = arith.select %503, %505, %498 : vector<8x128xi1>, vector<8x128xf32>
    %cst_92 = arith.constant dense<0.000000e+00> : vector<8x128xf32>
    %507 = tpu.matmul %447, %1, %cst_92 {dimension_numbers = #tpu.dot_dimension_numbers<[1], [0], [0], [1], [0, 0, 1, 1], [], []>} : vector<8x32xf32>, vector<32x128xf32>, vector<8x128xf32> -> vector<8x128xf32>
    %508 = arith.addf %506, %507 : vector<8x128xf32>
    %509 = vector.extract_strided_slice %508 {offsets = [0, 0], sizes = [8, 96], strides = [1, 1]} : vector<8x128xf32> to vector<8x96xf32>
    %510 = arith.negf %509 : vector<8x96xf32>
    %511 = math.exp %510 : vector<8x96xf32>
    %cst_93 = arith.constant 1.000000e+00 : f32
    %512 = vector.broadcast %cst_93 : f32 to vector<8x96xf32>
    %513 = arith.addf %512, %511 : vector<8x96xf32>
    %514 = arith.divf %512, %513 : vector<8x96xf32>
    %515 = vector.extract_strided_slice %514 {offsets = [0, 0], sizes = [8, 32], strides = [1, 1]} : vector<8x96xf32> to vector<8x32xf32>
    %516 = vector.extract_strided_slice %514 {offsets = [0, 32], sizes = [8, 32], strides = [1, 1]} : vector<8x96xf32> to vector<8x32xf32>
    %517 = vector.extract_strided_slice %514 {offsets = [0, 64], sizes = [8, 32], strides = [1, 1]} : vector<8x96xf32> to vector<8x32xf32>
    %518 = vector.extract_strided_slice %508 {offsets = [0, 96], sizes = [8, 32], strides = [1, 1]} : vector<8x128xf32> to vector<8x32xf32>
    %519 = math.tanh %518 : vector<8x32xf32>
    %520 = arith.mulf %516, %445 : vector<8x32xf32>
    %521 = arith.mulf %515, %519 : vector<8x32xf32>
    %522 = arith.addf %520, %521 : vector<8x32xf32>
    %523 = math.tanh %522 : vector<8x32xf32>
    %524 = arith.mulf %517, %523 : vector<8x32xf32>
    %cst_94 = arith.constant dense<0.000000e+00> : vector<8x64xf32>
    %525 = tpu.matmul %524, %3, %cst_94 {dimension_numbers = #tpu.dot_dimension_numbers<[1], [0], [0], [1], [0, 0, 1, 1], [], []>} : vector<8x32xf32>, vector<32x64xf32>, vector<8x64xf32> -> vector<8x64xf32>
    %cst_95 = arith.constant dense<0.000000e+00> : vector<8x64xf32>
    %526 = tpu.matmul %468, %4, %cst_95 {dimension_numbers = #tpu.dot_dimension_numbers<[1], [0], [0], [1], [0, 0, 1, 1], [], []>} : vector<8x16xf32>, vector<16x64xf32>, vector<8x64xf32> -> vector<8x64xf32>
    %527 = arith.addf %525, %526 : vector<8x64xf32>
    %528 = vector.broadcast %5 : vector<1x64xf32> to vector<8x64xf32>
    %529 = arith.addf %527, %528 : vector<8x64xf32>
    %530 = vector.extract_strided_slice %529 {offsets = [0, 0], sizes = [8, 48], strides = [1, 1]} : vector<8x64xf32> to vector<8x48xf32>
    %531 = arith.negf %530 : vector<8x48xf32>
    %532 = math.exp %531 : vector<8x48xf32>
    %cst_96 = arith.constant 1.000000e+00 : f32
    %533 = vector.broadcast %cst_96 : f32 to vector<8x48xf32>
    %534 = arith.addf %533, %532 : vector<8x48xf32>
    %535 = arith.divf %533, %534 : vector<8x48xf32>
    %536 = vector.extract_strided_slice %535 {offsets = [0, 0], sizes = [8, 16], strides = [1, 1]} : vector<8x48xf32> to vector<8x16xf32>
    %537 = vector.extract_strided_slice %535 {offsets = [0, 16], sizes = [8, 16], strides = [1, 1]} : vector<8x48xf32> to vector<8x16xf32>
    %538 = vector.extract_strided_slice %535 {offsets = [0, 32], sizes = [8, 16], strides = [1, 1]} : vector<8x48xf32> to vector<8x16xf32>
    %539 = vector.extract_strided_slice %529 {offsets = [0, 48], sizes = [8, 16], strides = [1, 1]} : vector<8x64xf32> to vector<8x16xf32>
    %540 = math.tanh %539 : vector<8x16xf32>
    %541 = arith.mulf %537, %466 : vector<8x16xf32>
    %542 = arith.mulf %536, %540 : vector<8x16xf32>
    %543 = arith.addf %541, %542 : vector<8x16xf32>
    %544 = math.tanh %543 : vector<8x16xf32>
    %545 = arith.mulf %538, %544 : vector<8x16xf32>
    %cst_97 = arith.constant dense<0.000000e+00> : vector<8x32xf32>
    %546 = tpu.matmul %545, %6, %cst_97 {dimension_numbers = #tpu.dot_dimension_numbers<[1], [0], [0], [1], [0, 0, 1, 1], [], []>} : vector<8x16xf32>, vector<16x32xf32>, vector<8x32xf32> -> vector<8x32xf32>
    %cst_98 = arith.constant dense<0.000000e+00> : vector<8x32xf32>
    %547 = tpu.matmul %489, %7, %cst_98 {dimension_numbers = #tpu.dot_dimension_numbers<[1], [0], [0], [1], [0, 0, 1, 1], [], []>} : vector<8x8xf32>, vector<8x32xf32>, vector<8x32xf32> -> vector<8x32xf32>
    %548 = arith.addf %546, %547 : vector<8x32xf32>
    %549 = vector.broadcast %8 : vector<1x32xf32> to vector<8x32xf32>
    %550 = arith.addf %548, %549 : vector<8x32xf32>
    %551 = vector.extract_strided_slice %550 {offsets = [0, 0], sizes = [8, 24], strides = [1, 1]} : vector<8x32xf32> to vector<8x24xf32>
    %552 = arith.negf %551 : vector<8x24xf32>
    %553 = math.exp %552 : vector<8x24xf32>
    %cst_99 = arith.constant 1.000000e+00 : f32
    %554 = vector.broadcast %cst_99 : f32 to vector<8x24xf32>
    %555 = arith.addf %554, %553 : vector<8x24xf32>
    %556 = arith.divf %554, %555 : vector<8x24xf32>
    %557 = vector.extract_strided_slice %556 {offsets = [0, 0], sizes = [8, 8], strides = [1, 1]} : vector<8x24xf32> to vector<8x8xf32>
    %558 = vector.extract_strided_slice %556 {offsets = [0, 8], sizes = [8, 8], strides = [1, 1]} : vector<8x24xf32> to vector<8x8xf32>
    %559 = vector.extract_strided_slice %556 {offsets = [0, 16], sizes = [8, 8], strides = [1, 1]} : vector<8x24xf32> to vector<8x8xf32>
    %560 = vector.extract_strided_slice %550 {offsets = [0, 24], sizes = [8, 8], strides = [1, 1]} : vector<8x32xf32> to vector<8x8xf32>
    %561 = math.tanh %560 : vector<8x8xf32>
    %562 = arith.mulf %558, %487 : vector<8x8xf32>
    %563 = arith.mulf %557, %561 : vector<8x8xf32>
    %564 = arith.addf %562, %563 : vector<8x8xf32>
    %565 = math.tanh %564 : vector<8x8xf32>
    %566 = arith.mulf %559, %565 : vector<8x8xf32>
    %cst_100 = arith.constant 0.000000e+00 : f32
    %567 = vector.broadcast %cst_100 : f32 to vector<8x128xf32>
    %c0_i32_101 = arith.constant 0 : i32
    %568 = vector.broadcast %c0_i32_101 : i32 to vector<8x1xi32>
    %569 = arith.cmpi eq, %21, %568 : vector<8x1xi32>
    %570 = vector.extract_strided_slice %20 {offsets = [7, 0], sizes = [1, 128], strides = [1, 1]} : vector<16x128xf32> to vector<1x128xf32>
    %571 = vector.shape_cast %569 : vector<8x1xi1> to vector<8x1xi1>
    %572 = vector.broadcast %571 : vector<8x1xi1> to vector<8x128xi1>
    %573 = vector.shape_cast %570 : vector<1x128xf32> to vector<1x128xf32>
    %574 = vector.broadcast %573 : vector<1x128xf32> to vector<8x128xf32>
    %575 = arith.select %572, %574, %567 : vector<8x128xi1>, vector<8x128xf32>
    %c1_i32_102 = arith.constant 1 : i32
    %576 = vector.broadcast %c1_i32_102 : i32 to vector<8x1xi32>
    %577 = arith.cmpi eq, %21, %576 : vector<8x1xi32>
    %578 = vector.extract_strided_slice %20 {offsets = [15, 0], sizes = [1, 128], strides = [1, 1]} : vector<16x128xf32> to vector<1x128xf32>
    %579 = vector.shape_cast %577 : vector<8x1xi1> to vector<8x1xi1>
    %580 = vector.broadcast %579 : vector<8x1xi1> to vector<8x128xi1>
    %581 = vector.shape_cast %578 : vector<1x128xf32> to vector<1x128xf32>
    %582 = vector.broadcast %581 : vector<1x128xf32> to vector<8x128xf32>
    %583 = arith.select %580, %582, %575 : vector<8x128xi1>, vector<8x128xf32>
    %cst_103 = arith.constant dense<0.000000e+00> : vector<8x128xf32>
    %584 = tpu.matmul %524, %1, %cst_103 {dimension_numbers = #tpu.dot_dimension_numbers<[1], [0], [0], [1], [0, 0, 1, 1], [], []>} : vector<8x32xf32>, vector<32x128xf32>, vector<8x128xf32> -> vector<8x128xf32>
    %585 = arith.addf %583, %584 : vector<8x128xf32>
    %586 = vector.extract_strided_slice %585 {offsets = [0, 0], sizes = [8, 96], strides = [1, 1]} : vector<8x128xf32> to vector<8x96xf32>
    %587 = arith.negf %586 : vector<8x96xf32>
    %588 = math.exp %587 : vector<8x96xf32>
    %cst_104 = arith.constant 1.000000e+00 : f32
    %589 = vector.broadcast %cst_104 : f32 to vector<8x96xf32>
    %590 = arith.addf %589, %588 : vector<8x96xf32>
    %591 = arith.divf %589, %590 : vector<8x96xf32>
    %592 = vector.extract_strided_slice %591 {offsets = [0, 0], sizes = [8, 32], strides = [1, 1]} : vector<8x96xf32> to vector<8x32xf32>
    %593 = vector.extract_strided_slice %591 {offsets = [0, 32], sizes = [8, 32], strides = [1, 1]} : vector<8x96xf32> to vector<8x32xf32>
    %594 = vector.extract_strided_slice %591 {offsets = [0, 64], sizes = [8, 32], strides = [1, 1]} : vector<8x96xf32> to vector<8x32xf32>
    %595 = vector.extract_strided_slice %585 {offsets = [0, 96], sizes = [8, 32], strides = [1, 1]} : vector<8x128xf32> to vector<8x32xf32>
    %596 = math.tanh %595 : vector<8x32xf32>
    %597 = arith.mulf %593, %522 : vector<8x32xf32>
    %598 = arith.mulf %592, %596 : vector<8x32xf32>
    %599 = arith.addf %597, %598 : vector<8x32xf32>
    %600 = math.tanh %599 : vector<8x32xf32>
    %601 = arith.mulf %594, %600 : vector<8x32xf32>
    %cst_105 = arith.constant dense<0.000000e+00> : vector<8x64xf32>
    %602 = tpu.matmul %601, %3, %cst_105 {dimension_numbers = #tpu.dot_dimension_numbers<[1], [0], [0], [1], [0, 0, 1, 1], [], []>} : vector<8x32xf32>, vector<32x64xf32>, vector<8x64xf32> -> vector<8x64xf32>
    %cst_106 = arith.constant dense<0.000000e+00> : vector<8x64xf32>
    %603 = tpu.matmul %545, %4, %cst_106 {dimension_numbers = #tpu.dot_dimension_numbers<[1], [0], [0], [1], [0, 0, 1, 1], [], []>} : vector<8x16xf32>, vector<16x64xf32>, vector<8x64xf32> -> vector<8x64xf32>
    %604 = arith.addf %602, %603 : vector<8x64xf32>
    %605 = vector.broadcast %5 : vector<1x64xf32> to vector<8x64xf32>
    %606 = arith.addf %604, %605 : vector<8x64xf32>
    %607 = vector.extract_strided_slice %606 {offsets = [0, 0], sizes = [8, 48], strides = [1, 1]} : vector<8x64xf32> to vector<8x48xf32>
    %608 = arith.negf %607 : vector<8x48xf32>
    %609 = math.exp %608 : vector<8x48xf32>
    %cst_107 = arith.constant 1.000000e+00 : f32
    %610 = vector.broadcast %cst_107 : f32 to vector<8x48xf32>
    %611 = arith.addf %610, %609 : vector<8x48xf32>
    %612 = arith.divf %610, %611 : vector<8x48xf32>
    %613 = vector.extract_strided_slice %612 {offsets = [0, 0], sizes = [8, 16], strides = [1, 1]} : vector<8x48xf32> to vector<8x16xf32>
    %614 = vector.extract_strided_slice %612 {offsets = [0, 16], sizes = [8, 16], strides = [1, 1]} : vector<8x48xf32> to vector<8x16xf32>
    %615 = vector.extract_strided_slice %612 {offsets = [0, 32], sizes = [8, 16], strides = [1, 1]} : vector<8x48xf32> to vector<8x16xf32>
    %616 = vector.extract_strided_slice %606 {offsets = [0, 48], sizes = [8, 16], strides = [1, 1]} : vector<8x64xf32> to vector<8x16xf32>
    %617 = math.tanh %616 : vector<8x16xf32>
    %618 = arith.mulf %614, %543 : vector<8x16xf32>
    %619 = arith.mulf %613, %617 : vector<8x16xf32>
    %620 = arith.addf %618, %619 : vector<8x16xf32>
    %621 = math.tanh %620 : vector<8x16xf32>
    %622 = arith.mulf %615, %621 : vector<8x16xf32>
    %cst_108 = arith.constant dense<0.000000e+00> : vector<8x32xf32>
    %623 = tpu.matmul %622, %6, %cst_108 {dimension_numbers = #tpu.dot_dimension_numbers<[1], [0], [0], [1], [0, 0, 1, 1], [], []>} : vector<8x16xf32>, vector<16x32xf32>, vector<8x32xf32> -> vector<8x32xf32>
    %cst_109 = arith.constant dense<0.000000e+00> : vector<8x32xf32>
    %624 = tpu.matmul %566, %7, %cst_109 {dimension_numbers = #tpu.dot_dimension_numbers<[1], [0], [0], [1], [0, 0, 1, 1], [], []>} : vector<8x8xf32>, vector<8x32xf32>, vector<8x32xf32> -> vector<8x32xf32>
    %625 = arith.addf %623, %624 : vector<8x32xf32>
    %626 = vector.broadcast %8 : vector<1x32xf32> to vector<8x32xf32>
    %627 = arith.addf %625, %626 : vector<8x32xf32>
    %628 = vector.extract_strided_slice %627 {offsets = [0, 0], sizes = [8, 24], strides = [1, 1]} : vector<8x32xf32> to vector<8x24xf32>
    %629 = arith.negf %628 : vector<8x24xf32>
    %630 = math.exp %629 : vector<8x24xf32>
    %cst_110 = arith.constant 1.000000e+00 : f32
    %631 = vector.broadcast %cst_110 : f32 to vector<8x24xf32>
    %632 = arith.addf %631, %630 : vector<8x24xf32>
    %633 = arith.divf %631, %632 : vector<8x24xf32>
    %634 = vector.extract_strided_slice %633 {offsets = [0, 0], sizes = [8, 8], strides = [1, 1]} : vector<8x24xf32> to vector<8x8xf32>
    %635 = vector.extract_strided_slice %633 {offsets = [0, 8], sizes = [8, 8], strides = [1, 1]} : vector<8x24xf32> to vector<8x8xf32>
    %636 = vector.extract_strided_slice %633 {offsets = [0, 16], sizes = [8, 8], strides = [1, 1]} : vector<8x24xf32> to vector<8x8xf32>
    %637 = vector.extract_strided_slice %627 {offsets = [0, 24], sizes = [8, 8], strides = [1, 1]} : vector<8x32xf32> to vector<8x8xf32>
    %638 = math.tanh %637 : vector<8x8xf32>
    %639 = arith.mulf %635, %564 : vector<8x8xf32>
    %640 = arith.mulf %634, %638 : vector<8x8xf32>
    %641 = arith.addf %639, %640 : vector<8x8xf32>
    %642 = math.tanh %641 : vector<8x8xf32>
    %643 = arith.mulf %636, %642 : vector<8x8xf32>
    %cst_111 = arith.constant 0.000000e+00 : f32
    %644 = vector.broadcast %cst_111 : f32 to vector<8x16xf32>
    %cst_112 = arith.constant 0.000000e+00 : f32
    %645 = vector.broadcast %cst_112 : f32 to vector<8x16xf32>
    %cst_113 = arith.constant 0.000000e+00 : f32
    %646 = vector.broadcast %cst_113 : f32 to vector<8x32xf32>
    %cst_114 = arith.constant 0.000000e+00 : f32
    %647 = vector.broadcast %cst_114 : f32 to vector<8x32xf32>
    %cst_115 = arith.constant 0.000000e+00 : f32
    %648 = vector.broadcast %cst_115 : f32 to vector<8x8xf32>
    %c0_i32_116 = arith.constant 0 : i32
    %649 = vector.broadcast %c0_i32_116 : i32 to vector<8x1xi32>
    %650 = arith.cmpi eq, %21, %649 : vector<8x1xi32>
    %651 = vector.extract_strided_slice %643 {offsets = [0, 0], sizes = [1, 8], strides = [1, 1]} : vector<8x8xf32> to vector<1x8xf32>
    %652 = vector.shape_cast %650 : vector<8x1xi1> to vector<8x1xi1>
    %653 = vector.broadcast %652 : vector<8x1xi1> to vector<8x8xi1>
    %654 = vector.shape_cast %651 : vector<1x8xf32> to vector<1x8xf32>
    %655 = vector.broadcast %654 : vector<1x8xf32> to vector<8x8xf32>
    %656 = arith.select %653, %655, %648 : vector<8x8xi1>, vector<8x8xf32>
    %c1_i32_117 = arith.constant 1 : i32
    %657 = vector.broadcast %c1_i32_117 : i32 to vector<8x1xi32>
    %658 = arith.cmpi eq, %21, %657 : vector<8x1xi32>
    %659 = vector.extract_strided_slice %643 {offsets = [0, 0], sizes = [1, 8], strides = [1, 1]} : vector<8x8xf32> to vector<1x8xf32>
    %660 = vector.shape_cast %658 : vector<8x1xi1> to vector<8x1xi1>
    %661 = vector.broadcast %660 : vector<8x1xi1> to vector<8x8xi1>
    %662 = vector.shape_cast %659 : vector<1x8xf32> to vector<1x8xf32>
    %663 = vector.broadcast %662 : vector<1x8xf32> to vector<8x8xf32>
    %664 = arith.select %661, %663, %656 : vector<8x8xi1>, vector<8x8xf32>
    %cst_118 = arith.constant dense<0.000000e+00> : vector<8x64xf32>
    %665 = tpu.matmul %664, %9, %cst_118 {dimension_numbers = #tpu.dot_dimension_numbers<[1], [0], [0], [1], [0, 0, 1, 1], [], []>} : vector<8x8xf32>, vector<8x64xf32>, vector<8x64xf32> -> vector<8x64xf32>
    %cst_119 = arith.constant dense<0.000000e+00> : vector<8x64xf32>
    %666 = tpu.matmul %644, %10, %cst_119 {dimension_numbers = #tpu.dot_dimension_numbers<[1], [0], [0], [1], [0, 0, 1, 1], [], []>} : vector<8x16xf32>, vector<16x64xf32>, vector<8x64xf32> -> vector<8x64xf32>
    %667 = arith.addf %665, %666 : vector<8x64xf32>
    %668 = vector.broadcast %11 : vector<1x64xf32> to vector<8x64xf32>
    %669 = arith.addf %667, %668 : vector<8x64xf32>
    %670 = vector.extract_strided_slice %669 {offsets = [0, 0], sizes = [8, 48], strides = [1, 1]} : vector<8x64xf32> to vector<8x48xf32>
    %671 = arith.negf %670 : vector<8x48xf32>
    %672 = math.exp %671 : vector<8x48xf32>
    %cst_120 = arith.constant 1.000000e+00 : f32
    %673 = vector.broadcast %cst_120 : f32 to vector<8x48xf32>
    %674 = arith.addf %673, %672 : vector<8x48xf32>
    %675 = arith.divf %673, %674 : vector<8x48xf32>
    %676 = vector.extract_strided_slice %675 {offsets = [0, 0], sizes = [8, 16], strides = [1, 1]} : vector<8x48xf32> to vector<8x16xf32>
    %677 = vector.extract_strided_slice %675 {offsets = [0, 16], sizes = [8, 16], strides = [1, 1]} : vector<8x48xf32> to vector<8x16xf32>
    %678 = vector.extract_strided_slice %675 {offsets = [0, 32], sizes = [8, 16], strides = [1, 1]} : vector<8x48xf32> to vector<8x16xf32>
    %679 = vector.extract_strided_slice %669 {offsets = [0, 48], sizes = [8, 16], strides = [1, 1]} : vector<8x64xf32> to vector<8x16xf32>
    %680 = math.tanh %679 : vector<8x16xf32>
    %681 = arith.mulf %677, %645 : vector<8x16xf32>
    %682 = arith.mulf %676, %680 : vector<8x16xf32>
    %683 = arith.addf %681, %682 : vector<8x16xf32>
    %684 = math.tanh %683 : vector<8x16xf32>
    %685 = arith.mulf %678, %684 : vector<8x16xf32>
    %cst_121 = arith.constant dense<0.000000e+00> : vector<8x128xf32>
    %686 = tpu.matmul %685, %12, %cst_121 {dimension_numbers = #tpu.dot_dimension_numbers<[1], [0], [0], [1], [0, 0, 1, 1], [], []>} : vector<8x16xf32>, vector<16x128xf32>, vector<8x128xf32> -> vector<8x128xf32>
    %cst_122 = arith.constant dense<0.000000e+00> : vector<8x128xf32>
    %687 = tpu.matmul %646, %13, %cst_122 {dimension_numbers = #tpu.dot_dimension_numbers<[1], [0], [0], [1], [0, 0, 1, 1], [], []>} : vector<8x32xf32>, vector<32x128xf32>, vector<8x128xf32> -> vector<8x128xf32>
    %688 = arith.addf %686, %687 : vector<8x128xf32>
    %689 = vector.broadcast %14 : vector<1x128xf32> to vector<8x128xf32>
    %690 = arith.addf %688, %689 : vector<8x128xf32>
    %691 = vector.extract_strided_slice %690 {offsets = [0, 0], sizes = [8, 96], strides = [1, 1]} : vector<8x128xf32> to vector<8x96xf32>
    %692 = arith.negf %691 : vector<8x96xf32>
    %693 = math.exp %692 : vector<8x96xf32>
    %cst_123 = arith.constant 1.000000e+00 : f32
    %694 = vector.broadcast %cst_123 : f32 to vector<8x96xf32>
    %695 = arith.addf %694, %693 : vector<8x96xf32>
    %696 = arith.divf %694, %695 : vector<8x96xf32>
    %697 = vector.extract_strided_slice %696 {offsets = [0, 0], sizes = [8, 32], strides = [1, 1]} : vector<8x96xf32> to vector<8x32xf32>
    %698 = vector.extract_strided_slice %696 {offsets = [0, 32], sizes = [8, 32], strides = [1, 1]} : vector<8x96xf32> to vector<8x32xf32>
    %699 = vector.extract_strided_slice %696 {offsets = [0, 64], sizes = [8, 32], strides = [1, 1]} : vector<8x96xf32> to vector<8x32xf32>
    %700 = vector.extract_strided_slice %690 {offsets = [0, 96], sizes = [8, 32], strides = [1, 1]} : vector<8x128xf32> to vector<8x32xf32>
    %701 = math.tanh %700 : vector<8x32xf32>
    %702 = arith.mulf %698, %647 : vector<8x32xf32>
    %703 = arith.mulf %697, %701 : vector<8x32xf32>
    %704 = arith.addf %702, %703 : vector<8x32xf32>
    %705 = math.tanh %704 : vector<8x32xf32>
    %706 = arith.mulf %699, %705 : vector<8x32xf32>
    %cst_124 = arith.constant dense<0.000000e+00> : vector<8x128xf32>
    %707 = tpu.matmul %706, %15, %cst_124 {dimension_numbers = #tpu.dot_dimension_numbers<[1], [0], [0], [1], [0, 0, 1, 1], [], []>} : vector<8x32xf32>, vector<32x128xf32>, vector<8x128xf32> -> vector<8x128xf32>
    %708 = vector.broadcast %16 : vector<1x128xf32> to vector<8x128xf32>
    %709 = arith.addf %707, %708 : vector<8x128xf32>
    %c0_125 = arith.constant 0 : index
    %c0_126 = arith.constant 0 : index
    %710 = vector.load %arg2[%c0_125, %c0_126] : memref<8x1024xf32, #tpu.memory_space<vmem>>, vector<8x128xf32>
    tpu.vector_store %arg2[%c0_125, %c0_126], %709 {strides = array<i32>} : memref<8x1024xf32, #tpu.memory_space<vmem>>, vector<8x128xf32>,
    %cst_127 = arith.constant 0.000000e+00 : f32
    %711 = vector.broadcast %cst_127 : f32 to vector<8x8xf32>
    %c0_i32_128 = arith.constant 0 : i32
    %712 = vector.broadcast %c0_i32_128 : i32 to vector<8x1xi32>
    %713 = arith.cmpi eq, %21, %712 : vector<8x1xi32>
    %714 = vector.extract_strided_slice %643 {offsets = [1, 0], sizes = [1, 8], strides = [1, 1]} : vector<8x8xf32> to vector<1x8xf32>
    %715 = vector.shape_cast %713 : vector<8x1xi1> to vector<8x1xi1>
    %716 = vector.broadcast %715 : vector<8x1xi1> to vector<8x8xi1>
    %717 = vector.shape_cast %714 : vector<1x8xf32> to vector<1x8xf32>
    %718 = vector.broadcast %717 : vector<1x8xf32> to vector<8x8xf32>
    %719 = arith.select %716, %718, %711 : vector<8x8xi1>, vector<8x8xf32>
    %c1_i32_129 = arith.constant 1 : i32
    %720 = vector.broadcast %c1_i32_129 : i32 to vector<8x1xi32>
    %721 = arith.cmpi eq, %21, %720 : vector<8x1xi32>
    %722 = vector.extract_strided_slice %643 {offsets = [1, 0], sizes = [1, 8], strides = [1, 1]} : vector<8x8xf32> to vector<1x8xf32>
    %723 = vector.shape_cast %721 : vector<8x1xi1> to vector<8x1xi1>
    %724 = vector.broadcast %723 : vector<8x1xi1> to vector<8x8xi1>
    %725 = vector.shape_cast %722 : vector<1x8xf32> to vector<1x8xf32>
    %726 = vector.broadcast %725 : vector<1x8xf32> to vector<8x8xf32>
    %727 = arith.select %724, %726, %719 : vector<8x8xi1>, vector<8x8xf32>
    %cst_130 = arith.constant dense<0.000000e+00> : vector<8x64xf32>
    %728 = tpu.matmul %727, %9, %cst_130 {dimension_numbers = #tpu.dot_dimension_numbers<[1], [0], [0], [1], [0, 0, 1, 1], [], []>} : vector<8x8xf32>, vector<8x64xf32>, vector<8x64xf32> -> vector<8x64xf32>
    %cst_131 = arith.constant dense<0.000000e+00> : vector<8x64xf32>
    %729 = tpu.matmul %685, %10, %cst_131 {dimension_numbers = #tpu.dot_dimension_numbers<[1], [0], [0], [1], [0, 0, 1, 1], [], []>} : vector<8x16xf32>, vector<16x64xf32>, vector<8x64xf32> -> vector<8x64xf32>
    %730 = arith.addf %728, %729 : vector<8x64xf32>
    %731 = vector.broadcast %11 : vector<1x64xf32> to vector<8x64xf32>
    %732 = arith.addf %730, %731 : vector<8x64xf32>
    %733 = vector.extract_strided_slice %732 {offsets = [0, 0], sizes = [8, 48], strides = [1, 1]} : vector<8x64xf32> to vector<8x48xf32>
    %734 = arith.negf %733 : vector<8x48xf32>
    %735 = math.exp %734 : vector<8x48xf32>
    %cst_132 = arith.constant 1.000000e+00 : f32
    %736 = vector.broadcast %cst_132 : f32 to vector<8x48xf32>
    %737 = arith.addf %736, %735 : vector<8x48xf32>
    %738 = arith.divf %736, %737 : vector<8x48xf32>
    %739 = vector.extract_strided_slice %738 {offsets = [0, 0], sizes = [8, 16], strides = [1, 1]} : vector<8x48xf32> to vector<8x16xf32>
    %740 = vector.extract_strided_slice %738 {offsets = [0, 16], sizes = [8, 16], strides = [1, 1]} : vector<8x48xf32> to vector<8x16xf32>
    %741 = vector.extract_strided_slice %738 {offsets = [0, 32], sizes = [8, 16], strides = [1, 1]} : vector<8x48xf32> to vector<8x16xf32>
    %742 = vector.extract_strided_slice %732 {offsets = [0, 48], sizes = [8, 16], strides = [1, 1]} : vector<8x64xf32> to vector<8x16xf32>
    %743 = math.tanh %742 : vector<8x16xf32>
    %744 = arith.mulf %740, %683 : vector<8x16xf32>
    %745 = arith.mulf %739, %743 : vector<8x16xf32>
    %746 = arith.addf %744, %745 : vector<8x16xf32>
    %747 = math.tanh %746 : vector<8x16xf32>
    %748 = arith.mulf %741, %747 : vector<8x16xf32>
    %cst_133 = arith.constant dense<0.000000e+00> : vector<8x128xf32>
    %749 = tpu.matmul %748, %12, %cst_133 {dimension_numbers = #tpu.dot_dimension_numbers<[1], [0], [0], [1], [0, 0, 1, 1], [], []>} : vector<8x16xf32>, vector<16x128xf32>, vector<8x128xf32> -> vector<8x128xf32>
    %cst_134 = arith.constant dense<0.000000e+00> : vector<8x128xf32>
    %750 = tpu.matmul %706, %13, %cst_134 {dimension_numbers = #tpu.dot_dimension_numbers<[1], [0], [0], [1], [0, 0, 1, 1], [], []>} : vector<8x32xf32>, vector<32x128xf32>, vector<8x128xf32> -> vector<8x128xf32>
    %751 = arith.addf %749, %750 : vector<8x128xf32>
    %752 = vector.broadcast %14 : vector<1x128xf32> to vector<8x128xf32>
    %753 = arith.addf %751, %752 : vector<8x128xf32>
    %754 = vector.extract_strided_slice %753 {offsets = [0, 0], sizes = [8, 96], strides = [1, 1]} : vector<8x128xf32> to vector<8x96xf32>
    %755 = arith.negf %754 : vector<8x96xf32>
    %756 = math.exp %755 : vector<8x96xf32>
    %cst_135 = arith.constant 1.000000e+00 : f32
    %757 = vector.broadcast %cst_135 : f32 to vector<8x96xf32>
    %758 = arith.addf %757, %756 : vector<8x96xf32>
    %759 = arith.divf %757, %758 : vector<8x96xf32>
    %760 = vector.extract_strided_slice %759 {offsets = [0, 0], sizes = [8, 32], strides = [1, 1]} : vector<8x96xf32> to vector<8x32xf32>
    %761 = vector.extract_strided_slice %759 {offsets = [0, 32], sizes = [8, 32], strides = [1, 1]} : vector<8x96xf32> to vector<8x32xf32>
    %762 = vector.extract_strided_slice %759 {offsets = [0, 64], sizes = [8, 32], strides = [1, 1]} : vector<8x96xf32> to vector<8x32xf32>
    %763 = vector.extract_strided_slice %753 {offsets = [0, 96], sizes = [8, 32], strides = [1, 1]} : vector<8x128xf32> to vector<8x32xf32>
    %764 = math.tanh %763 : vector<8x32xf32>
    %765 = arith.mulf %761, %704 : vector<8x32xf32>
    %766 = arith.mulf %760, %764 : vector<8x32xf32>
    %767 = arith.addf %765, %766 : vector<8x32xf32>
    %768 = math.tanh %767 : vector<8x32xf32>
    %769 = arith.mulf %762, %768 : vector<8x32xf32>
    %cst_136 = arith.constant dense<0.000000e+00> : vector<8x128xf32>
    %770 = tpu.matmul %769, %15, %cst_136 {dimension_numbers = #tpu.dot_dimension_numbers<[1], [0], [0], [1], [0, 0, 1, 1], [], []>} : vector<8x32xf32>, vector<32x128xf32>, vector<8x128xf32> -> vector<8x128xf32>
    %771 = vector.broadcast %16 : vector<1x128xf32> to vector<8x128xf32>
    %772 = arith.addf %770, %771 : vector<8x128xf32>
    %c0_137 = arith.constant 0 : index
    %c128_138 = arith.constant 128 : index
    %773 = vector.load %arg2[%c0_137, %c128_138] : memref<8x1024xf32, #tpu.memory_space<vmem>>, vector<8x128xf32>
    tpu.vector_store %arg2[%c0_137, %c128_138], %772 {strides = array<i32>} : memref<8x1024xf32, #tpu.memory_space<vmem>>, vector<8x128xf32>,
    %cst_139 = arith.constant 0.000000e+00 : f32
    %774 = vector.broadcast %cst_139 : f32 to vector<8x8xf32>
    %c0_i32_140 = arith.constant 0 : i32
    %775 = vector.broadcast %c0_i32_140 : i32 to vector<8x1xi32>
    %776 = arith.cmpi eq, %21, %775 : vector<8x1xi32>
    %777 = vector.extract_strided_slice %643 {offsets = [0, 0], sizes = [1, 8], strides = [1, 1]} : vector<8x8xf32> to vector<1x8xf32>
    %778 = vector.shape_cast %776 : vector<8x1xi1> to vector<8x1xi1>
    %779 = vector.broadcast %778 : vector<8x1xi1> to vector<8x8xi1>
    %780 = vector.shape_cast %777 : vector<1x8xf32> to vector<1x8xf32>
    %781 = vector.broadcast %780 : vector<1x8xf32> to vector<8x8xf32>
    %782 = arith.select %779, %781, %774 : vector<8x8xi1>, vector<8x8xf32>
    %c1_i32_141 = arith.constant 1 : i32
    %783 = vector.broadcast %c1_i32_141 : i32 to vector<8x1xi32>
    %784 = arith.cmpi eq, %21, %783 : vector<8x1xi32>
    %785 = vector.extract_strided_slice %643 {offsets = [0, 0], sizes = [1, 8], strides = [1, 1]} : vector<8x8xf32> to vector<1x8xf32>
    %786 = vector.shape_cast %784 : vector<8x1xi1> to vector<8x1xi1>
    %787 = vector.broadcast %786 : vector<8x1xi1> to vector<8x8xi1>
    %788 = vector.shape_cast %785 : vector<1x8xf32> to vector<1x8xf32>
    %789 = vector.broadcast %788 : vector<1x8xf32> to vector<8x8xf32>
    %790 = arith.select %787, %789, %782 : vector<8x8xi1>, vector<8x8xf32>
    %cst_142 = arith.constant dense<0.000000e+00> : vector<8x64xf32>
    %791 = tpu.matmul %790, %9, %cst_142 {dimension_numbers = #tpu.dot_dimension_numbers<[1], [0], [0], [1], [0, 0, 1, 1], [], []>} : vector<8x8xf32>, vector<8x64xf32>, vector<8x64xf32> -> vector<8x64xf32>
    %cst_143 = arith.constant dense<0.000000e+00> : vector<8x64xf32>
    %792 = tpu.matmul %748, %10, %cst_143 {dimension_numbers = #tpu.dot_dimension_numbers<[1], [0], [0], [1], [0, 0, 1, 1], [], []>} : vector<8x16xf32>, vector<16x64xf32>, vector<8x64xf32> -> vector<8x64xf32>
    %793 = arith.addf %791, %792 : vector<8x64xf32>
    %794 = vector.broadcast %11 : vector<1x64xf32> to vector<8x64xf32>
    %795 = arith.addf %793, %794 : vector<8x64xf32>
    %796 = vector.extract_strided_slice %795 {offsets = [0, 0], sizes = [8, 48], strides = [1, 1]} : vector<8x64xf32> to vector<8x48xf32>
    %797 = arith.negf %796 : vector<8x48xf32>
    %798 = math.exp %797 : vector<8x48xf32>
    %cst_144 = arith.constant 1.000000e+00 : f32
    %799 = vector.broadcast %cst_144 : f32 to vector<8x48xf32>
    %800 = arith.addf %799, %798 : vector<8x48xf32>
    %801 = arith.divf %799, %800 : vector<8x48xf32>
    %802 = vector.extract_strided_slice %801 {offsets = [0, 0], sizes = [8, 16], strides = [1, 1]} : vector<8x48xf32> to vector<8x16xf32>
    %803 = vector.extract_strided_slice %801 {offsets = [0, 16], sizes = [8, 16], strides = [1, 1]} : vector<8x48xf32> to vector<8x16xf32>
    %804 = vector.extract_strided_slice %801 {offsets = [0, 32], sizes = [8, 16], strides = [1, 1]} : vector<8x48xf32> to vector<8x16xf32>
    %805 = vector.extract_strided_slice %795 {offsets = [0, 48], sizes = [8, 16], strides = [1, 1]} : vector<8x64xf32> to vector<8x16xf32>
    %806 = math.tanh %805 : vector<8x16xf32>
    %807 = arith.mulf %803, %746 : vector<8x16xf32>
    %808 = arith.mulf %802, %806 : vector<8x16xf32>
    %809 = arith.addf %807, %808 : vector<8x16xf32>
    %810 = math.tanh %809 : vector<8x16xf32>
    %811 = arith.mulf %804, %810 : vector<8x16xf32>
    %cst_145 = arith.constant dense<0.000000e+00> : vector<8x128xf32>
    %812 = tpu.matmul %811, %12, %cst_145 {dimension_numbers = #tpu.dot_dimension_numbers<[1], [0], [0], [1], [0, 0, 1, 1], [], []>} : vector<8x16xf32>, vector<16x128xf32>, vector<8x128xf32> -> vector<8x128xf32>
    %cst_146 = arith.constant dense<0.000000e+00> : vector<8x128xf32>
    %813 = tpu.matmul %769, %13, %cst_146 {dimension_numbers = #tpu.dot_dimension_numbers<[1], [0], [0], [1], [0, 0, 1, 1], [], []>} : vector<8x32xf32>, vector<32x128xf32>, vector<8x128xf32> -> vector<8x128xf32>
    %814 = arith.addf %812, %813 : vector<8x128xf32>
    %815 = vector.broadcast %14 : vector<1x128xf32> to vector<8x128xf32>
    %816 = arith.addf %814, %815 : vector<8x128xf32>
    %817 = vector.extract_strided_slice %816 {offsets = [0, 0], sizes = [8, 96], strides = [1, 1]} : vector<8x128xf32> to vector<8x96xf32>
    %818 = arith.negf %817 : vector<8x96xf32>
    %819 = math.exp %818 : vector<8x96xf32>
    %cst_147 = arith.constant 1.000000e+00 : f32
    %820 = vector.broadcast %cst_147 : f32 to vector<8x96xf32>
    %821 = arith.addf %820, %819 : vector<8x96xf32>
    %822 = arith.divf %820, %821 : vector<8x96xf32>
    %823 = vector.extract_strided_slice %822 {offsets = [0, 0], sizes = [8, 32], strides = [1, 1]} : vector<8x96xf32> to vector<8x32xf32>
    %824 = vector.extract_strided_slice %822 {offsets = [0, 32], sizes = [8, 32], strides = [1, 1]} : vector<8x96xf32> to vector<8x32xf32>
    %825 = vector.extract_strided_slice %822 {offsets = [0, 64], sizes = [8, 32], strides = [1, 1]} : vector<8x96xf32> to vector<8x32xf32>
    %826 = vector.extract_strided_slice %816 {offsets = [0, 96], sizes = [8, 32], strides = [1, 1]} : vector<8x128xf32> to vector<8x32xf32>
    %827 = math.tanh %826 : vector<8x32xf32>
    %828 = arith.mulf %824, %767 : vector<8x32xf32>
    %829 = arith.mulf %823, %827 : vector<8x32xf32>
    %830 = arith.addf %828, %829 : vector<8x32xf32>
    %831 = math.tanh %830 : vector<8x32xf32>
    %832 = arith.mulf %825, %831 : vector<8x32xf32>
    %cst_148 = arith.constant dense<0.000000e+00> : vector<8x128xf32>
    %833 = tpu.matmul %832, %15, %cst_148 {dimension_numbers = #tpu.dot_dimension_numbers<[1], [0], [0], [1], [0, 0, 1, 1], [], []>} : vector<8x32xf32>, vector<32x128xf32>, vector<8x128xf32> -> vector<8x128xf32>
    %834 = vector.broadcast %16 : vector<1x128xf32> to vector<8x128xf32>
    %835 = arith.addf %833, %834 : vector<8x128xf32>
    %c0_149 = arith.constant 0 : index
    %c256_150 = arith.constant 256 : index
    %836 = vector.load %arg2[%c0_149, %c256_150] : memref<8x1024xf32, #tpu.memory_space<vmem>>, vector<8x128xf32>
    tpu.vector_store %arg2[%c0_149, %c256_150], %835 {strides = array<i32>} : memref<8x1024xf32, #tpu.memory_space<vmem>>, vector<8x128xf32>,
    %cst_151 = arith.constant 0.000000e+00 : f32
    %837 = vector.broadcast %cst_151 : f32 to vector<8x8xf32>
    %c0_i32_152 = arith.constant 0 : i32
    %838 = vector.broadcast %c0_i32_152 : i32 to vector<8x1xi32>
    %839 = arith.cmpi eq, %21, %838 : vector<8x1xi32>
    %840 = vector.extract_strided_slice %643 {offsets = [1, 0], sizes = [1, 8], strides = [1, 1]} : vector<8x8xf32> to vector<1x8xf32>
    %841 = vector.shape_cast %839 : vector<8x1xi1> to vector<8x1xi1>
    %842 = vector.broadcast %841 : vector<8x1xi1> to vector<8x8xi1>
    %843 = vector.shape_cast %840 : vector<1x8xf32> to vector<1x8xf32>
    %844 = vector.broadcast %843 : vector<1x8xf32> to vector<8x8xf32>
    %845 = arith.select %842, %844, %837 : vector<8x8xi1>, vector<8x8xf32>
    %c1_i32_153 = arith.constant 1 : i32
    %846 = vector.broadcast %c1_i32_153 : i32 to vector<8x1xi32>
    %847 = arith.cmpi eq, %21, %846 : vector<8x1xi32>
    %848 = vector.extract_strided_slice %643 {offsets = [1, 0], sizes = [1, 8], strides = [1, 1]} : vector<8x8xf32> to vector<1x8xf32>
    %849 = vector.shape_cast %847 : vector<8x1xi1> to vector<8x1xi1>
    %850 = vector.broadcast %849 : vector<8x1xi1> to vector<8x8xi1>
    %851 = vector.shape_cast %848 : vector<1x8xf32> to vector<1x8xf32>
    %852 = vector.broadcast %851 : vector<1x8xf32> to vector<8x8xf32>
    %853 = arith.select %850, %852, %845 : vector<8x8xi1>, vector<8x8xf32>
    %cst_154 = arith.constant dense<0.000000e+00> : vector<8x64xf32>
    %854 = tpu.matmul %853, %9, %cst_154 {dimension_numbers = #tpu.dot_dimension_numbers<[1], [0], [0], [1], [0, 0, 1, 1], [], []>} : vector<8x8xf32>, vector<8x64xf32>, vector<8x64xf32> -> vector<8x64xf32>
    %cst_155 = arith.constant dense<0.000000e+00> : vector<8x64xf32>
    %855 = tpu.matmul %811, %10, %cst_155 {dimension_numbers = #tpu.dot_dimension_numbers<[1], [0], [0], [1], [0, 0, 1, 1], [], []>} : vector<8x16xf32>, vector<16x64xf32>, vector<8x64xf32> -> vector<8x64xf32>
    %856 = arith.addf %854, %855 : vector<8x64xf32>
    %857 = vector.broadcast %11 : vector<1x64xf32> to vector<8x64xf32>
    %858 = arith.addf %856, %857 : vector<8x64xf32>
    %859 = vector.extract_strided_slice %858 {offsets = [0, 0], sizes = [8, 48], strides = [1, 1]} : vector<8x64xf32> to vector<8x48xf32>
    %860 = arith.negf %859 : vector<8x48xf32>
    %861 = math.exp %860 : vector<8x48xf32>
    %cst_156 = arith.constant 1.000000e+00 : f32
    %862 = vector.broadcast %cst_156 : f32 to vector<8x48xf32>
    %863 = arith.addf %862, %861 : vector<8x48xf32>
    %864 = arith.divf %862, %863 : vector<8x48xf32>
    %865 = vector.extract_strided_slice %864 {offsets = [0, 0], sizes = [8, 16], strides = [1, 1]} : vector<8x48xf32> to vector<8x16xf32>
    %866 = vector.extract_strided_slice %864 {offsets = [0, 16], sizes = [8, 16], strides = [1, 1]} : vector<8x48xf32> to vector<8x16xf32>
    %867 = vector.extract_strided_slice %864 {offsets = [0, 32], sizes = [8, 16], strides = [1, 1]} : vector<8x48xf32> to vector<8x16xf32>
    %868 = vector.extract_strided_slice %858 {offsets = [0, 48], sizes = [8, 16], strides = [1, 1]} : vector<8x64xf32> to vector<8x16xf32>
    %869 = math.tanh %868 : vector<8x16xf32>
    %870 = arith.mulf %866, %809 : vector<8x16xf32>
    %871 = arith.mulf %865, %869 : vector<8x16xf32>
    %872 = arith.addf %870, %871 : vector<8x16xf32>
    %873 = math.tanh %872 : vector<8x16xf32>
    %874 = arith.mulf %867, %873 : vector<8x16xf32>
    %cst_157 = arith.constant dense<0.000000e+00> : vector<8x128xf32>
    %875 = tpu.matmul %874, %12, %cst_157 {dimension_numbers = #tpu.dot_dimension_numbers<[1], [0], [0], [1], [0, 0, 1, 1], [], []>} : vector<8x16xf32>, vector<16x128xf32>, vector<8x128xf32> -> vector<8x128xf32>
    %cst_158 = arith.constant dense<0.000000e+00> : vector<8x128xf32>
    %876 = tpu.matmul %832, %13, %cst_158 {dimension_numbers = #tpu.dot_dimension_numbers<[1], [0], [0], [1], [0, 0, 1, 1], [], []>} : vector<8x32xf32>, vector<32x128xf32>, vector<8x128xf32> -> vector<8x128xf32>
    %877 = arith.addf %875, %876 : vector<8x128xf32>
    %878 = vector.broadcast %14 : vector<1x128xf32> to vector<8x128xf32>
    %879 = arith.addf %877, %878 : vector<8x128xf32>
    %880 = vector.extract_strided_slice %879 {offsets = [0, 0], sizes = [8, 96], strides = [1, 1]} : vector<8x128xf32> to vector<8x96xf32>
    %881 = arith.negf %880 : vector<8x96xf32>
    %882 = math.exp %881 : vector<8x96xf32>
    %cst_159 = arith.constant 1.000000e+00 : f32
    %883 = vector.broadcast %cst_159 : f32 to vector<8x96xf32>
    %884 = arith.addf %883, %882 : vector<8x96xf32>
    %885 = arith.divf %883, %884 : vector<8x96xf32>
    %886 = vector.extract_strided_slice %885 {offsets = [0, 0], sizes = [8, 32], strides = [1, 1]} : vector<8x96xf32> to vector<8x32xf32>
    %887 = vector.extract_strided_slice %885 {offsets = [0, 32], sizes = [8, 32], strides = [1, 1]} : vector<8x96xf32> to vector<8x32xf32>
    %888 = vector.extract_strided_slice %885 {offsets = [0, 64], sizes = [8, 32], strides = [1, 1]} : vector<8x96xf32> to vector<8x32xf32>
    %889 = vector.extract_strided_slice %879 {offsets = [0, 96], sizes = [8, 32], strides = [1, 1]} : vector<8x128xf32> to vector<8x32xf32>
    %890 = math.tanh %889 : vector<8x32xf32>
    %891 = arith.mulf %887, %830 : vector<8x32xf32>
    %892 = arith.mulf %886, %890 : vector<8x32xf32>
    %893 = arith.addf %891, %892 : vector<8x32xf32>
    %894 = math.tanh %893 : vector<8x32xf32>
    %895 = arith.mulf %888, %894 : vector<8x32xf32>
    %cst_160 = arith.constant dense<0.000000e+00> : vector<8x128xf32>
    %896 = tpu.matmul %895, %15, %cst_160 {dimension_numbers = #tpu.dot_dimension_numbers<[1], [0], [0], [1], [0, 0, 1, 1], [], []>} : vector<8x32xf32>, vector<32x128xf32>, vector<8x128xf32> -> vector<8x128xf32>
    %897 = vector.broadcast %16 : vector<1x128xf32> to vector<8x128xf32>
    %898 = arith.addf %896, %897 : vector<8x128xf32>
    %c0_161 = arith.constant 0 : index
    %c384 = arith.constant 384 : index
    %899 = vector.load %arg2[%c0_161, %c384] : memref<8x1024xf32, #tpu.memory_space<vmem>>, vector<8x128xf32>
    tpu.vector_store %arg2[%c0_161, %c384], %898 {strides = array<i32>} : memref<8x1024xf32, #tpu.memory_space<vmem>>, vector<8x128xf32>,
    %cst_162 = arith.constant 0.000000e+00 : f32
    %900 = vector.broadcast %cst_162 : f32 to vector<8x8xf32>
    %c0_i32_163 = arith.constant 0 : i32
    %901 = vector.broadcast %c0_i32_163 : i32 to vector<8x1xi32>
    %902 = arith.cmpi eq, %21, %901 : vector<8x1xi32>
    %903 = vector.extract_strided_slice %643 {offsets = [0, 0], sizes = [1, 8], strides = [1, 1]} : vector<8x8xf32> to vector<1x8xf32>
    %904 = vector.shape_cast %902 : vector<8x1xi1> to vector<8x1xi1>
    %905 = vector.broadcast %904 : vector<8x1xi1> to vector<8x8xi1>
    %906 = vector.shape_cast %903 : vector<1x8xf32> to vector<1x8xf32>
    %907 = vector.broadcast %906 : vector<1x8xf32> to vector<8x8xf32>
    %908 = arith.select %905, %907, %900 : vector<8x8xi1>, vector<8x8xf32>
    %c1_i32_164 = arith.constant 1 : i32
    %909 = vector.broadcast %c1_i32_164 : i32 to vector<8x1xi32>
    %910 = arith.cmpi eq, %21, %909 : vector<8x1xi32>
    %911 = vector.extract_strided_slice %643 {offsets = [0, 0], sizes = [1, 8], strides = [1, 1]} : vector<8x8xf32> to vector<1x8xf32>
    %912 = vector.shape_cast %910 : vector<8x1xi1> to vector<8x1xi1>
    %913 = vector.broadcast %912 : vector<8x1xi1> to vector<8x8xi1>
    %914 = vector.shape_cast %911 : vector<1x8xf32> to vector<1x8xf32>
    %915 = vector.broadcast %914 : vector<1x8xf32> to vector<8x8xf32>
    %916 = arith.select %913, %915, %908 : vector<8x8xi1>, vector<8x8xf32>
    %cst_165 = arith.constant dense<0.000000e+00> : vector<8x64xf32>
    %917 = tpu.matmul %916, %9, %cst_165 {dimension_numbers = #tpu.dot_dimension_numbers<[1], [0], [0], [1], [0, 0, 1, 1], [], []>} : vector<8x8xf32>, vector<8x64xf32>, vector<8x64xf32> -> vector<8x64xf32>
    %cst_166 = arith.constant dense<0.000000e+00> : vector<8x64xf32>
    %918 = tpu.matmul %874, %10, %cst_166 {dimension_numbers = #tpu.dot_dimension_numbers<[1], [0], [0], [1], [0, 0, 1, 1], [], []>} : vector<8x16xf32>, vector<16x64xf32>, vector<8x64xf32> -> vector<8x64xf32>
    %919 = arith.addf %917, %918 : vector<8x64xf32>
    %920 = vector.broadcast %11 : vector<1x64xf32> to vector<8x64xf32>
    %921 = arith.addf %919, %920 : vector<8x64xf32>
    %922 = vector.extract_strided_slice %921 {offsets = [0, 0], sizes = [8, 48], strides = [1, 1]} : vector<8x64xf32> to vector<8x48xf32>
    %923 = arith.negf %922 : vector<8x48xf32>
    %924 = math.exp %923 : vector<8x48xf32>
    %cst_167 = arith.constant 1.000000e+00 : f32
    %925 = vector.broadcast %cst_167 : f32 to vector<8x48xf32>
    %926 = arith.addf %925, %924 : vector<8x48xf32>
    %927 = arith.divf %925, %926 : vector<8x48xf32>
    %928 = vector.extract_strided_slice %927 {offsets = [0, 0], sizes = [8, 16], strides = [1, 1]} : vector<8x48xf32> to vector<8x16xf32>
    %929 = vector.extract_strided_slice %927 {offsets = [0, 16], sizes = [8, 16], strides = [1, 1]} : vector<8x48xf32> to vector<8x16xf32>
    %930 = vector.extract_strided_slice %927 {offsets = [0, 32], sizes = [8, 16], strides = [1, 1]} : vector<8x48xf32> to vector<8x16xf32>
    %931 = vector.extract_strided_slice %921 {offsets = [0, 48], sizes = [8, 16], strides = [1, 1]} : vector<8x64xf32> to vector<8x16xf32>
    %932 = math.tanh %931 : vector<8x16xf32>
    %933 = arith.mulf %929, %872 : vector<8x16xf32>
    %934 = arith.mulf %928, %932 : vector<8x16xf32>
    %935 = arith.addf %933, %934 : vector<8x16xf32>
    %936 = math.tanh %935 : vector<8x16xf32>
    %937 = arith.mulf %930, %936 : vector<8x16xf32>
    %cst_168 = arith.constant dense<0.000000e+00> : vector<8x128xf32>
    %938 = tpu.matmul %937, %12, %cst_168 {dimension_numbers = #tpu.dot_dimension_numbers<[1], [0], [0], [1], [0, 0, 1, 1], [], []>} : vector<8x16xf32>, vector<16x128xf32>, vector<8x128xf32> -> vector<8x128xf32>
    %cst_169 = arith.constant dense<0.000000e+00> : vector<8x128xf32>
    %939 = tpu.matmul %895, %13, %cst_169 {dimension_numbers = #tpu.dot_dimension_numbers<[1], [0], [0], [1], [0, 0, 1, 1], [], []>} : vector<8x32xf32>, vector<32x128xf32>, vector<8x128xf32> -> vector<8x128xf32>
    %940 = arith.addf %938, %939 : vector<8x128xf32>
    %941 = vector.broadcast %14 : vector<1x128xf32> to vector<8x128xf32>
    %942 = arith.addf %940, %941 : vector<8x128xf32>
    %943 = vector.extract_strided_slice %942 {offsets = [0, 0], sizes = [8, 96], strides = [1, 1]} : vector<8x128xf32> to vector<8x96xf32>
    %944 = arith.negf %943 : vector<8x96xf32>
    %945 = math.exp %944 : vector<8x96xf32>
    %cst_170 = arith.constant 1.000000e+00 : f32
    %946 = vector.broadcast %cst_170 : f32 to vector<8x96xf32>
    %947 = arith.addf %946, %945 : vector<8x96xf32>
    %948 = arith.divf %946, %947 : vector<8x96xf32>
    %949 = vector.extract_strided_slice %948 {offsets = [0, 0], sizes = [8, 32], strides = [1, 1]} : vector<8x96xf32> to vector<8x32xf32>
    %950 = vector.extract_strided_slice %948 {offsets = [0, 32], sizes = [8, 32], strides = [1, 1]} : vector<8x96xf32> to vector<8x32xf32>
    %951 = vector.extract_strided_slice %948 {offsets = [0, 64], sizes = [8, 32], strides = [1, 1]} : vector<8x96xf32> to vector<8x32xf32>
    %952 = vector.extract_strided_slice %942 {offsets = [0, 96], sizes = [8, 32], strides = [1, 1]} : vector<8x128xf32> to vector<8x32xf32>
    %953 = math.tanh %952 : vector<8x32xf32>
    %954 = arith.mulf %950, %893 : vector<8x32xf32>
    %955 = arith.mulf %949, %953 : vector<8x32xf32>
    %956 = arith.addf %954, %955 : vector<8x32xf32>
    %957 = math.tanh %956 : vector<8x32xf32>
    %958 = arith.mulf %951, %957 : vector<8x32xf32>
    %cst_171 = arith.constant dense<0.000000e+00> : vector<8x128xf32>
    %959 = tpu.matmul %958, %15, %cst_171 {dimension_numbers = #tpu.dot_dimension_numbers<[1], [0], [0], [1], [0, 0, 1, 1], [], []>} : vector<8x32xf32>, vector<32x128xf32>, vector<8x128xf32> -> vector<8x128xf32>
    %960 = vector.broadcast %16 : vector<1x128xf32> to vector<8x128xf32>
    %961 = arith.addf %959, %960 : vector<8x128xf32>
    %c0_172 = arith.constant 0 : index
    %c512 = arith.constant 512 : index
    %962 = vector.load %arg2[%c0_172, %c512] : memref<8x1024xf32, #tpu.memory_space<vmem>>, vector<8x128xf32>
    tpu.vector_store %arg2[%c0_172, %c512], %961 {strides = array<i32>} : memref<8x1024xf32, #tpu.memory_space<vmem>>, vector<8x128xf32>,
    %cst_173 = arith.constant 0.000000e+00 : f32
    %963 = vector.broadcast %cst_173 : f32 to vector<8x8xf32>
    %c0_i32_174 = arith.constant 0 : i32
    %964 = vector.broadcast %c0_i32_174 : i32 to vector<8x1xi32>
    %965 = arith.cmpi eq, %21, %964 : vector<8x1xi32>
    %966 = vector.extract_strided_slice %643 {offsets = [1, 0], sizes = [1, 8], strides = [1, 1]} : vector<8x8xf32> to vector<1x8xf32>
    %967 = vector.shape_cast %965 : vector<8x1xi1> to vector<8x1xi1>
    %968 = vector.broadcast %967 : vector<8x1xi1> to vector<8x8xi1>
    %969 = vector.shape_cast %966 : vector<1x8xf32> to vector<1x8xf32>
    %970 = vector.broadcast %969 : vector<1x8xf32> to vector<8x8xf32>
    %971 = arith.select %968, %970, %963 : vector<8x8xi1>, vector<8x8xf32>
    %c1_i32_175 = arith.constant 1 : i32
    %972 = vector.broadcast %c1_i32_175 : i32 to vector<8x1xi32>
    %973 = arith.cmpi eq, %21, %972 : vector<8x1xi32>
    %974 = vector.extract_strided_slice %643 {offsets = [1, 0], sizes = [1, 8], strides = [1, 1]} : vector<8x8xf32> to vector<1x8xf32>
    %975 = vector.shape_cast %973 : vector<8x1xi1> to vector<8x1xi1>
    %976 = vector.broadcast %975 : vector<8x1xi1> to vector<8x8xi1>
    %977 = vector.shape_cast %974 : vector<1x8xf32> to vector<1x8xf32>
    %978 = vector.broadcast %977 : vector<1x8xf32> to vector<8x8xf32>
    %979 = arith.select %976, %978, %971 : vector<8x8xi1>, vector<8x8xf32>
    %cst_176 = arith.constant dense<0.000000e+00> : vector<8x64xf32>
    %980 = tpu.matmul %979, %9, %cst_176 {dimension_numbers = #tpu.dot_dimension_numbers<[1], [0], [0], [1], [0, 0, 1, 1], [], []>} : vector<8x8xf32>, vector<8x64xf32>, vector<8x64xf32> -> vector<8x64xf32>
    %cst_177 = arith.constant dense<0.000000e+00> : vector<8x64xf32>
    %981 = tpu.matmul %937, %10, %cst_177 {dimension_numbers = #tpu.dot_dimension_numbers<[1], [0], [0], [1], [0, 0, 1, 1], [], []>} : vector<8x16xf32>, vector<16x64xf32>, vector<8x64xf32> -> vector<8x64xf32>
    %982 = arith.addf %980, %981 : vector<8x64xf32>
    %983 = vector.broadcast %11 : vector<1x64xf32> to vector<8x64xf32>
    %984 = arith.addf %982, %983 : vector<8x64xf32>
    %985 = vector.extract_strided_slice %984 {offsets = [0, 0], sizes = [8, 48], strides = [1, 1]} : vector<8x64xf32> to vector<8x48xf32>
    %986 = arith.negf %985 : vector<8x48xf32>
    %987 = math.exp %986 : vector<8x48xf32>
    %cst_178 = arith.constant 1.000000e+00 : f32
    %988 = vector.broadcast %cst_178 : f32 to vector<8x48xf32>
    %989 = arith.addf %988, %987 : vector<8x48xf32>
    %990 = arith.divf %988, %989 : vector<8x48xf32>
    %991 = vector.extract_strided_slice %990 {offsets = [0, 0], sizes = [8, 16], strides = [1, 1]} : vector<8x48xf32> to vector<8x16xf32>
    %992 = vector.extract_strided_slice %990 {offsets = [0, 16], sizes = [8, 16], strides = [1, 1]} : vector<8x48xf32> to vector<8x16xf32>
    %993 = vector.extract_strided_slice %990 {offsets = [0, 32], sizes = [8, 16], strides = [1, 1]} : vector<8x48xf32> to vector<8x16xf32>
    %994 = vector.extract_strided_slice %984 {offsets = [0, 48], sizes = [8, 16], strides = [1, 1]} : vector<8x64xf32> to vector<8x16xf32>
    %995 = math.tanh %994 : vector<8x16xf32>
    %996 = arith.mulf %992, %935 : vector<8x16xf32>
    %997 = arith.mulf %991, %995 : vector<8x16xf32>
    %998 = arith.addf %996, %997 : vector<8x16xf32>
    %999 = math.tanh %998 : vector<8x16xf32>
    %1000 = arith.mulf %993, %999 : vector<8x16xf32>
    %cst_179 = arith.constant dense<0.000000e+00> : vector<8x128xf32>
    %1001 = tpu.matmul %1000, %12, %cst_179 {dimension_numbers = #tpu.dot_dimension_numbers<[1], [0], [0], [1], [0, 0, 1, 1], [], []>} : vector<8x16xf32>, vector<16x128xf32>, vector<8x128xf32> -> vector<8x128xf32>
    %cst_180 = arith.constant dense<0.000000e+00> : vector<8x128xf32>
    %1002 = tpu.matmul %958, %13, %cst_180 {dimension_numbers = #tpu.dot_dimension_numbers<[1], [0], [0], [1], [0, 0, 1, 1], [], []>} : vector<8x32xf32>, vector<32x128xf32>, vector<8x128xf32> -> vector<8x128xf32>
    %1003 = arith.addf %1001, %1002 : vector<8x128xf32>
    %1004 = vector.broadcast %14 : vector<1x128xf32> to vector<8x128xf32>
    %1005 = arith.addf %1003, %1004 : vector<8x128xf32>
    %1006 = vector.extract_strided_slice %1005 {offsets = [0, 0], sizes = [8, 96], strides = [1, 1]} : vector<8x128xf32> to vector<8x96xf32>
    %1007 = arith.negf %1006 : vector<8x96xf32>
    %1008 = math.exp %1007 : vector<8x96xf32>
    %cst_181 = arith.constant 1.000000e+00 : f32
    %1009 = vector.broadcast %cst_181 : f32 to vector<8x96xf32>
    %1010 = arith.addf %1009, %1008 : vector<8x96xf32>
    %1011 = arith.divf %1009, %1010 : vector<8x96xf32>
    %1012 = vector.extract_strided_slice %1011 {offsets = [0, 0], sizes = [8, 32], strides = [1, 1]} : vector<8x96xf32> to vector<8x32xf32>
    %1013 = vector.extract_strided_slice %1011 {offsets = [0, 32], sizes = [8, 32], strides = [1, 1]} : vector<8x96xf32> to vector<8x32xf32>
    %1014 = vector.extract_strided_slice %1011 {offsets = [0, 64], sizes = [8, 32], strides = [1, 1]} : vector<8x96xf32> to vector<8x32xf32>
    %1015 = vector.extract_strided_slice %1005 {offsets = [0, 96], sizes = [8, 32], strides = [1, 1]} : vector<8x128xf32> to vector<8x32xf32>
    %1016 = math.tanh %1015 : vector<8x32xf32>
    %1017 = arith.mulf %1013, %956 : vector<8x32xf32>
    %1018 = arith.mulf %1012, %1016 : vector<8x32xf32>
    %1019 = arith.addf %1017, %1018 : vector<8x32xf32>
    %1020 = math.tanh %1019 : vector<8x32xf32>
    %1021 = arith.mulf %1014, %1020 : vector<8x32xf32>
    %cst_182 = arith.constant dense<0.000000e+00> : vector<8x128xf32>
    %1022 = tpu.matmul %1021, %15, %cst_182 {dimension_numbers = #tpu.dot_dimension_numbers<[1], [0], [0], [1], [0, 0, 1, 1], [], []>} : vector<8x32xf32>, vector<32x128xf32>, vector<8x128xf32> -> vector<8x128xf32>
    %1023 = vector.broadcast %16 : vector<1x128xf32> to vector<8x128xf32>
    %1024 = arith.addf %1022, %1023 : vector<8x128xf32>
    %c0_183 = arith.constant 0 : index
    %c640 = arith.constant 640 : index
    %1025 = vector.load %arg2[%c0_183, %c640] : memref<8x1024xf32, #tpu.memory_space<vmem>>, vector<8x128xf32>
    tpu.vector_store %arg2[%c0_183, %c640], %1024 {strides = array<i32>} : memref<8x1024xf32, #tpu.memory_space<vmem>>, vector<8x128xf32>,
    %cst_184 = arith.constant 0.000000e+00 : f32
    %1026 = vector.broadcast %cst_184 : f32 to vector<8x8xf32>
    %c0_i32_185 = arith.constant 0 : i32
    %1027 = vector.broadcast %c0_i32_185 : i32 to vector<8x1xi32>
    %1028 = arith.cmpi eq, %21, %1027 : vector<8x1xi32>
    %1029 = vector.extract_strided_slice %643 {offsets = [0, 0], sizes = [1, 8], strides = [1, 1]} : vector<8x8xf32> to vector<1x8xf32>
    %1030 = vector.shape_cast %1028 : vector<8x1xi1> to vector<8x1xi1>
    %1031 = vector.broadcast %1030 : vector<8x1xi1> to vector<8x8xi1>
    %1032 = vector.shape_cast %1029 : vector<1x8xf32> to vector<1x8xf32>
    %1033 = vector.broadcast %1032 : vector<1x8xf32> to vector<8x8xf32>
    %1034 = arith.select %1031, %1033, %1026 : vector<8x8xi1>, vector<8x8xf32>
    %c1_i32_186 = arith.constant 1 : i32
    %1035 = vector.broadcast %c1_i32_186 : i32 to vector<8x1xi32>
    %1036 = arith.cmpi eq, %21, %1035 : vector<8x1xi32>
    %1037 = vector.extract_strided_slice %643 {offsets = [0, 0], sizes = [1, 8], strides = [1, 1]} : vector<8x8xf32> to vector<1x8xf32>
    %1038 = vector.shape_cast %1036 : vector<8x1xi1> to vector<8x1xi1>
    %1039 = vector.broadcast %1038 : vector<8x1xi1> to vector<8x8xi1>
    %1040 = vector.shape_cast %1037 : vector<1x8xf32> to vector<1x8xf32>
    %1041 = vector.broadcast %1040 : vector<1x8xf32> to vector<8x8xf32>
    %1042 = arith.select %1039, %1041, %1034 : vector<8x8xi1>, vector<8x8xf32>
    %cst_187 = arith.constant dense<0.000000e+00> : vector<8x64xf32>
    %1043 = tpu.matmul %1042, %9, %cst_187 {dimension_numbers = #tpu.dot_dimension_numbers<[1], [0], [0], [1], [0, 0, 1, 1], [], []>} : vector<8x8xf32>, vector<8x64xf32>, vector<8x64xf32> -> vector<8x64xf32>
    %cst_188 = arith.constant dense<0.000000e+00> : vector<8x64xf32>
    %1044 = tpu.matmul %1000, %10, %cst_188 {dimension_numbers = #tpu.dot_dimension_numbers<[1], [0], [0], [1], [0, 0, 1, 1], [], []>} : vector<8x16xf32>, vector<16x64xf32>, vector<8x64xf32> -> vector<8x64xf32>
    %1045 = arith.addf %1043, %1044 : vector<8x64xf32>
    %1046 = vector.broadcast %11 : vector<1x64xf32> to vector<8x64xf32>
    %1047 = arith.addf %1045, %1046 : vector<8x64xf32>
    %1048 = vector.extract_strided_slice %1047 {offsets = [0, 0], sizes = [8, 48], strides = [1, 1]} : vector<8x64xf32> to vector<8x48xf32>
    %1049 = arith.negf %1048 : vector<8x48xf32>
    %1050 = math.exp %1049 : vector<8x48xf32>
    %cst_189 = arith.constant 1.000000e+00 : f32
    %1051 = vector.broadcast %cst_189 : f32 to vector<8x48xf32>
    %1052 = arith.addf %1051, %1050 : vector<8x48xf32>
    %1053 = arith.divf %1051, %1052 : vector<8x48xf32>
    %1054 = vector.extract_strided_slice %1053 {offsets = [0, 0], sizes = [8, 16], strides = [1, 1]} : vector<8x48xf32> to vector<8x16xf32>
    %1055 = vector.extract_strided_slice %1053 {offsets = [0, 16], sizes = [8, 16], strides = [1, 1]} : vector<8x48xf32> to vector<8x16xf32>
    %1056 = vector.extract_strided_slice %1053 {offsets = [0, 32], sizes = [8, 16], strides = [1, 1]} : vector<8x48xf32> to vector<8x16xf32>
    %1057 = vector.extract_strided_slice %1047 {offsets = [0, 48], sizes = [8, 16], strides = [1, 1]} : vector<8x64xf32> to vector<8x16xf32>
    %1058 = math.tanh %1057 : vector<8x16xf32>
    %1059 = arith.mulf %1055, %998 : vector<8x16xf32>
    %1060 = arith.mulf %1054, %1058 : vector<8x16xf32>
    %1061 = arith.addf %1059, %1060 : vector<8x16xf32>
    %1062 = math.tanh %1061 : vector<8x16xf32>
    %1063 = arith.mulf %1056, %1062 : vector<8x16xf32>
    %cst_190 = arith.constant dense<0.000000e+00> : vector<8x128xf32>
    %1064 = tpu.matmul %1063, %12, %cst_190 {dimension_numbers = #tpu.dot_dimension_numbers<[1], [0], [0], [1], [0, 0, 1, 1], [], []>} : vector<8x16xf32>, vector<16x128xf32>, vector<8x128xf32> -> vector<8x128xf32>
    %cst_191 = arith.constant dense<0.000000e+00> : vector<8x128xf32>
    %1065 = tpu.matmul %1021, %13, %cst_191 {dimension_numbers = #tpu.dot_dimension_numbers<[1], [0], [0], [1], [0, 0, 1, 1], [], []>} : vector<8x32xf32>, vector<32x128xf32>, vector<8x128xf32> -> vector<8x128xf32>
    %1066 = arith.addf %1064, %1065 : vector<8x128xf32>
    %1067 = vector.broadcast %14 : vector<1x128xf32> to vector<8x128xf32>
    %1068 = arith.addf %1066, %1067 : vector<8x128xf32>
    %1069 = vector.extract_strided_slice %1068 {offsets = [0, 0], sizes = [8, 96], strides = [1, 1]} : vector<8x128xf32> to vector<8x96xf32>
    %1070 = arith.negf %1069 : vector<8x96xf32>
    %1071 = math.exp %1070 : vector<8x96xf32>
    %cst_192 = arith.constant 1.000000e+00 : f32
    %1072 = vector.broadcast %cst_192 : f32 to vector<8x96xf32>
    %1073 = arith.addf %1072, %1071 : vector<8x96xf32>
    %1074 = arith.divf %1072, %1073 : vector<8x96xf32>
    %1075 = vector.extract_strided_slice %1074 {offsets = [0, 0], sizes = [8, 32], strides = [1, 1]} : vector<8x96xf32> to vector<8x32xf32>
    %1076 = vector.extract_strided_slice %1074 {offsets = [0, 32], sizes = [8, 32], strides = [1, 1]} : vector<8x96xf32> to vector<8x32xf32>
    %1077 = vector.extract_strided_slice %1074 {offsets = [0, 64], sizes = [8, 32], strides = [1, 1]} : vector<8x96xf32> to vector<8x32xf32>
    %1078 = vector.extract_strided_slice %1068 {offsets = [0, 96], sizes = [8, 32], strides = [1, 1]} : vector<8x128xf32> to vector<8x32xf32>
    %1079 = math.tanh %1078 : vector<8x32xf32>
    %1080 = arith.mulf %1076, %1019 : vector<8x32xf32>
    %1081 = arith.mulf %1075, %1079 : vector<8x32xf32>
    %1082 = arith.addf %1080, %1081 : vector<8x32xf32>
    %1083 = math.tanh %1082 : vector<8x32xf32>
    %1084 = arith.mulf %1077, %1083 : vector<8x32xf32>
    %cst_193 = arith.constant dense<0.000000e+00> : vector<8x128xf32>
    %1085 = tpu.matmul %1084, %15, %cst_193 {dimension_numbers = #tpu.dot_dimension_numbers<[1], [0], [0], [1], [0, 0, 1, 1], [], []>} : vector<8x32xf32>, vector<32x128xf32>, vector<8x128xf32> -> vector<8x128xf32>
    %1086 = vector.broadcast %16 : vector<1x128xf32> to vector<8x128xf32>
    %1087 = arith.addf %1085, %1086 : vector<8x128xf32>
    %c0_194 = arith.constant 0 : index
    %c768 = arith.constant 768 : index
    %1088 = vector.load %arg2[%c0_194, %c768] : memref<8x1024xf32, #tpu.memory_space<vmem>>, vector<8x128xf32>
    tpu.vector_store %arg2[%c0_194, %c768], %1087 {strides = array<i32>} : memref<8x1024xf32, #tpu.memory_space<vmem>>, vector<8x128xf32>,
    %cst_195 = arith.constant 0.000000e+00 : f32
    %1089 = vector.broadcast %cst_195 : f32 to vector<8x8xf32>
    %c0_i32_196 = arith.constant 0 : i32
    %1090 = vector.broadcast %c0_i32_196 : i32 to vector<8x1xi32>
    %1091 = arith.cmpi eq, %21, %1090 : vector<8x1xi32>
    %1092 = vector.extract_strided_slice %643 {offsets = [1, 0], sizes = [1, 8], strides = [1, 1]} : vector<8x8xf32> to vector<1x8xf32>
    %1093 = vector.shape_cast %1091 : vector<8x1xi1> to vector<8x1xi1>
    %1094 = vector.broadcast %1093 : vector<8x1xi1> to vector<8x8xi1>
    %1095 = vector.shape_cast %1092 : vector<1x8xf32> to vector<1x8xf32>
    %1096 = vector.broadcast %1095 : vector<1x8xf32> to vector<8x8xf32>
    %1097 = arith.select %1094, %1096, %1089 : vector<8x8xi1>, vector<8x8xf32>
    %c1_i32_197 = arith.constant 1 : i32
    %1098 = vector.broadcast %c1_i32_197 : i32 to vector<8x1xi32>
    %1099 = arith.cmpi eq, %21, %1098 : vector<8x1xi32>
    %1100 = vector.extract_strided_slice %643 {offsets = [1, 0], sizes = [1, 8], strides = [1, 1]} : vector<8x8xf32> to vector<1x8xf32>
    %1101 = vector.shape_cast %1099 : vector<8x1xi1> to vector<8x1xi1>
    %1102 = vector.broadcast %1101 : vector<8x1xi1> to vector<8x8xi1>
    %1103 = vector.shape_cast %1100 : vector<1x8xf32> to vector<1x8xf32>
    %1104 = vector.broadcast %1103 : vector<1x8xf32> to vector<8x8xf32>
    %1105 = arith.select %1102, %1104, %1097 : vector<8x8xi1>, vector<8x8xf32>
    %cst_198 = arith.constant dense<0.000000e+00> : vector<8x64xf32>
    %1106 = tpu.matmul %1105, %9, %cst_198 {dimension_numbers = #tpu.dot_dimension_numbers<[1], [0], [0], [1], [0, 0, 1, 1], [], []>} : vector<8x8xf32>, vector<8x64xf32>, vector<8x64xf32> -> vector<8x64xf32>
    %cst_199 = arith.constant dense<0.000000e+00> : vector<8x64xf32>
    %1107 = tpu.matmul %1063, %10, %cst_199 {dimension_numbers = #tpu.dot_dimension_numbers<[1], [0], [0], [1], [0, 0, 1, 1], [], []>} : vector<8x16xf32>, vector<16x64xf32>, vector<8x64xf32> -> vector<8x64xf32>
    %1108 = arith.addf %1106, %1107 : vector<8x64xf32>
    %1109 = vector.broadcast %11 : vector<1x64xf32> to vector<8x64xf32>
    %1110 = arith.addf %1108, %1109 : vector<8x64xf32>
    %1111 = vector.extract_strided_slice %1110 {offsets = [0, 0], sizes = [8, 48], strides = [1, 1]} : vector<8x64xf32> to vector<8x48xf32>
    %1112 = arith.negf %1111 : vector<8x48xf32>
    %1113 = math.exp %1112 : vector<8x48xf32>
    %cst_200 = arith.constant 1.000000e+00 : f32
    %1114 = vector.broadcast %cst_200 : f32 to vector<8x48xf32>
    %1115 = arith.addf %1114, %1113 : vector<8x48xf32>
    %1116 = arith.divf %1114, %1115 : vector<8x48xf32>
    %1117 = vector.extract_strided_slice %1116 {offsets = [0, 0], sizes = [8, 16], strides = [1, 1]} : vector<8x48xf32> to vector<8x16xf32>
    %1118 = vector.extract_strided_slice %1116 {offsets = [0, 16], sizes = [8, 16], strides = [1, 1]} : vector<8x48xf32> to vector<8x16xf32>
    %1119 = vector.extract_strided_slice %1116 {offsets = [0, 32], sizes = [8, 16], strides = [1, 1]} : vector<8x48xf32> to vector<8x16xf32>
    %1120 = vector.extract_strided_slice %1110 {offsets = [0, 48], sizes = [8, 16], strides = [1, 1]} : vector<8x64xf32> to vector<8x16xf32>
    %1121 = math.tanh %1120 : vector<8x16xf32>
    %1122 = arith.mulf %1118, %1061 : vector<8x16xf32>
    %1123 = arith.mulf %1117, %1121 : vector<8x16xf32>
    %1124 = arith.addf %1122, %1123 : vector<8x16xf32>
    %1125 = math.tanh %1124 : vector<8x16xf32>
    %1126 = arith.mulf %1119, %1125 : vector<8x16xf32>
    %cst_201 = arith.constant dense<0.000000e+00> : vector<8x128xf32>
    %1127 = tpu.matmul %1126, %12, %cst_201 {dimension_numbers = #tpu.dot_dimension_numbers<[1], [0], [0], [1], [0, 0, 1, 1], [], []>} : vector<8x16xf32>, vector<16x128xf32>, vector<8x128xf32> -> vector<8x128xf32>
    %cst_202 = arith.constant dense<0.000000e+00> : vector<8x128xf32>
    %1128 = tpu.matmul %1084, %13, %cst_202 {dimension_numbers = #tpu.dot_dimension_numbers<[1], [0], [0], [1], [0, 0, 1, 1], [], []>} : vector<8x32xf32>, vector<32x128xf32>, vector<8x128xf32> -> vector<8x128xf32>
    %1129 = arith.addf %1127, %1128 : vector<8x128xf32>
    %1130 = vector.broadcast %14 : vector<1x128xf32> to vector<8x128xf32>
    %1131 = arith.addf %1129, %1130 : vector<8x128xf32>
    %1132 = vector.extract_strided_slice %1131 {offsets = [0, 0], sizes = [8, 96], strides = [1, 1]} : vector<8x128xf32> to vector<8x96xf32>
    %1133 = arith.negf %1132 : vector<8x96xf32>
    %1134 = math.exp %1133 : vector<8x96xf32>
    %cst_203 = arith.constant 1.000000e+00 : f32
    %1135 = vector.broadcast %cst_203 : f32 to vector<8x96xf32>
    %1136 = arith.addf %1135, %1134 : vector<8x96xf32>
    %1137 = arith.divf %1135, %1136 : vector<8x96xf32>
    %1138 = vector.extract_strided_slice %1137 {offsets = [0, 0], sizes = [8, 32], strides = [1, 1]} : vector<8x96xf32> to vector<8x32xf32>
    %1139 = vector.extract_strided_slice %1137 {offsets = [0, 32], sizes = [8, 32], strides = [1, 1]} : vector<8x96xf32> to vector<8x32xf32>
    %1140 = vector.extract_strided_slice %1137 {offsets = [0, 64], sizes = [8, 32], strides = [1, 1]} : vector<8x96xf32> to vector<8x32xf32>
    %1141 = vector.extract_strided_slice %1131 {offsets = [0, 96], sizes = [8, 32], strides = [1, 1]} : vector<8x128xf32> to vector<8x32xf32>
    %1142 = math.tanh %1141 : vector<8x32xf32>
    %1143 = arith.mulf %1139, %1082 : vector<8x32xf32>
    %1144 = arith.mulf %1138, %1142 : vector<8x32xf32>
    %1145 = arith.addf %1143, %1144 : vector<8x32xf32>
    %1146 = math.tanh %1145 : vector<8x32xf32>
    %1147 = arith.mulf %1140, %1146 : vector<8x32xf32>
    %cst_204 = arith.constant dense<0.000000e+00> : vector<8x128xf32>
    %1148 = tpu.matmul %1147, %15, %cst_204 {dimension_numbers = #tpu.dot_dimension_numbers<[1], [0], [0], [1], [0, 0, 1, 1], [], []>} : vector<8x32xf32>, vector<32x128xf32>, vector<8x128xf32> -> vector<8x128xf32>
    %1149 = vector.broadcast %16 : vector<1x128xf32> to vector<8x128xf32>
    %1150 = arith.addf %1148, %1149 : vector<8x128xf32>
    %c0_205 = arith.constant 0 : index
    %c896 = arith.constant 896 : index
    %1151 = vector.load %arg2[%c0_205, %c896] : memref<8x1024xf32, #tpu.memory_space<vmem>>, vector<8x128xf32>
    tpu.vector_store %arg2[%c0_205, %c896], %1150 {strides = array<i32>} : memref<8x1024xf32, #tpu.memory_space<vmem>>, vector<8x128xf32>,
    return
  }
}

</mosaic_0001>

<llo_original>
// kernel: lstm_autoencoder.1
$region0: #{lstm_autoencoder.1}
  #allocation0 [shape = 'u32[]', space=smem, size = 0x4, offset = 0x4, fixed_abs, tag = 'smem constant byte address 0x4 - core index']
  #allocation1 [shape = 'u32[72,128]{1,0:T(1,128)}', space=vmem, size = 0x9000, scoped, tag = 'internal scratch']
  %s0 = inlined_call_operand.vmem [shape: f32[16,4], index: 0, kind: input, shape index: {}]
  %s1 = inlined_call_operand.hbm [shape: f32[264,128], index: 1, kind: input, shape index: {}]
  %s2 = inlined_call_operand.vmem [shape: f32[8,1024], index: 2, kind: output, shape index: {}]
  %s3 = sld [smem:[#allocation0]]
  $region22: #{lstm_autoencoder.1} parent=0
    _
  %s5 = ssub.s32 1, %s3
  %s6 = scalar_select 0, %s5, %s3
  $region1: #{lstm_autoencoder.1} parent=0
    #allocation2 [shape = 'u8[135168]{0}', space=vmem, size = 0x21000, scoped, tag = 'input window, operand 1, single buffered']
    #allocation3 [shape = 's32[1]{0}', space=sflag, size = 0x4, scoped, tag = 'scoped memory for lstm_autoencoder.1']
    %7 = vsyncpa [#allocation3], 0
    // Predicated region
    $region2: #{lstm_autoencoder.1} parent=1 // pred_check
      _
    $region3: #{lstm_autoencoder.1} parent=1 // pred_check_branch
      %9 = sbr.rel (0) target = $region5
    $region4: #{lstm_autoencoder.1} parent=1 // pred_region
      _
    $region5: #{lstm_autoencoder.1} parent=1 // pred_fallthru
      _
    // Predicated region
    $region6: #{lstm_autoencoder.1} parent=1 // pred_check
      _
    $region7: #{lstm_autoencoder.1} parent=1 // pred_check_branch
      %11 = sbr.rel (0) target = $region9
    $region8: #{lstm_autoencoder.1} parent=1 // pred_region
      %13 = vsyncadd [#allocation3], 0
      %s14 = sshll.u32 %s1, 4
      %s15 = int_to_ptr.hbm [resolvable:$true] %s14
      %s16 = sshll.u32 [#allocation2], 4
      %s17 = int_to_ptr.vmem [resolvable:$true] %s16
      %22 = dma.hbm_to_vmem [thread:$0]  %s15, 4224, %s17, [#allocation3], 128, 128, 8
    $region9: #{lstm_autoencoder.1} parent=1 // pred_fallthru
      _
    // Predicated region
    $region10: #{lstm_autoencoder.1} parent=1 // pred_check
      _
    $region11: #{lstm_autoencoder.1} parent=1 // pred_check_branch
      %24 = sbr.rel (0) target = $region13
    $region12: #{lstm_autoencoder.1} parent=1 // pred_region
      %26 = dma.done [#allocation3], 4224
    $region13: #{lstm_autoencoder.1} parent=1 // pred_fallthru
      _
    %v27 = vld [vmem:[#allocation2] sm:$0xf]
    %v28 = vld [vmem:[#allocation2 + $0x8] sm:$0xff]
    %v29 = vld [vmem:[#allocation2 + $0x10] sm:$0xff]
    %v30 = vld [vmem:[#allocation2 + $0x18] sm:$0xff]
    %v31 = vld [vmem:[#allocation2 + $0x20] sm:$0xff]
    %v32 = vld [vmem:[#allocation2 + $0x28] sm:$0x1]
    %v33 = vld [vmem:[#allocation2 + $0x30] sm:$0xff]
    %v34 = vld [vmem:[#allocation2 + $0x38] sm:$0xff]
    %v35 = vld [vmem:[#allocation2 + $0x40] sm:$0xff]
    %v36 = vld [vmem:[#allocation2 + $0x48] sm:$0xff]
    %v37 = vld [vmem:[#allocation2 + $0x50] sm:$0xff]
    %v38 = vld [vmem:[#allocation2 + $0x58] sm:$0xff]
    %v39 = vld [vmem:[#allocation2 + $0x60] sm:$0x1]
    %v40 = vld [vmem:[#allocation2 + $0x68] sm:$0xff]
    %v41 = vld [vmem:[#allocation2 + $0x70] sm:$0xff]
    %v42 = vld [vmem:[#allocation2 + $0x78] sm:$0xff]
    %v43 = vld [vmem:[#allocation2 + $0x80] sm:$0x1]
    %v44 = vld [vmem:[#allocation2 + $0x88] sm:$0xff]
    %v45 = vld [vmem:[#allocation2 + $0x90] sm:$0xff]
    %v46 = vld [vmem:[#allocation2 + $0x98] sm:$0xff]
    %v47 = vld [vmem:[#allocation2 + $0xa0] sm:$0x1]
    %v48 = vld [vmem:[#allocation2 + $0xa8] sm:$0xff]
    %v49 = vld [vmem:[#allocation2 + $0xb0] sm:$0xff]
    %v50 = vld [vmem:[#allocation2 + $0xb8] sm:$0xff]
    %v51 = vld [vmem:[#allocation2 + $0xc0] sm:$0xff]
    %v52 = vld [vmem:[#allocation2 + $0xc8] sm:$0xff]
    %v53 = vld [vmem:[#allocation2 + $0xd0] sm:$0xff]
    %v54 = vld [vmem:[#allocation2 + $0xd8] sm:$0x1]
    %v55 = vld [vmem:[#allocation2 + $0xe0] sm:$0xff]
    %v56 = vld [vmem:[#allocation2 + $0xe8] sm:$0xff]
    %v57 = vld [vmem:[#allocation2 + $0xf0] sm:$0xff]
    %v58 = vld [vmem:[#allocation2 + $0xf8] sm:$0xff]
    %v59 = vld [vmem:[#allocation2 + $0x100] sm:$0x1]
    %v60 = vld [vmem:[%s0] sm:$0xff]
    %v61 = vld [vmem:[%s0 + $0x8] sm:$0xff]
    %v62 = vperm.slane %v32, 0
    %vm63 = vcmask 31744
    %v65 = vsel %vm63, %v60, 0
    %v68 = vsel %vm63, %v61, 0
    %vm70 = vcmask 1043456
    %v72 = vsel %vm70, %v27, 0
    %74 = vmatpush.msra.mxu0 0.0
    %75 = vmatpush.msra.mxu0 0.0
    %76 = vmatpush.msra.mxu0 0.0
    %77 = vmatpush.msra.mxu0 0.0
    %78 = vmatpush.msra.mxu0 0.0
    %79 = vmatpush.msra.mxu0 0.0
    %80 = vmatpush.msra.mxu0 0.0
    %81 = vmatpush.msra.mxu0 0.0
    %82 = vmatpush.msra.mxu0 0.0
    %83 = vmatpush.msra.mxu0 0.0
    %84 = vmatpush.msra.mxu0 0.0
    %85 = vmatpush.msra.mxu0 0.0
    %86 = vmatpush.msra.mxu0 0.0
    %87 = vmatpush.msra.mxu0 0.0
    %88 = vmatpush.msra.mxu0 0.0
    %89 = vmatpush.msra.mxu0 %v72
    %90 = vmatmul.f32.gmra.mxu0 %v65
    %v91 = vpop.f32.mrf.mxu0
    %v92 = vadd.f32 %v62, %v91
    %93 = vmatmul.f32.gmra.mxu0 %v68
    %v94 = vpop.f32.mrf.mxu0
    %v95 = vadd.f32 %v62, %v94
    %96 = vdwg.mxu0
    %v97 = vlaneseq
    %v98 = vshrl.u32 %v97, 7
    %vm99 = vcmp.eq.s32.totalorder %v98, 0
    %v100 = vsel %vm99, 1, 0
    %vm101 = vcmp.eq.s32.totalorder %v100, 1
    %v102 = vperm.slane %v92, 0
    %v103 = vsel %vm101, %v102, 0.0
    %vm104 = vcmp.eq.s32.totalorder %v98, 1
    %v105 = vsel %vm104, 1, 0
    %vm106 = vcmp.eq.s32.totalorder %v105, 1
    %v107 = vperm.slane %v95, 0
    %v108 = vsel %vm106, %v107, %v103
    %vm109 = vcmask 261120
    %v111 = vsel %vm109, 0.0, 0
    %113 = vmatpush.msra.mxu0 0.0
    %114 = vmatpush.msra.mxu0 0.0
    %115 = vmatpush.msra.mxu0 0.0
    %116 = vmatpush.msra.mxu0 0.0
    %117 = vmatpush.msra.mxu0 0.0
    %118 = vmatpush.msra.mxu0 0.0
    %119 = vmatpush.msra.mxu0 0.0
    %120 = vmatpush.msra.mxu0 0.0
    %121 = vmatpush.msra.mxu0 0.0
    %122 = vmatpush.msra.mxu0 0.0
    %123 = vmatpush.msra.mxu0 0.0
    %124 = vmatpush.msra.mxu0 0.0
    %125 = vmatpush.msra.mxu0 %v31
    %126 = vmatpush.msra.mxu0 %v30
    %127 = vmatpush.msra.mxu0 %v29
    %128 = vmatpush.msra.mxu0 %v28
    %129 = vmatmul.f32.gmra.mxu0 %v111
    %v130 = vpop.f32.mrf.mxu0
    %v131 = vadd.f32 0.0, %v130
    %132 = vdwg.mxu0
    %v133 = vadd.f32 %v108, %v131
    %v134 = vxor.u32 %v133, 2147483648
    %v135 = vmul.f32 %v134, 1.442695
    %v136 = vpow.pop %v135
    %v137 = vadd.f32 %v136, 1.0
    %v138 = vrcp.pop %v137
    %v139 = vmul.f32 %v137, %v138
    %v140 = vsub.f32 1.0, %v139
    %v141 = vmul.f32 %v138, %v140
    %v142 = vadd.f32 %v138, %v141
    %vm143 = vweird.f32 %v137
    %vm144 = vweird.f32 %v138
    %vm145 = vmor %vm143, %vm144
    %v146 = vsel %vm145, %v138, %v142
    %v147 = vand.u32 2147483647, %v137
    %vm148 = vcmp.eq.f32.partialorder %v147, 8.507059e+37
    %v149 = vand.u32 %v137, 2147483648
    %v150 = vor.u32 1.1754944e-38, %v149
    %v151 = vsel %vm148, %v150, %v146
    %v152 = vmul.f32 1.0, %v151
    %v153 = vtanh.pop %v133
    %v154 = vmul.f32 %v152, 0.0
    %156 = vrot.lane.b32.xlu0 %v153, 32
    %v157 = vpop.permute.xlu0 %156
    %v159 = vmul.f32 %v152, %v157
    %161 = vrot.lane.b32.xlu0 %v159, 32
    %v162 = vpop.permute.xlu0 %161
    %v164 = vadd.f32 %v154, %v162
    %v165 = vtanh.pop %v164
    %167 = vrot.lane.b32.xlu0 %v165, 32
    %v168 = vpop.permute.xlu0 %167
    %v170 = vmul.f32 %v152, %v168
    %vm171 = vcmask 130048
    %v172 = vsel %vm171, 0.0, 0
    %174 = vmatpush.msra.mxu0 0.0
    %175 = vmatpush.msra.mxu0 0.0
    %176 = vmatpush.msra.mxu0 0.0
    %177 = vmatpush.msra.mxu0 0.0
    %178 = vmatpush.msra.mxu0 0.0
    %179 = vmatpush.msra.mxu0 0.0
    %180 = vmatpush.msra.mxu0 0.0
    %181 = vmatpush.msra.mxu0 0.0
    %182 = vmatpush.msra.mxu0 0.0
    %183 = vmatpush.msra.mxu0 0.0
    %184 = vmatpush.msra.mxu0 0.0
    %185 = vmatpush.msra.mxu0 0.0
    %186 = vmatpush.msra.mxu0 0.0
    %187 = vmatpush.msra.mxu0 0.0
    %188 = vmatpush.msra.mxu0 %v38
    %189 = vmatpush.msra.mxu0 %v37
    %190 = vmatmul.f32.gmra.mxu0 %v172
    %v191 = vpop.f32.mrf.mxu0
    %v192 = vadd.f32 0.0, %v191
    %193 = vdwg.mxu0
    %195 = vrot.lane.b32.xlu0 %v170, 64
    %v196 = vpop.permute.xlu0 %195
    %v197 = vsel %vm109, %v196, 0
    %199 = vmatpush.msra.mxu0 0.0
    %200 = vmatpush.msra.mxu0 0.0
    %201 = vmatpush.msra.mxu0 0.0
    %202 = vmatpush.msra.mxu0 0.0
    %203 = vmatpush.msra.mxu0 0.0
    %204 = vmatpush.msra.mxu0 0.0
    %205 = vmatpush.msra.mxu0 0.0
    %206 = vmatpush.msra.mxu0 0.0
    %207 = vmatpush.msra.mxu0 0.0
    %208 = vmatpush.msra.mxu0 0.0
    %209 = vmatpush.msra.mxu0 0.0
    %210 = vmatpush.msra.mxu0 0.0
    %211 = vmatpush.msra.mxu0 %v36
    %212 = vmatpush.msra.mxu0 %v35
    %213 = vmatpush.msra.mxu0 %v34
    %214 = vmatpush.msra.mxu0 %v33
    %215 = vmatmul.f32.gmra.mxu0 %v197
    %v216 = vpop.f32.mrf.mxu0
    %v217 = vadd.f32 %v192, %v216
    %218 = vdwg.mxu0
    %v219 = vperm.slane %v39, 0
    %v220 = vadd.f32 %v217, %v219
    %v221 = vxor.u32 %v220, 2147483648
    %v222 = vmul.f32 %v221, 1.442695
    %v223 = vpow.pop %v222
    %v224 = vadd.f32 %v223, 1.0
    %v225 = vrcp.pop %v224
    %v226 = vmul.f32 %v224, %v225
    %v227 = vsub.f32 1.0, %v226
    %v228 = vmul.f32 %v225, %v227
    %v229 = vadd.f32 %v225, %v228
    %vm230 = vweird.f32 %v224
    %vm231 = vweird.f32 %v225
    %vm232 = vmor %vm230, %vm231
    %v233 = vsel %vm232, %v225, %v229
    %v234 = vand.u32 2147483647, %v224
    %vm235 = vcmp.eq.f32.partialorder %v234, 8.507059e+37
    %v236 = vand.u32 %v224, 2147483648
    %v237 = vor.u32 1.1754944e-38, %v236
    %v238 = vsel %vm235, %v237, %v233
    %v239 = vmul.f32 1.0, %v238
    %v240 = vtanh.pop %v220
    %v241 = vmul.f32 %v239, 0.0
    %243 = vrot.lane.b32.xlu0 %v240, 80
    %v244 = vpop.permute.xlu0 %243
    %v246 = vmul.f32 %v239, %v244
    %248 = vrot.lane.b32.xlu0 %v246, 16
    %v249 = vpop.permute.xlu0 %248
    %v251 = vadd.f32 %v241, %v249
    %v252 = vtanh.pop %v251
    %254 = vrot.lane.b32.xlu0 %v252, 16
    %v255 = vpop.permute.xlu0 %254
    %v257 = vmul.f32 %v239, %v255
    %vm258 = vcmask 64512
    %v259 = vsel %vm258, 0.0, 0
    %261 = vmatpush.msra.mxu0 0.0
    %262 = vmatpush.msra.mxu0 0.0
    %263 = vmatpush.msra.mxu0 0.0
    %264 = vmatpush.msra.mxu0 0.0
    %265 = vmatpush.msra.mxu0 0.0
    %266 = vmatpush.msra.mxu0 0.0
    %267 = vmatpush.msra.mxu0 0.0
    %268 = vmatpush.msra.mxu0 0.0
    %269 = vmatpush.msra.mxu0 0.0
    %270 = vmatpush.msra.mxu0 0.0
    %271 = vmatpush.msra.mxu0 0.0
    %272 = vmatpush.msra.mxu0 0.0
    %273 = vmatpush.msra.mxu0 0.0
    %274 = vmatpush.msra.mxu0 0.0
    %275 = vmatpush.msra.mxu0 0.0
    %276 = vmatpush.msra.mxu0 %v42
    %277 = vmatmul.f32.gmra.mxu0 %v259
    %v278 = vpop.f32.mrf.mxu0
    %v279 = vadd.f32 0.0, %v278
    %280 = vdwg.mxu0
    %282 = vrot.lane.b32.xlu0 %v257, 96
    %v283 = vpop.permute.xlu0 %282
    %v284 = vsel %vm171, %v283, 0
    %286 = vmatpush.msra.mxu0 0.0
    %287 = vmatpush.msra.mxu0 0.0
    %288 = vmatpush.msra.mxu0 0.0
    %289 = vmatpush.msra.mxu0 0.0
    %290 = vmatpush.msra.mxu0 0.0
    %291 = vmatpush.msra.mxu0 0.0
    %292 = vmatpush.msra.mxu0 0.0
    %293 = vmatpush.msra.mxu0 0.0
    %294 = vmatpush.msra.mxu0 0.0
    %295 = vmatpush.msra.mxu0 0.0
    %296 = vmatpush.msra.mxu0 0.0
    %297 = vmatpush.msra.mxu0 0.0
    %298 = vmatpush.msra.mxu0 0.0
    %299 = vmatpush.msra.mxu0 0.0
    %300 = vmatpush.msra.mxu0 %v41
    %301 = vmatpush.msra.mxu0 %v40
    %302 = vmatmul.f32.gmra.mxu0 %v284
    %v303 = vpop.f32.mrf.mxu0
    %v304 = vadd.f32 %v279, %v303
    %305 = vdwg.mxu0
    %v306 = vperm.slane %v43, 0
    %v307 = vadd.f32 %v304, %v306
    %v308 = vxor.u32 %v307, 2147483648
    %v309 = vmul.f32 %v308, 1.442695
    %v310 = vpow.pop %v309
    %v311 = vadd.f32 %v310, 1.0
    %v312 = vrcp.pop %v311
    %v313 = vmul.f32 %v311, %v312
    %v314 = vsub.f32 1.0, %v313
    %v315 = vmul.f32 %v312, %v314
    %v316 = vadd.f32 %v312, %v315
    %vm317 = vweird.f32 %v311
    %vm318 = vweird.f32 %v312
    %vm319 = vmor %vm317, %vm318
    %v320 = vsel %vm319, %v312, %v316
    %v321 = vand.u32 2147483647, %v311
    %vm322 = vcmp.eq.f32.partialorder %v321, 8.507059e+37
    %v323 = vand.u32 %v311, 2147483648
    %v324 = vor.u32 1.1754944e-38, %v323
    %v325 = vsel %vm322, %v324, %v320
    %v326 = vmul.f32 1.0, %v325
    %v327 = vtanh.pop %v307
    %v328 = vmul.f32 %v326, 0.0
    %330 = vrot.lane.b32.xlu0 %v327, 104
    %v331 = vpop.permute.xlu0 %330
    %v333 = vmul.f32 %v326, %v331
    %335 = vrot.lane.b32.xlu0 %v333, 8
    %v336 = vpop.permute.xlu0 %335
    %v338 = vadd.f32 %v328, %v336
    %v339 = vtanh.pop %v338
    %341 = vrot.lane.b32.xlu0 %v339, 8
    %v342 = vpop.permute.xlu0 %341
    %v344 = vmul.f32 %v326, %v342
    %v345 = vperm.slane %v92, 1
    %v346 = vsel %vm101, %v345, 0.0
    %v347 = vperm.slane %v95, 1
    %v348 = vsel %vm106, %v347, %v346
    %349 = vmatpush.msra.mxu0 0.0
    %350 = vmatpush.msra.mxu0 0.0
    %351 = vmatpush.msra.mxu0 0.0
    %352 = vmatpush.msra.mxu0 0.0
    %353 = vmatpush.msra.mxu0 0.0
    %354 = vmatpush.msra.mxu0 0.0
    %355 = vmatpush.msra.mxu0 0.0
    %356 = vmatpush.msra.mxu0 0.0
    %357 = vmatpush.msra.mxu0 0.0
    %358 = vmatpush.msra.mxu0 0.0
    %359 = vmatpush.msra.mxu0 0.0
    %360 = vmatpush.msra.mxu0 0.0
    %361 = vmatpush.msra.mxu0 %v31
    %362 = vmatpush.msra.mxu0 %v30
    %363 = vmatpush.msra.mxu0 %v29
    %364 = vmatpush.msra.mxu0 %v28
    %365 = vmatmul.f32.gmra.mxu0 %v197
    %v366 = vpop.f32.mrf.mxu0
    %v367 = vadd.f32 0.0, %v366
    %368 = vdwg.mxu0
    %v369 = vadd.f32 %v348, %v367
    %v370 = vxor.u32 %v369, 2147483648
    %v371 = vmul.f32 %v370, 1.442695
    %v372 = vpow.pop %v371
    %v373 = vadd.f32 %v372, 1.0
    %v374 = vrcp.pop %v373
    %v375 = vmul.f32 %v373, %v374
    %v376 = vsub.f32 1.0, %v375
    %v377 = vmul.f32 %v374, %v376
    %v378 = vadd.f32 %v374, %v377
    %vm379 = vweird.f32 %v373
    %vm380 = vweird.f32 %v374
    %vm381 = vmor %vm379, %vm380
    %v382 = vsel %vm381, %v374, %v378
    %v383 = vand.u32 2147483647, %v373
    %vm384 = vcmp.eq.f32.partialorder %v383, 8.507059e+37
    %v385 = vand.u32 %v373, 2147483648
    %v386 = vor.u32 1.1754944e-38, %v385
    %v387 = vsel %vm384, %v386, %v382
    %v388 = vmul.f32 1.0, %v387
    %v389 = vtanh.pop %v369
    %v390 = vmul.f32 %v388, %v164
    %392 = vrot.lane.b32.xlu0 %v389, 32
    %v393 = vpop.permute.xlu0 %392
    %v395 = vmul.f32 %v388, %v393
    %397 = vrot.lane.b32.xlu0 %v395, 32
    %v398 = vpop.permute.xlu0 %397
    %v400 = vadd.f32 %v390, %v398
    %v401 = vtanh.pop %v400
    %403 = vrot.lane.b32.xlu0 %v401, 32
    %v404 = vpop.permute.xlu0 %403
    %v406 = vmul.f32 %v388, %v404
    %407 = vmatpush.msra.mxu0 0.0
    %408 = vmatpush.msra.mxu0 0.0
    %409 = vmatpush.msra.mxu0 0.0
    %410 = vmatpush.msra.mxu0 0.0
    %411 = vmatpush.msra.mxu0 0.0
    %412 = vmatpush.msra.mxu0 0.0
    %413 = vmatpush.msra.mxu0 0.0
    %414 = vmatpush.msra.mxu0 0.0
    %415 = vmatpush.msra.mxu0 0.0
    %416 = vmatpush.msra.mxu0 0.0
    %417 = vmatpush.msra.mxu0 0.0
    %418 = vmatpush.msra.mxu0 0.0
    %419 = vmatpush.msra.mxu0 0.0
    %420 = vmatpush.msra.mxu0 0.0
    %421 = vmatpush.msra.mxu0 %v38
    %422 = vmatpush.msra.mxu0 %v37
    %423 = vmatmul.f32.gmra.mxu0 %v284
    %v424 = vpop.f32.mrf.mxu0
    %v425 = vadd.f32 0.0, %v424
    %426 = vdwg.mxu0
    %428 = vrot.lane.b32.xlu0 %v406, 64
    %v429 = vpop.permute.xlu0 %428
    %v430 = vsel %vm109, %v429, 0
    %432 = vmatpush.msra.mxu0 0.0
    %433 = vmatpush.msra.mxu0 0.0
    %434 = vmatpush.msra.mxu0 0.0
    %435 = vmatpush.msra.mxu0 0.0
    %436 = vmatpush.msra.mxu0 0.0
    %437 = vmatpush.msra.mxu0 0.0
    %438 = vmatpush.msra.mxu0 0.0
    %439 = vmatpush.msra.mxu0 0.0
    %440 = vmatpush.msra.mxu0 0.0
    %441 = vmatpush.msra.mxu0 0.0
    %442 = vmatpush.msra.mxu0 0.0
    %443 = vmatpush.msra.mxu0 0.0
    %444 = vmatpush.msra.mxu0 %v36
    %445 = vmatpush.msra.mxu0 %v35
    %446 = vmatpush.msra.mxu0 %v34
    %447 = vmatpush.msra.mxu0 %v33
    %448 = vmatmul.f32.gmra.mxu0 %v430
    %v449 = vpop.f32.mrf.mxu0
    %v450 = vadd.f32 %v425, %v449
    %451 = vdwg.mxu0
    %v452 = vadd.f32 %v450, %v219
    %v453 = vxor.u32 %v452, 2147483648
    %v454 = vmul.f32 %v453, 1.442695
    %v455 = vpow.pop %v454
    %v456 = vadd.f32 %v455, 1.0
    %v457 = vrcp.pop %v456
    %v458 = vmul.f32 %v456, %v457
    %v459 = vsub.f32 1.0, %v458
    %v460 = vmul.f32 %v457, %v459
    %v461 = vadd.f32 %v457, %v460
    %vm462 = vweird.f32 %v456
    %vm463 = vweird.f32 %v457
    %vm464 = vmor %vm462, %vm463
    %v465 = vsel %vm464, %v457, %v461
    %v466 = vand.u32 2147483647, %v456
    %vm467 = vcmp.eq.f32.partialorder %v466, 8.507059e+37
    %v468 = vand.u32 %v456, 2147483648
    %v469 = vor.u32 1.1754944e-38, %v468
    %v470 = vsel %vm467, %v469, %v465
    %v471 = vmul.f32 1.0, %v470
    %v472 = vtanh.pop %v452
    %v473 = vmul.f32 %v471, %v251
    %475 = vrot.lane.b32.xlu0 %v472, 80
    %v476 = vpop.permute.xlu0 %475
    %v478 = vmul.f32 %v471, %v476
    %480 = vrot.lane.b32.xlu0 %v478, 16
    %v481 = vpop.permute.xlu0 %480
    %v483 = vadd.f32 %v473, %v481
    %v484 = vtanh.pop %v483
    %486 = vrot.lane.b32.xlu0 %v484, 16
    %v487 = vpop.permute.xlu0 %486
    %v489 = vmul.f32 %v471, %v487
    %491 = vrot.lane.b32.xlu0 %v344, 112
    %v492 = vpop.permute.xlu0 %491
    %v493 = vsel %vm258, %v492, 0
    %495 = vmatpush.msra.mxu0 0.0
    %496 = vmatpush.msra.mxu0 0.0
    %497 = vmatpush.msra.mxu0 0.0
    %498 = vmatpush.msra.mxu0 0.0
    %499 = vmatpush.msra.mxu0 0.0
    %500 = vmatpush.msra.mxu0 0.0
    %501 = vmatpush.msra.mxu0 0.0
    %502 = vmatpush.msra.mxu0 0.0
    %503 = vmatpush.msra.mxu0 0.0
    %504 = vmatpush.msra.mxu0 0.0
    %505 = vmatpush.msra.mxu0 0.0
    %506 = vmatpush.msra.mxu0 0.0
    %507 = vmatpush.msra.mxu0 0.0
    %508 = vmatpush.msra.mxu0 0.0
    %509 = vmatpush.msra.mxu0 0.0
    %510 = vmatpush.msra.mxu0 %v42
    %511 = vmatmul.f32.gmra.mxu0 %v493
    %v512 = vpop.f32.mrf.mxu0
    %v513 = vadd.f32 0.0, %v512
    %514 = vdwg.mxu0
    %516 = vrot.lane.b32.xlu0 %v489, 96
    %v517 = vpop.permute.xlu0 %516
    %v518 = vsel %vm171, %v517, 0
    %520 = vmatpush.msra.mxu0 0.0
    %521 = vmatpush.msra.mxu0 0.0
    %522 = vmatpush.msra.mxu0 0.0
    %523 = vmatpush.msra.mxu0 0.0
    %524 = vmatpush.msra.mxu0 0.0
    %525 = vmatpush.msra.mxu0 0.0
    %526 = vmatpush.msra.mxu0 0.0
    %527 = vmatpush.msra.mxu0 0.0
    %528 = vmatpush.msra.mxu0 0.0
    %529 = vmatpush.msra.mxu0 0.0
    %530 = vmatpush.msra.mxu0 0.0
    %531 = vmatpush.msra.mxu0 0.0
    %532 = vmatpush.msra.mxu0 0.0
    %533 = vmatpush.msra.mxu0 0.0
    %534 = vmatpush.msra.mxu0 %v41
    %535 = vmatpush.msra.mxu0 %v40
    %536 = vmatmul.f32.gmra.mxu0 %v518
    %v537 = vpop.f32.mrf.mxu0
    %v538 = vadd.f32 %v513, %v537
    %539 = vdwg.mxu0
    %v540 = vadd.f32 %v538, %v306
    %v541 = vxor.u32 %v540, 2147483648
    %v542 = vmul.f32 %v541, 1.442695
    %v543 = vpow.pop %v542
    %v544 = vadd.f32 %v543, 1.0
    %v545 = vrcp.pop %v544
    %v546 = vmul.f32 %v544, %v545
    %v547 = vsub.f32 1.0, %v546
    %v548 = vmul.f32 %v545, %v547
    %v549 = vadd.f32 %v545, %v548
    %vm550 = vweird.f32 %v544
    %vm551 = vweird.f32 %v545
    %vm552 = vmor %vm550, %vm551
    %v553 = vsel %vm552, %v545, %v549
    %v554 = vand.u32 2147483647, %v544
    %vm555 = vcmp.eq.f32.partialorder %v554, 8.507059e+37
    %v556 = vand.u32 %v544, 2147483648
    %v557 = vor.u32 1.1754944e-38, %v556
    %v558 = vsel %vm555, %v557, %v553
    %v559 = vmul.f32 1.0, %v558
    %v560 = vtanh.pop %v540
    %v561 = vmul.f32 %v559, %v338
    %563 = vrot.lane.b32.xlu0 %v560, 104
    %v564 = vpop.permute.xlu0 %563
    %v566 = vmul.f32 %v559, %v564
    %568 = vrot.lane.b32.xlu0 %v566, 8
    %v569 = vpop.permute.xlu0 %568
    %v571 = vadd.f32 %v561, %v569
    %v572 = vtanh.pop %v571
    %574 = vrot.lane.b32.xlu0 %v572, 8
    %v575 = vpop.permute.xlu0 %574
    %v577 = vmul.f32 %v559, %v575
    %v578 = vperm.slane %v92, 2
    %v579 = vsel %vm101, %v578, 0.0
    %v580 = vperm.slane %v95, 2
    %v581 = vsel %vm106, %v580, %v579
    %582 = vmatpush.msra.mxu0 0.0
    %583 = vmatpush.msra.mxu0 0.0
    %584 = vmatpush.msra.mxu0 0.0
    %585 = vmatpush.msra.mxu0 0.0
    %586 = vmatpush.msra.mxu0 0.0
    %587 = vmatpush.msra.mxu0 0.0
    %588 = vmatpush.msra.mxu0 0.0
    %589 = vmatpush.msra.mxu0 0.0
    %590 = vmatpush.msra.mxu0 0.0
    %591 = vmatpush.msra.mxu0 0.0
    %592 = vmatpush.msra.mxu0 0.0
    %593 = vmatpush.msra.mxu0 0.0
    %594 = vmatpush.msra.mxu0 %v31
    %595 = vmatpush.msra.mxu0 %v30
    %596 = vmatpush.msra.mxu0 %v29
    %597 = vmatpush.msra.mxu0 %v28
    %598 = vmatmul.f32.gmra.mxu0 %v430
    %v599 = vpop.f32.mrf.mxu0
    %v600 = vadd.f32 0.0, %v599
    %601 = vdwg.mxu0
    %v602 = vadd.f32 %v581, %v600
    %v603 = vxor.u32 %v602, 2147483648
    %v604 = vmul.f32 %v603, 1.442695
    %v605 = vpow.pop %v604
    %v606 = vadd.f32 %v605, 1.0
    %v607 = vrcp.pop %v606
    %v608 = vmul.f32 %v606, %v607
    %v609 = vsub.f32 1.0, %v608
    %v610 = vmul.f32 %v607, %v609
    %v611 = vadd.f32 %v607, %v610
    %vm612 = vweird.f32 %v606
    %vm613 = vweird.f32 %v607
    %vm614 = vmor %vm612, %vm613
    %v615 = vsel %vm614, %v607, %v611
    %v616 = vand.u32 2147483647, %v606
    %vm617 = vcmp.eq.f32.partialorder %v616, 8.507059e+37
    %v618 = vand.u32 %v606, 2147483648
    %v619 = vor.u32 1.1754944e-38, %v618
    %v620 = vsel %vm617, %v619, %v615
    %v621 = vmul.f32 1.0, %v620
    %v622 = vtanh.pop %v602
    %v623 = vmul.f32 %v621, %v400
    %625 = vrot.lane.b32.xlu0 %v622, 32
    %v626 = vpop.permute.xlu0 %625
    %v628 = vmul.f32 %v621, %v626
    %630 = vrot.lane.b32.xlu0 %v628, 32
    %v631 = vpop.permute.xlu0 %630
    %v633 = vadd.f32 %v623, %v631
    %v634 = vtanh.pop %v633
    %636 = vrot.lane.b32.xlu0 %v634, 32
    %v637 = vpop.permute.xlu0 %636
    %v639 = vmul.f32 %v621, %v637
    %640 = vmatpush.msra.mxu0 0.0
    %641 = vmatpush.msra.mxu0 0.0
    %642 = vmatpush.msra.mxu0 0.0
    %643 = vmatpush.msra.mxu0 0.0
    %644 = vmatpush.msra.mxu0 0.0
    %645 = vmatpush.msra.mxu0 0.0
    %646 = vmatpush.msra.mxu0 0.0
    %647 = vmatpush.msra.mxu0 0.0
    %648 = vmatpush.msra.mxu0 0.0
    %649 = vmatpush.msra.mxu0 0.0
    %650 = vmatpush.msra.mxu0 0.0
    %651 = vmatpush.msra.mxu0 0.0
    %652 = vmatpush.msra.mxu0 0.0
    %653 = vmatpush.msra.mxu0 0.0
    %654 = vmatpush.msra.mxu0 %v38
    %655 = vmatpush.msra.mxu0 %v37
    %656 = vmatmul.f32.gmra.mxu0 %v518
    %v657 = vpop.f32.mrf.mxu0
    %v658 = vadd.f32 0.0, %v657
    %659 = vdwg.mxu0
    %661 = vrot.lane.b32.xlu0 %v639, 64
    %v662 = vpop.permute.xlu0 %661
    %v663 = vsel %vm109, %v662, 0
    %665 = vmatpush.msra.mxu0 0.0
    %666 = vmatpush.msra.mxu0 0.0
    %667 = vmatpush.msra.mxu0 0.0
    %668 = vmatpush.msra.mxu0 0.0
    %669 = vmatpush.msra.mxu0 0.0
    %670 = vmatpush.msra.mxu0 0.0
    %671 = vmatpush.msra.mxu0 0.0
    %672 = vmatpush.msra.mxu0 0.0
    %673 = vmatpush.msra.mxu0 0.0
    %674 = vmatpush.msra.mxu0 0.0
    %675 = vmatpush.msra.mxu0 0.0
    %676 = vmatpush.msra.mxu0 0.0
    %677 = vmatpush.msra.mxu0 %v36
    %678 = vmatpush.msra.mxu0 %v35
    %679 = vmatpush.msra.mxu0 %v34
    %680 = vmatpush.msra.mxu0 %v33
    %681 = vmatmul.f32.gmra.mxu0 %v663
    %v682 = vpop.f32.mrf.mxu0
    %v683 = vadd.f32 %v658, %v682
    %684 = vdwg.mxu0
    %v685 = vadd.f32 %v683, %v219
    %v686 = vxor.u32 %v685, 2147483648
    %v687 = vmul.f32 %v686, 1.442695
    %v688 = vpow.pop %v687
    %v689 = vadd.f32 %v688, 1.0
    %v690 = vrcp.pop %v689
    %v691 = vmul.f32 %v689, %v690
    %v692 = vsub.f32 1.0, %v691
    %v693 = vmul.f32 %v690, %v692
    %v694 = vadd.f32 %v690, %v693
    %vm695 = vweird.f32 %v689
    %vm696 = vweird.f32 %v690
    %vm697 = vmor %vm695, %vm696
    %v698 = vsel %vm697, %v690, %v694
    %v699 = vand.u32 2147483647, %v689
    %vm700 = vcmp.eq.f32.partialorder %v699, 8.507059e+37
    %v701 = vand.u32 %v689, 2147483648
    %v702 = vor.u32 1.1754944e-38, %v701
    %v703 = vsel %vm700, %v702, %v698
    %v704 = vmul.f32 1.0, %v703
    %v705 = vtanh.pop %v685
    %v706 = vmul.f32 %v704, %v483
    %708 = vrot.lane.b32.xlu0 %v705, 80
    %v709 = vpop.permute.xlu0 %708
    %v711 = vmul.f32 %v704, %v709
    %713 = vrot.lane.b32.xlu0 %v711, 16
    %v714 = vpop.permute.xlu0 %713
    %v716 = vadd.f32 %v706, %v714
    %v717 = vtanh.pop %v716
    %719 = vrot.lane.b32.xlu0 %v717, 16
    %v720 = vpop.permute.xlu0 %719
    %v722 = vmul.f32 %v704, %v720
    %724 = vrot.lane.b32.xlu0 %v577, 112
    %v725 = vpop.permute.xlu0 %724
    %v726 = vsel %vm258, %v725, 0
    %728 = vmatpush.msra.mxu0 0.0
    %729 = vmatpush.msra.mxu0 0.0
    %730 = vmatpush.msra.mxu0 0.0
    %731 = vmatpush.msra.mxu0 0.0
    %732 = vmatpush.msra.mxu0 0.0
    %733 = vmatpush.msra.mxu0 0.0
    %734 = vmatpush.msra.mxu0 0.0
    %735 = vmatpush.msra.mxu0 0.0
    %736 = vmatpush.msra.mxu0 0.0
    %737 = vmatpush.msra.mxu0 0.0
    %738 = vmatpush.msra.mxu0 0.0
    %739 = vmatpush.msra.mxu0 0.0
    %740 = vmatpush.msra.mxu0 0.0
    %741 = vmatpush.msra.mxu0 0.0
    %742 = vmatpush.msra.mxu0 0.0
    %743 = vmatpush.msra.mxu0 %v42
    %744 = vmatmul.f32.gmra.mxu0 %v726
    %v745 = vpop.f32.mrf.mxu0
    %v746 = vadd.f32 0.0, %v745
    %747 = vdwg.mxu0
    %749 = vrot.lane.b32.xlu0 %v722, 96
    %v750 = vpop.permute.xlu0 %749
    %v751 = vsel %vm171, %v750, 0
    %753 = vmatpush.msra.mxu0 0.0
    %754 = vmatpush.msra.mxu0 0.0
    %755 = vmatpush.msra.mxu0 0.0
    %756 = vmatpush.msra.mxu0 0.0
    %757 = vmatpush.msra.mxu0 0.0
    %758 = vmatpush.msra.mxu0 0.0
    %759 = vmatpush.msra.mxu0 0.0
    %760 = vmatpush.msra.mxu0 0.0
    %761 = vmatpush.msra.mxu0 0.0
    %762 = vmatpush.msra.mxu0 0.0
    %763 = vmatpush.msra.mxu0 0.0
    %764 = vmatpush.msra.mxu0 0.0
    %765 = vmatpush.msra.mxu0 0.0
    %766 = vmatpush.msra.mxu0 0.0
    %767 = vmatpush.msra.mxu0 %v41
    %768 = vmatpush.msra.mxu0 %v40
    %769 = vmatmul.f32.gmra.mxu0 %v751
    %v770 = vpop.f32.mrf.mxu0
    %v771 = vadd.f32 %v746, %v770
    %772 = vdwg.mxu0
    %v773 = vadd.f32 %v771, %v306
    %v774 = vxor.u32 %v773, 2147483648
    %v775 = vmul.f32 %v774, 1.442695
    %v776 = vpow.pop %v775
    %v777 = vadd.f32 %v776, 1.0
    %v778 = vrcp.pop %v777
    %v779 = vmul.f32 %v777, %v778
    %v780 = vsub.f32 1.0, %v779
    %v781 = vmul.f32 %v778, %v780
    %v782 = vadd.f32 %v778, %v781
    %vm783 = vweird.f32 %v777
    %vm784 = vweird.f32 %v778
    %vm785 = vmor %vm783, %vm784
    %v786 = vsel %vm785, %v778, %v782
    %v787 = vand.u32 2147483647, %v777
    %vm788 = vcmp.eq.f32.partialorder %v787, 8.507059e+37
    %v789 = vand.u32 %v777, 2147483648
    %v790 = vor.u32 1.1754944e-38, %v789
    %v791 = vsel %vm788, %v790, %v786
    %v792 = vmul.f32 1.0, %v791
    %v793 = vtanh.pop %v773
    %v794 = vmul.f32 %v792, %v571
    %796 = vrot.lane.b32.xlu0 %v793, 104
    %v797 = vpop.permute.xlu0 %796
    %v799 = vmul.f32 %v792, %v797
    %801 = vrot.lane.b32.xlu0 %v799, 8
    %v802 = vpop.permute.xlu0 %801
    %v804 = vadd.f32 %v794, %v802
    %v805 = vtanh.pop %v804
    %807 = vrot.lane.b32.xlu0 %v805, 8
    %v808 = vpop.permute.xlu0 %807
    %v810 = vmul.f32 %v792, %v808
    %v811 = vperm.slane %v92, 3
    %v812 = vsel %vm101, %v811, 0.0
    %v813 = vperm.slane %v95, 3
    %v814 = vsel %vm106, %v813, %v812
    %815 = vmatpush.msra.mxu0 0.0
    %816 = vmatpush.msra.mxu0 0.0
    %817 = vmatpush.msra.mxu0 0.0
    %818 = vmatpush.msra.mxu0 0.0
    %819 = vmatpush.msra.mxu0 0.0
    %820 = vmatpush.msra.mxu0 0.0
    %821 = vmatpush.msra.mxu0 0.0
    %822 = vmatpush.msra.mxu0 0.0
    %823 = vmatpush.msra.mxu0 0.0
    %824 = vmatpush.msra.mxu0 0.0
    %825 = vmatpush.msra.mxu0 0.0
    %826 = vmatpush.msra.mxu0 0.0
    %827 = vmatpush.msra.mxu0 %v31
    %828 = vmatpush.msra.mxu0 %v30
    %829 = vmatpush.msra.mxu0 %v29
    %830 = vmatpush.msra.mxu0 %v28
    %831 = vmatmul.f32.gmra.mxu0 %v663
    %v832 = vpop.f32.mrf.mxu0
    %v833 = vadd.f32 0.0, %v832
    %834 = vdwg.mxu0
    %v835 = vadd.f32 %v814, %v833
    %v836 = vxor.u32 %v835, 2147483648
    %v837 = vmul.f32 %v836, 1.442695
    %v838 = vpow.pop %v837
    %v839 = vadd.f32 %v838, 1.0
    %v840 = vrcp.pop %v839
    %v841 = vmul.f32 %v839, %v840
    %v842 = vsub.f32 1.0, %v841
    %v843 = vmul.f32 %v840, %v842
    %v844 = vadd.f32 %v840, %v843
    %vm845 = vweird.f32 %v839
    %vm846 = vweird.f32 %v840
    %vm847 = vmor %vm845, %vm846
    %v848 = vsel %vm847, %v840, %v844
    %v849 = vand.u32 2147483647, %v839
    %vm850 = vcmp.eq.f32.partialorder %v849, 8.507059e+37
    %v851 = vand.u32 %v839, 2147483648
    %v852 = vor.u32 1.1754944e-38, %v851
    %v853 = vsel %vm850, %v852, %v848
    %v854 = vmul.f32 1.0, %v853
    %v855 = vtanh.pop %v835
    %v856 = vmul.f32 %v854, %v633
    %858 = vrot.lane.b32.xlu0 %v855, 32
    %v859 = vpop.permute.xlu0 %858
    %v861 = vmul.f32 %v854, %v859
    %863 = vrot.lane.b32.xlu0 %v861, 32
    %v864 = vpop.permute.xlu0 %863
    %v866 = vadd.f32 %v856, %v864
    %v867 = vtanh.pop %v866
    %869 = vrot.lane.b32.xlu0 %v867, 32
    %v870 = vpop.permute.xlu0 %869
    %v872 = vmul.f32 %v854, %v870
    %873 = vmatpush.msra.mxu0 0.0
    %874 = vmatpush.msra.mxu0 0.0
    %875 = vmatpush.msra.mxu0 0.0
    %876 = vmatpush.msra.mxu0 0.0
    %877 = vmatpush.msra.mxu0 0.0
    %878 = vmatpush.msra.mxu0 0.0
    %879 = vmatpush.msra.mxu0 0.0
    %880 = vmatpush.msra.mxu0 0.0
    %881 = vmatpush.msra.mxu0 0.0
    %882 = vmatpush.msra.mxu0 0.0
    %883 = vmatpush.msra.mxu0 0.0
    %884 = vmatpush.msra.mxu0 0.0
    %885 = vmatpush.msra.mxu0 0.0
    %886 = vmatpush.msra.mxu0 0.0
    %887 = vmatpush.msra.mxu0 %v38
    %888 = vmatpush.msra.mxu0 %v37
    %889 = vmatmul.f32.gmra.mxu0 %v751
    %v890 = vpop.f32.mrf.mxu0
    %v891 = vadd.f32 0.0, %v890
    %892 = vdwg.mxu0
    %894 = vrot.lane.b32.xlu0 %v872, 64
    %v895 = vpop.permute.xlu0 %894
    %v896 = vsel %vm109, %v895, 0
    %898 = vmatpush.msra.mxu0 0.0
    %899 = vmatpush.msra.mxu0 0.0
    %900 = vmatpush.msra.mxu0 0.0
    %901 = vmatpush.msra.mxu0 0.0
    %902 = vmatpush.msra.mxu0 0.0
    %903 = vmatpush.msra.mxu0 0.0
    %904 = vmatpush.msra.mxu0 0.0
    %905 = vmatpush.msra.mxu0 0.0
    %906 = vmatpush.msra.mxu0 0.0
    %907 = vmatpush.msra.mxu0 0.0
    %908 = vmatpush.msra.mxu0 0.0
    %909 = vmatpush.msra.mxu0 0.0
    %910 = vmatpush.msra.mxu0 %v36
    %911 = vmatpush.msra.mxu0 %v35
    %912 = vmatpush.msra.mxu0 %v34
    %913 = vmatpush.msra.mxu0 %v33
    %914 = vmatmul.f32.gmra.mxu0 %v896
    %v915 = vpop.f32.mrf.mxu0
    %v916 = vadd.f32 %v891, %v915
    %917 = vdwg.mxu0
    %v918 = vadd.f32 %v916, %v219
    %v919 = vxor.u32 %v918, 2147483648
    %v920 = vmul.f32 %v919, 1.442695
    %v921 = vpow.pop %v920
    %v922 = vadd.f32 %v921, 1.0
    %v923 = vrcp.pop %v922
    %v924 = vmul.f32 %v922, %v923
    %v925 = vsub.f32 1.0, %v924
    %v926 = vmul.f32 %v923, %v925
    %v927 = vadd.f32 %v923, %v926
    %vm928 = vweird.f32 %v922
    %vm929 = vweird.f32 %v923
    %vm930 = vmor %vm928, %vm929
    %v931 = vsel %vm930, %v923, %v927
    %v932 = vand.u32 2147483647, %v922
    %vm933 = vcmp.eq.f32.partialorder %v932, 8.507059e+37
    %v934 = vand.u32 %v922, 2147483648
    %v935 = vor.u32 1.1754944e-38, %v934
    %v936 = vsel %vm933, %v935, %v931
    %v937 = vmul.f32 1.0, %v936
    %v938 = vtanh.pop %v918
    %v939 = vmul.f32 %v937, %v716
    %941 = vrot.lane.b32.xlu0 %v938, 80
    %v942 = vpop.permute.xlu0 %941
    %v944 = vmul.f32 %v937, %v942
    %946 = vrot.lane.b32.xlu0 %v944, 16
    %v947 = vpop.permute.xlu0 %946
    %v949 = vadd.f32 %v939, %v947
    %v950 = vtanh.pop %v949
    %952 = vrot.lane.b32.xlu0 %v950, 16
    %v953 = vpop.permute.xlu0 %952
    %v955 = vmul.f32 %v937, %v953
    %957 = vrot.lane.b32.xlu0 %v810, 112
    %v958 = vpop.permute.xlu0 %957
    %v959 = vsel %vm258, %v958, 0
    %961 = vmatpush.msra.mxu0 0.0
    %962 = vmatpush.msra.mxu0 0.0
    %963 = vmatpush.msra.mxu0 0.0
    %964 = vmatpush.msra.mxu0 0.0
    %965 = vmatpush.msra.mxu0 0.0
    %966 = vmatpush.msra.mxu0 0.0
    %967 = vmatpush.msra.mxu0 0.0
    %968 = vmatpush.msra.mxu0 0.0
    %969 = vmatpush.msra.mxu0 0.0
    %970 = vmatpush.msra.mxu0 0.0
    %971 = vmatpush.msra.mxu0 0.0
    %972 = vmatpush.msra.mxu0 0.0
    %973 = vmatpush.msra.mxu0 0.0
    %974 = vmatpush.msra.mxu0 0.0
    %975 = vmatpush.msra.mxu0 0.0
    %976 = vmatpush.msra.mxu0 %v42
    %977 = vmatmul.f32.gmra.mxu0 %v959
    %v978 = vpop.f32.mrf.mxu0
    %v979 = vadd.f32 0.0, %v978
    %980 = vdwg.mxu0
    %982 = vrot.lane.b32.xlu0 %v955, 96
    %v983 = vpop.permute.xlu0 %982
    %v984 = vsel %vm171, %v983, 0
    %986 = vmatpush.msra.mxu0 0.0
    %987 = vmatpush.msra.mxu0 0.0
    %988 = vmatpush.msra.mxu0 0.0
    %989 = vmatpush.msra.mxu0 0.0
    %990 = vmatpush.msra.mxu0 0.0
    %991 = vmatpush.msra.mxu0 0.0
    %992 = vmatpush.msra.mxu0 0.0
    %993 = vmatpush.msra.mxu0 0.0
    %994 = vmatpush.msra.mxu0 0.0
    %995 = vmatpush.msra.mxu0 0.0
    %996 = vmatpush.msra.mxu0 0.0
    %997 = vmatpush.msra.mxu0 0.0
    %998 = vmatpush.msra.mxu0 0.0
    %999 = vmatpush.msra.mxu0 0.0
    %1000 = vmatpush.msra.mxu0 %v41
    %1001 = vmatpush.msra.mxu0 %v40
    %1002 = vmatmul.f32.gmra.mxu0 %v984
    %v1003 = vpop.f32.mrf.mxu0
    %v1004 = vadd.f32 %v979, %v1003
    %1005 = vdwg.mxu0
    %v1006 = vadd.f32 %v1004, %v306
    %v1007 = vxor.u32 %v1006, 2147483648
    %v1008 = vmul.f32 %v1007, 1.442695
    %v1009 = vpow.pop %v1008
    %v1010 = vadd.f32 %v1009, 1.0
    %v1011 = vrcp.pop %v1010
    %v1012 = vmul.f32 %v1010, %v1011
    %v1013 = vsub.f32 1.0, %v1012
    %v1014 = vmul.f32 %v1011, %v1013
    %v1015 = vadd.f32 %v1011, %v1014
    %vm1016 = vweird.f32 %v1010
    %vm1017 = vweird.f32 %v1011
    %vm1018 = vmor %vm1016, %vm1017
    %v1019 = vsel %vm1018, %v1011, %v1015
    %v1020 = vand.u32 2147483647, %v1010
    %vm1021 = vcmp.eq.f32.partialorder %v1020, 8.507059e+37
    %v1022 = vand.u32 %v1010, 2147483648
    %v1023 = vor.u32 1.1754944e-38, %v1022
    %v1024 = vsel %vm1021, %v1023, %v1019
    %v1025 = vmul.f32 1.0, %v1024
    %v1026 = vtanh.pop %v1006
    %v1027 = vmul.f32 %v1025, %v804
    %1029 = vrot.lane.b32.xlu0 %v1026, 104
    %v1030 = vpop.permute.xlu0 %1029
    %v1032 = vmul.f32 %v1025, %v1030
    %1034 = vrot.lane.b32.xlu0 %v1032, 8
    %v1035 = vpop.permute.xlu0 %1034
    %v1037 = vadd.f32 %v1027, %v1035
    %v1038 = vtanh.pop %v1037
    %1040 = vrot.lane.b32.xlu0 %v1038, 8
    %v1041 = vpop.permute.xlu0 %1040
    %v1043 = vmul.f32 %v1025, %v1041
    %v1044 = vperm.slane %v92, 4
    %v1045 = vsel %vm101, %v1044, 0.0
    %v1046 = vperm.slane %v95, 4
    %v1047 = vsel %vm106, %v1046, %v1045
    %1048 = vmatpush.msra.mxu0 0.0
    %1049 = vmatpush.msra.mxu0 0.0
    %1050 = vmatpush.msra.mxu0 0.0
    %1051 = vmatpush.msra.mxu0 0.0
    %1052 = vmatpush.msra.mxu0 0.0
    %1053 = vmatpush.msra.mxu0 0.0
    %1054 = vmatpush.msra.mxu0 0.0
    %1055 = vmatpush.msra.mxu0 0.0
    %1056 = vmatpush.msra.mxu0 0.0
    %1057 = vmatpush.msra.mxu0 0.0
    %1058 = vmatpush.msra.mxu0 0.0
    %1059 = vmatpush.msra.mxu0 0.0
    %1060 = vmatpush.msra.mxu0 %v31
    %1061 = vmatpush.msra.mxu0 %v30
    %1062 = vmatpush.msra.mxu0 %v29
    %1063 = vmatpush.msra.mxu0 %v28
    %1064 = vmatmul.f32.gmra.mxu0 %v896
    %v1065 = vpop.f32.mrf.mxu0
    %v1066 = vadd.f32 0.0, %v1065
    %1067 = vdwg.mxu0
    %v1068 = vadd.f32 %v1047, %v1066
    %v1069 = vxor.u32 %v1068, 2147483648
    %v1070 = vmul.f32 %v1069, 1.442695
    %v1071 = vpow.pop %v1070
    %v1072 = vadd.f32 %v1071, 1.0
    %v1073 = vrcp.pop %v1072
    %v1074 = vmul.f32 %v1072, %v1073
    %v1075 = vsub.f32 1.0, %v1074
    %v1076 = vmul.f32 %v1073, %v1075
    %v1077 = vadd.f32 %v1073, %v1076
    %vm1078 = vweird.f32 %v1072
    %vm1079 = vweird.f32 %v1073
    %vm1080 = vmor %vm1078, %vm1079
    %v1081 = vsel %vm1080, %v1073, %v1077
    %v1082 = vand.u32 2147483647, %v1072
    %vm1083 = vcmp.eq.f32.partialorder %v1082, 8.507059e+37
    %v1084 = vand.u32 %v1072, 2147483648
    %v1085 = vor.u32 1.1754944e-38, %v1084
    %v1086 = vsel %vm1083, %v1085, %v1081
    %v1087 = vmul.f32 1.0, %v1086
    %v1088 = vtanh.pop %v1068
    %v1089 = vmul.f32 %v1087, %v866
    %1091 = vrot.lane.b32.xlu0 %v1088, 32
    %v1092 = vpop.permute.xlu0 %1091
    %v1094 = vmul.f32 %v1087, %v1092
    %1096 = vrot.lane.b32.xlu0 %v1094, 32
    %v1097 = vpop.permute.xlu0 %1096
    %v1099 = vadd.f32 %v1089, %v1097
    %v1100 = vtanh.pop %v1099
    %1102 = vrot.lane.b32.xlu0 %v1100, 32
    %v1103 = vpop.permute.xlu0 %1102
    %v1105 = vmul.f32 %v1087, %v1103
    %1106 = vmatpush.msra.mxu0 0.0
    %1107 = vmatpush.msra.mxu0 0.0
    %1108 = vmatpush.msra.mxu0 0.0
    %1109 = vmatpush.msra.mxu0 0.0
    %1110 = vmatpush.msra.mxu0 0.0
    %1111 = vmatpush.msra.mxu0 0.0
    %1112 = vmatpush.msra.mxu0 0.0
    %1113 = vmatpush.msra.mxu0 0.0
    %1114 = vmatpush.msra.mxu0 0.0
    %1115 = vmatpush.msra.mxu0 0.0
    %1116 = vmatpush.msra.mxu0 0.0
    %1117 = vmatpush.msra.mxu0 0.0
    %1118 = vmatpush.msra.mxu0 0.0
    %1119 = vmatpush.msra.mxu0 0.0
    %1120 = vmatpush.msra.mxu0 %v38
    %1121 = vmatpush.msra.mxu0 %v37
    %1122 = vmatmul.f32.gmra.mxu0 %v984
    %v1123 = vpop.f32.mrf.mxu0
    %v1124 = vadd.f32 0.0, %v1123
    %1125 = vdwg.mxu0
    %1127 = vrot.lane.b32.xlu0 %v1105, 64
    %v1128 = vpop.permute.xlu0 %1127
    %v1129 = vsel %vm109, %v1128, 0
    %1131 = vmatpush.msra.mxu0 0.0
    %1132 = vmatpush.msra.mxu0 0.0
    %1133 = vmatpush.msra.mxu0 0.0
    %1134 = vmatpush.msra.mxu0 0.0
    %1135 = vmatpush.msra.mxu0 0.0
    %1136 = vmatpush.msra.mxu0 0.0
    %1137 = vmatpush.msra.mxu0 0.0
    %1138 = vmatpush.msra.mxu0 0.0
    %1139 = vmatpush.msra.mxu0 0.0
    %1140 = vmatpush.msra.mxu0 0.0
    %1141 = vmatpush.msra.mxu0 0.0
    %1142 = vmatpush.msra.mxu0 0.0
    %1143 = vmatpush.msra.mxu0 %v36
    %1144 = vmatpush.msra.mxu0 %v35
    %1145 = vmatpush.msra.mxu0 %v34
    %1146 = vmatpush.msra.mxu0 %v33
    %1147 = vmatmul.f32.gmra.mxu0 %v1129
    %v1148 = vpop.f32.mrf.mxu0
    %v1149 = vadd.f32 %v1124, %v1148
    %1150 = vdwg.mxu0
    %v1151 = vadd.f32 %v1149, %v219
    %v1152 = vxor.u32 %v1151, 2147483648
    %v1153 = vmul.f32 %v1152, 1.442695
    %v1154 = vpow.pop %v1153
    %v1155 = vadd.f32 %v1154, 1.0
    %v1156 = vrcp.pop %v1155
    %v1157 = vmul.f32 %v1155, %v1156
    %v1158 = vsub.f32 1.0, %v1157
    %v1159 = vmul.f32 %v1156, %v1158
    %v1160 = vadd.f32 %v1156, %v1159
    %vm1161 = vweird.f32 %v1155
    %vm1162 = vweird.f32 %v1156
    %vm1163 = vmor %vm1161, %vm1162
    %v1164 = vsel %vm1163, %v1156, %v1160
    %v1165 = vand.u32 2147483647, %v1155
    %vm1166 = vcmp.eq.f32.partialorder %v1165, 8.507059e+37
    %v1167 = vand.u32 %v1155, 2147483648
    %v1168 = vor.u32 1.1754944e-38, %v1167
    %v1169 = vsel %vm1166, %v1168, %v1164
    %v1170 = vmul.f32 1.0, %v1169
    %v1171 = vtanh.pop %v1151
    %v1172 = vmul.f32 %v1170, %v949
    %1174 = vrot.lane.b32.xlu0 %v1171, 80
    %v1175 = vpop.permute.xlu0 %1174
    %v1177 = vmul.f32 %v1170, %v1175
    %1179 = vrot.lane.b32.xlu0 %v1177, 16
    %v1180 = vpop.permute.xlu0 %1179
    %v1182 = vadd.f32 %v1172, %v1180
    %v1183 = vtanh.pop %v1182
    %1185 = vrot.lane.b32.xlu0 %v1183, 16
    %v1186 = vpop.permute.xlu0 %1185
    %v1188 = vmul.f32 %v1170, %v1186
    %1190 = vrot.lane.b32.xlu0 %v1043, 112
    %v1191 = vpop.permute.xlu0 %1190
    %v1192 = vsel %vm258, %v1191, 0
    %1194 = vmatpush.msra.mxu0 0.0
    %1195 = vmatpush.msra.mxu0 0.0
    %1196 = vmatpush.msra.mxu0 0.0
    %1197 = vmatpush.msra.mxu0 0.0
    %1198 = vmatpush.msra.mxu0 0.0
    %1199 = vmatpush.msra.mxu0 0.0
    %1200 = vmatpush.msra.mxu0 0.0
    %1201 = vmatpush.msra.mxu0 0.0
    %1202 = vmatpush.msra.mxu0 0.0
    %1203 = vmatpush.msra.mxu0 0.0
    %1204 = vmatpush.msra.mxu0 0.0
    %1205 = vmatpush.msra.mxu0 0.0
    %1206 = vmatpush.msra.mxu0 0.0
    %1207 = vmatpush.msra.mxu0 0.0
    %1208 = vmatpush.msra.mxu0 0.0
    %1209 = vmatpush.msra.mxu0 %v42
    %1210 = vmatmul.f32.gmra.mxu0 %v1192
    %v1211 = vpop.f32.mrf.mxu0
    %v1212 = vadd.f32 0.0, %v1211
    %1213 = vdwg.mxu0
    %1215 = vrot.lane.b32.xlu0 %v1188, 96
    %v1216 = vpop.permute.xlu0 %1215
    %v1217 = vsel %vm171, %v1216, 0
    %1219 = vmatpush.msra.mxu0 0.0
    %1220 = vmatpush.msra.mxu0 0.0
    %1221 = vmatpush.msra.mxu0 0.0
    %1222 = vmatpush.msra.mxu0 0.0
    %1223 = vmatpush.msra.mxu0 0.0
    %1224 = vmatpush.msra.mxu0 0.0
    %1225 = vmatpush.msra.mxu0 0.0
    %1226 = vmatpush.msra.mxu0 0.0
    %1227 = vmatpush.msra.mxu0 0.0
    %1228 = vmatpush.msra.mxu0 0.0
    %1229 = vmatpush.msra.mxu0 0.0
    %1230 = vmatpush.msra.mxu0 0.0
    %1231 = vmatpush.msra.mxu0 0.0
    %1232 = vmatpush.msra.mxu0 0.0
    %1233 = vmatpush.msra.mxu0 %v41
    %1234 = vmatpush.msra.mxu0 %v40
    %1235 = vmatmul.f32.gmra.mxu0 %v1217
    %v1236 = vpop.f32.mrf.mxu0
    %v1237 = vadd.f32 %v1212, %v1236
    %1238 = vdwg.mxu0
    %v1239 = vadd.f32 %v1237, %v306
    %v1240 = vxor.u32 %v1239, 2147483648
    %v1241 = vmul.f32 %v1240, 1.442695
    %v1242 = vpow.pop %v1241
    %v1243 = vadd.f32 %v1242, 1.0
    %v1244 = vrcp.pop %v1243
    %v1245 = vmul.f32 %v1243, %v1244
    %v1246 = vsub.f32 1.0, %v1245
    %v1247 = vmul.f32 %v1244, %v1246
    %v1248 = vadd.f32 %v1244, %v1247
    %vm1249 = vweird.f32 %v1243
    %vm1250 = vweird.f32 %v1244
    %vm1251 = vmor %vm1249, %vm1250
    %v1252 = vsel %vm1251, %v1244, %v1248
    %v1253 = vand.u32 2147483647, %v1243
    %vm1254 = vcmp.eq.f32.partialorder %v1253, 8.507059e+37
    %v1255 = vand.u32 %v1243, 2147483648
    %v1256 = vor.u32 1.1754944e-38, %v1255
    %v1257 = vsel %vm1254, %v1256, %v1252
    %v1258 = vmul.f32 1.0, %v1257
    %v1259 = vtanh.pop %v1239
    %v1260 = vmul.f32 %v1258, %v1037
    %1262 = vrot.lane.b32.xlu0 %v1259, 104
    %v1263 = vpop.permute.xlu0 %1262
    %v1265 = vmul.f32 %v1258, %v1263
    %1267 = vrot.lane.b32.xlu0 %v1265, 8
    %v1268 = vpop.permute.xlu0 %1267
    %v1270 = vadd.f32 %v1260, %v1268
    %v1271 = vtanh.pop %v1270
    %1273 = vrot.lane.b32.xlu0 %v1271, 8
    %v1274 = vpop.permute.xlu0 %1273
    %v1276 = vmul.f32 %v1258, %v1274
    %v1277 = vperm.slane %v92, 5
    %v1278 = vsel %vm101, %v1277, 0.0
    %v1279 = vperm.slane %v95, 5
    %v1280 = vsel %vm106, %v1279, %v1278
    %1281 = vmatpush.msra.mxu0 0.0
    %1282 = vmatpush.msra.mxu0 0.0
    %1283 = vmatpush.msra.mxu0 0.0
    %1284 = vmatpush.msra.mxu0 0.0
    %1285 = vmatpush.msra.mxu0 0.0
    %1286 = vmatpush.msra.mxu0 0.0
    %1287 = vmatpush.msra.mxu0 0.0
    %1288 = vmatpush.msra.mxu0 0.0
    %1289 = vmatpush.msra.mxu0 0.0
    %1290 = vmatpush.msra.mxu0 0.0
    %1291 = vmatpush.msra.mxu0 0.0
    %1292 = vmatpush.msra.mxu0 0.0
    %1293 = vmatpush.msra.mxu0 %v31
    %1294 = vmatpush.msra.mxu0 %v30
    %1295 = vmatpush.msra.mxu0 %v29
    %1296 = vmatpush.msra.mxu0 %v28
    %1297 = vmatmul.f32.gmra.mxu0 %v1129
    %v1298 = vpop.f32.mrf.mxu0
    %v1299 = vadd.f32 0.0, %v1298
    %1300 = vdwg.mxu0
    %v1301 = vadd.f32 %v1280, %v1299
    %v1302 = vxor.u32 %v1301, 2147483648
    %v1303 = vmul.f32 %v1302, 1.442695
    %v1304 = vpow.pop %v1303
    %v1305 = vadd.f32 %v1304, 1.0
    %v1306 = vrcp.pop %v1305
    %v1307 = vmul.f32 %v1305, %v1306
    %v1308 = vsub.f32 1.0, %v1307
    %v1309 = vmul.f32 %v1306, %v1308
    %v1310 = vadd.f32 %v1306, %v1309
    %vm1311 = vweird.f32 %v1305
    %vm1312 = vweird.f32 %v1306
    %vm1313 = vmor %vm1311, %vm1312
    %v1314 = vsel %vm1313, %v1306, %v1310
    %v1315 = vand.u32 2147483647, %v1305
    %vm1316 = vcmp.eq.f32.partialorder %v1315, 8.507059e+37
    %v1317 = vand.u32 %v1305, 2147483648
    %v1318 = vor.u32 1.1754944e-38, %v1317
    %v1319 = vsel %vm1316, %v1318, %v1314
    %v1320 = vmul.f32 1.0, %v1319
    %v1321 = vtanh.pop %v1301
    %v1322 = vmul.f32 %v1320, %v1099
    %1324 = vrot.lane.b32.xlu0 %v1321, 32
    %v1325 = vpop.permute.xlu0 %1324
    %v1327 = vmul.f32 %v1320, %v1325
    %1329 = vrot.lane.b32.xlu0 %v1327, 32
    %v1330 = vpop.permute.xlu0 %1329
    %v1332 = vadd.f32 %v1322, %v1330
    %v1333 = vtanh.pop %v1332
    %1335 = vrot.lane.b32.xlu0 %v1333, 32
    %v1336 = vpop.permute.xlu0 %1335
    %v1338 = vmul.f32 %v1320, %v1336
    %1339 = vmatpush.msra.mxu0 0.0
    %1340 = vmatpush.msra.mxu0 0.0
    %1341 = vmatpush.msra.mxu0 0.0
    %1342 = vmatpush.msra.mxu0 0.0
    %1343 = vmatpush.msra.mxu0 0.0
    %1344 = vmatpush.msra.mxu0 0.0
    %1345 = vmatpush.msra.mxu0 0.0
    %1346 = vmatpush.msra.mxu0 0.0
    %1347 = vmatpush.msra.mxu0 0.0
    %1348 = vmatpush.msra.mxu0 0.0
    %1349 = vmatpush.msra.mxu0 0.0
    %1350 = vmatpush.msra.mxu0 0.0
    %1351 = vmatpush.msra.mxu0 0.0
    %1352 = vmatpush.msra.mxu0 0.0
    %1353 = vmatpush.msra.mxu0 %v38
    %1354 = vmatpush.msra.mxu0 %v37
    %1355 = vmatmul.f32.gmra.mxu0 %v1217
    %v1356 = vpop.f32.mrf.mxu0
    %v1357 = vadd.f32 0.0, %v1356
    %1358 = vdwg.mxu0
    %1360 = vrot.lane.b32.xlu0 %v1338, 64
    %v1361 = vpop.permute.xlu0 %1360
    %v1362 = vsel %vm109, %v1361, 0
    %1364 = vmatpush.msra.mxu0 0.0
    %1365 = vmatpush.msra.mxu0 0.0
    %1366 = vmatpush.msra.mxu0 0.0
    %1367 = vmatpush.msra.mxu0 0.0
    %1368 = vmatpush.msra.mxu0 0.0
    %1369 = vmatpush.msra.mxu0 0.0
    %1370 = vmatpush.msra.mxu0 0.0
    %1371 = vmatpush.msra.mxu0 0.0
    %1372 = vmatpush.msra.mxu0 0.0
    %1373 = vmatpush.msra.mxu0 0.0
    %1374 = vmatpush.msra.mxu0 0.0
    %1375 = vmatpush.msra.mxu0 0.0
    %1376 = vmatpush.msra.mxu0 %v36
    %1377 = vmatpush.msra.mxu0 %v35
    %1378 = vmatpush.msra.mxu0 %v34
    %1379 = vmatpush.msra.mxu0 %v33
    %1380 = vmatmul.f32.gmra.mxu0 %v1362
    %v1381 = vpop.f32.mrf.mxu0
    %v1382 = vadd.f32 %v1357, %v1381
    %1383 = vdwg.mxu0
    %v1384 = vadd.f32 %v1382, %v219
    %v1385 = vxor.u32 %v1384, 2147483648
    %v1386 = vmul.f32 %v1385, 1.442695
    %v1387 = vpow.pop %v1386
    %v1388 = vadd.f32 %v1387, 1.0
    %v1389 = vrcp.pop %v1388
    %v1390 = vmul.f32 %v1388, %v1389
    %v1391 = vsub.f32 1.0, %v1390
    %v1392 = vmul.f32 %v1389, %v1391
    %v1393 = vadd.f32 %v1389, %v1392
    %vm1394 = vweird.f32 %v1388
    %vm1395 = vweird.f32 %v1389
    %vm1396 = vmor %vm1394, %vm1395
    %v1397 = vsel %vm1396, %v1389, %v1393
    %v1398 = vand.u32 2147483647, %v1388
    %vm1399 = vcmp.eq.f32.partialorder %v1398, 8.507059e+37
    %v1400 = vand.u32 %v1388, 2147483648
    %v1401 = vor.u32 1.1754944e-38, %v1400
    %v1402 = vsel %vm1399, %v1401, %v1397
    %v1403 = vmul.f32 1.0, %v1402
    %v1404 = vtanh.pop %v1384
    %v1405 = vmul.f32 %v1403, %v1182
    %1407 = vrot.lane.b32.xlu0 %v1404, 80
    %v1408 = vpop.permute.xlu0 %1407
    %v1410 = vmul.f32 %v1403, %v1408
    %1412 = vrot.lane.b32.xlu0 %v1410, 16
    %v1413 = vpop.permute.xlu0 %1412
    %v1415 = vadd.f32 %v1405, %v1413
    %v1416 = vtanh.pop %v1415
    %1418 = vrot.lane.b32.xlu0 %v1416, 16
    %v1419 = vpop.permute.xlu0 %1418
    %v1421 = vmul.f32 %v1403, %v1419
    %1423 = vrot.lane.b32.xlu0 %v1276, 112
    %v1424 = vpop.permute.xlu0 %1423
    %v1425 = vsel %vm258, %v1424, 0
    %1427 = vmatpush.msra.mxu0 0.0
    %1428 = vmatpush.msra.mxu0 0.0
    %1429 = vmatpush.msra.mxu0 0.0
    %1430 = vmatpush.msra.mxu0 0.0
    %1431 = vmatpush.msra.mxu0 0.0
    %1432 = vmatpush.msra.mxu0 0.0
    %1433 = vmatpush.msra.mxu0 0.0
    %1434 = vmatpush.msra.mxu0 0.0
    %1435 = vmatpush.msra.mxu0 0.0
    %1436 = vmatpush.msra.mxu0 0.0
    %1437 = vmatpush.msra.mxu0 0.0
    %1438 = vmatpush.msra.mxu0 0.0
    %1439 = vmatpush.msra.mxu0 0.0
    %1440 = vmatpush.msra.mxu0 0.0
    %1441 = vmatpush.msra.mxu0 0.0
    %1442 = vmatpush.msra.mxu0 %v42
    %1443 = vmatmul.f32.gmra.mxu0 %v1425
    %v1444 = vpop.f32.mrf.mxu0
    %v1445 = vadd.f32 0.0, %v1444
    %1446 = vdwg.mxu0
    %1448 = vrot.lane.b32.xlu0 %v1421, 96
    %v1449 = vpop.permute.xlu0 %1448
    %v1450 = vsel %vm171, %v1449, 0
    %1452 = vmatpush.msra.mxu0 0.0
    %1453 = vmatpush.msra.mxu0 0.0
    %1454 = vmatpush.msra.mxu0 0.0
    %1455 = vmatpush.msra.mxu0 0.0
    %1456 = vmatpush.msra.mxu0 0.0
    %1457 = vmatpush.msra.mxu0 0.0
    %1458 = vmatpush.msra.mxu0 0.0
    %1459 = vmatpush.msra.mxu0 0.0
    %1460 = vmatpush.msra.mxu0 0.0
    %1461 = vmatpush.msra.mxu0 0.0
    %1462 = vmatpush.msra.mxu0 0.0
    %1463 = vmatpush.msra.mxu0 0.0
    %1464 = vmatpush.msra.mxu0 0.0
    %1465 = vmatpush.msra.mxu0 0.0
    %1466 = vmatpush.msra.mxu0 %v41
    %1467 = vmatpush.msra.mxu0 %v40
    %1468 = vmatmul.f32.gmra.mxu0 %v1450
    %v1469 = vpop.f32.mrf.mxu0
    %v1470 = vadd.f32 %v1445, %v1469
    %1471 = vdwg.mxu0
    %v1472 = vadd.f32 %v1470, %v306
    %v1473 = vxor.u32 %v1472, 2147483648
    %v1474 = vmul.f32 %v1473, 1.442695
    %v1475 = vpow.pop %v1474
    %v1476 = vadd.f32 %v1475, 1.0
    %v1477 = vrcp.pop %v1476
    %v1478 = vmul.f32 %v1476, %v1477
    %v1479 = vsub.f32 1.0, %v1478
    %v1480 = vmul.f32 %v1477, %v1479
    %v1481 = vadd.f32 %v1477, %v1480
    %vm1482 = vweird.f32 %v1476
    %vm1483 = vweird.f32 %v1477
    %vm1484 = vmor %vm1482, %vm1483
    %v1485 = vsel %vm1484, %v1477, %v1481
    %v1486 = vand.u32 2147483647, %v1476
    %vm1487 = vcmp.eq.f32.partialorder %v1486, 8.507059e+37
    %v1488 = vand.u32 %v1476, 2147483648
    %v1489 = vor.u32 1.1754944e-38, %v1488
    %v1490 = vsel %vm1487, %v1489, %v1485
    %v1491 = vmul.f32 1.0, %v1490
    %v1492 = vtanh.pop %v1472
    %v1493 = vmul.f32 %v1491, %v1270
    %1495 = vrot.lane.b32.xlu0 %v1492, 104
    %v1496 = vpop.permute.xlu0 %1495
    %v1498 = vmul.f32 %v1491, %v1496
    %1500 = vrot.lane.b32.xlu0 %v1498, 8
    %v1501 = vpop.permute.xlu0 %1500
    %v1503 = vadd.f32 %v1493, %v1501
    %v1504 = vtanh.pop %v1503
    %1506 = vrot.lane.b32.xlu0 %v1504, 8
    %v1507 = vpop.permute.xlu0 %1506
    %v1509 = vmul.f32 %v1491, %v1507
    %v1510 = vperm.slane %v92, 6
    %v1511 = vsel %vm101, %v1510, 0.0
    %v1512 = vperm.slane %v95, 6
    %v1513 = vsel %vm106, %v1512, %v1511
    %1514 = vmatpush.msra.mxu0 0.0
    %1515 = vmatpush.msra.mxu0 0.0
    %1516 = vmatpush.msra.mxu0 0.0
    %1517 = vmatpush.msra.mxu0 0.0
    %1518 = vmatpush.msra.mxu0 0.0
    %1519 = vmatpush.msra.mxu0 0.0
    %1520 = vmatpush.msra.mxu0 0.0
    %1521 = vmatpush.msra.mxu0 0.0
    %1522 = vmatpush.msra.mxu0 0.0
    %1523 = vmatpush.msra.mxu0 0.0
    %1524 = vmatpush.msra.mxu0 0.0
    %1525 = vmatpush.msra.mxu0 0.0
    %1526 = vmatpush.msra.mxu0 %v31
    %1527 = vmatpush.msra.mxu0 %v30
    %1528 = vmatpush.msra.mxu0 %v29
    %1529 = vmatpush.msra.mxu0 %v28
    %1530 = vmatmul.f32.gmra.mxu0 %v1362
    %v1531 = vpop.f32.mrf.mxu0
    %v1532 = vadd.f32 0.0, %v1531
    %1533 = vdwg.mxu0
    %v1534 = vadd.f32 %v1513, %v1532
    %v1535 = vxor.u32 %v1534, 2147483648
    %v1536 = vmul.f32 %v1535, 1.442695
    %v1537 = vpow.pop %v1536
    %v1538 = vadd.f32 %v1537, 1.0
    %v1539 = vrcp.pop %v1538
    %v1540 = vmul.f32 %v1538, %v1539
    %v1541 = vsub.f32 1.0, %v1540
    %v1542 = vmul.f32 %v1539, %v1541
    %v1543 = vadd.f32 %v1539, %v1542
    %vm1544 = vweird.f32 %v1538
    %vm1545 = vweird.f32 %v1539
    %vm1546 = vmor %vm1544, %vm1545
    %v1547 = vsel %vm1546, %v1539, %v1543
    %v1548 = vand.u32 2147483647, %v1538
    %vm1549 = vcmp.eq.f32.partialorder %v1548, 8.507059e+37
    %v1550 = vand.u32 %v1538, 2147483648
    %v1551 = vor.u32 1.1754944e-38, %v1550
    %v1552 = vsel %vm1549, %v1551, %v1547
    %v1553 = vmul.f32 1.0, %v1552
    %v1554 = vtanh.pop %v1534
    %v1555 = vmul.f32 %v1553, %v1332
    %1557 = vrot.lane.b32.xlu0 %v1554, 32
    %v1558 = vpop.permute.xlu0 %1557
    %v1560 = vmul.f32 %v1553, %v1558
    %1562 = vrot.lane.b32.xlu0 %v1560, 32
    %v1563 = vpop.permute.xlu0 %1562
    %v1565 = vadd.f32 %v1555, %v1563
    %v1566 = vtanh.pop %v1565
    %1568 = vrot.lane.b32.xlu0 %v1566, 32
    %v1569 = vpop.permute.xlu0 %1568
    %v1571 = vmul.f32 %v1553, %v1569
    %1572 = vmatpush.msra.mxu0 0.0
    %1573 = vmatpush.msra.mxu0 0.0
    %1574 = vmatpush.msra.mxu0 0.0
    %1575 = vmatpush.msra.mxu0 0.0
    %1576 = vmatpush.msra.mxu0 0.0
    %1577 = vmatpush.msra.mxu0 0.0
    %1578 = vmatpush.msra.mxu0 0.0
    %1579 = vmatpush.msra.mxu0 0.0
    %1580 = vmatpush.msra.mxu0 0.0
    %1581 = vmatpush.msra.mxu0 0.0
    %1582 = vmatpush.msra.mxu0 0.0
    %1583 = vmatpush.msra.mxu0 0.0
    %1584 = vmatpush.msra.mxu0 0.0
    %1585 = vmatpush.msra.mxu0 0.0
    %1586 = vmatpush.msra.mxu0 %v38
    %1587 = vmatpush.msra.mxu0 %v37
    %1588 = vmatmul.f32.gmra.mxu0 %v1450
    %v1589 = vpop.f32.mrf.mxu0
    %v1590 = vadd.f32 0.0, %v1589
    %1591 = vdwg.mxu0
    %1593 = vrot.lane.b32.xlu0 %v1571, 64
    %v1594 = vpop.permute.xlu0 %1593
    %v1595 = vsel %vm109, %v1594, 0
    %1597 = vmatpush.msra.mxu0 0.0
    %1598 = vmatpush.msra.mxu0 0.0
    %1599 = vmatpush.msra.mxu0 0.0
    %1600 = vmatpush.msra.mxu0 0.0
    %1601 = vmatpush.msra.mxu0 0.0
    %1602 = vmatpush.msra.mxu0 0.0
    %1603 = vmatpush.msra.mxu0 0.0
    %1604 = vmatpush.msra.mxu0 0.0
    %1605 = vmatpush.msra.mxu0 0.0
    %1606 = vmatpush.msra.mxu0 0.0
    %1607 = vmatpush.msra.mxu0 0.0
    %1608 = vmatpush.msra.mxu0 0.0
    %1609 = vmatpush.msra.mxu0 %v36
    %1610 = vmatpush.msra.mxu0 %v35
    %1611 = vmatpush.msra.mxu0 %v34
    %1612 = vmatpush.msra.mxu0 %v33
    %1613 = vmatmul.f32.gmra.mxu0 %v1595
    %v1614 = vpop.f32.mrf.mxu0
    %v1615 = vadd.f32 %v1590, %v1614
    %1616 = vdwg.mxu0
    %v1617 = vadd.f32 %v1615, %v219
    %v1618 = vxor.u32 %v1617, 2147483648
    %v1619 = vmul.f32 %v1618, 1.442695
    %v1620 = vpow.pop %v1619
    %v1621 = vadd.f32 %v1620, 1.0
    %v1622 = vrcp.pop %v1621
    %v1623 = vmul.f32 %v1621, %v1622
    %v1624 = vsub.f32 1.0, %v1623
    %v1625 = vmul.f32 %v1622, %v1624
    %v1626 = vadd.f32 %v1622, %v1625
    %vm1627 = vweird.f32 %v1621
    %vm1628 = vweird.f32 %v1622
    %vm1629 = vmor %vm1627, %vm1628
    %v1630 = vsel %vm1629, %v1622, %v1626
    %v1631 = vand.u32 2147483647, %v1621
    %vm1632 = vcmp.eq.f32.partialorder %v1631, 8.507059e+37
    %v1633 = vand.u32 %v1621, 2147483648
    %v1634 = vor.u32 1.1754944e-38, %v1633
    %v1635 = vsel %vm1632, %v1634, %v1630
    %v1636 = vmul.f32 1.0, %v1635
    %v1637 = vtanh.pop %v1617
    %v1638 = vmul.f32 %v1636, %v1415
    %1640 = vrot.lane.b32.xlu0 %v1637, 80
    %v1641 = vpop.permute.xlu0 %1640
    %v1643 = vmul.f32 %v1636, %v1641
    %1645 = vrot.lane.b32.xlu0 %v1643, 16
    %v1646 = vpop.permute.xlu0 %1645
    %v1648 = vadd.f32 %v1638, %v1646
    %v1649 = vtanh.pop %v1648
    %1651 = vrot.lane.b32.xlu0 %v1649, 16
    %v1652 = vpop.permute.xlu0 %1651
    %v1654 = vmul.f32 %v1636, %v1652
    %1656 = vrot.lane.b32.xlu0 %v1509, 112
    %v1657 = vpop.permute.xlu0 %1656
    %v1658 = vsel %vm258, %v1657, 0
    %1660 = vmatpush.msra.mxu0 0.0
    %1661 = vmatpush.msra.mxu0 0.0
    %1662 = vmatpush.msra.mxu0 0.0
    %1663 = vmatpush.msra.mxu0 0.0
    %1664 = vmatpush.msra.mxu0 0.0
    %1665 = vmatpush.msra.mxu0 0.0
    %1666 = vmatpush.msra.mxu0 0.0
    %1667 = vmatpush.msra.mxu0 0.0
    %1668 = vmatpush.msra.mxu0 0.0
    %1669 = vmatpush.msra.mxu0 0.0
    %1670 = vmatpush.msra.mxu0 0.0
    %1671 = vmatpush.msra.mxu0 0.0
    %1672 = vmatpush.msra.mxu0 0.0
    %1673 = vmatpush.msra.mxu0 0.0
    %1674 = vmatpush.msra.mxu0 0.0
    %1675 = vmatpush.msra.mxu0 %v42
    %1676 = vmatmul.f32.gmra.mxu0 %v1658
    %v1677 = vpop.f32.mrf.mxu0
    %v1678 = vadd.f32 0.0, %v1677
    %1679 = vdwg.mxu0
    %1681 = vrot.lane.b32.xlu0 %v1654, 96
    %v1682 = vpop.permute.xlu0 %1681
    %v1683 = vsel %vm171, %v1682, 0
    %1685 = vmatpush.msra.mxu0 0.0
    %1686 = vmatpush.msra.mxu0 0.0
    %1687 = vmatpush.msra.mxu0 0.0
    %1688 = vmatpush.msra.mxu0 0.0
    %1689 = vmatpush.msra.mxu0 0.0
    %1690 = vmatpush.msra.mxu0 0.0
    %1691 = vmatpush.msra.mxu0 0.0
    %1692 = vmatpush.msra.mxu0 0.0
    %1693 = vmatpush.msra.mxu0 0.0
    %1694 = vmatpush.msra.mxu0 0.0
    %1695 = vmatpush.msra.mxu0 0.0
    %1696 = vmatpush.msra.mxu0 0.0
    %1697 = vmatpush.msra.mxu0 0.0
    %1698 = vmatpush.msra.mxu0 0.0
    %1699 = vmatpush.msra.mxu0 %v41
    %1700 = vmatpush.msra.mxu0 %v40
    %1701 = vmatmul.f32.gmra.mxu0 %v1683
    %v1702 = vpop.f32.mrf.mxu0
    %v1703 = vadd.f32 %v1678, %v1702
    %1704 = vdwg.mxu0
    %v1705 = vadd.f32 %v1703, %v306
    %v1706 = vxor.u32 %v1705, 2147483648
    %v1707 = vmul.f32 %v1706, 1.442695
    %v1708 = vpow.pop %v1707
    %v1709 = vadd.f32 %v1708, 1.0
    %v1710 = vrcp.pop %v1709
    %v1711 = vmul.f32 %v1709, %v1710
    %v1712 = vsub.f32 1.0, %v1711
    %v1713 = vmul.f32 %v1710, %v1712
    %v1714 = vadd.f32 %v1710, %v1713
    %vm1715 = vweird.f32 %v1709
    %vm1716 = vweird.f32 %v1710
    %vm1717 = vmor %vm1715, %vm1716
    %v1718 = vsel %vm1717, %v1710, %v1714
    %v1719 = vand.u32 2147483647, %v1709
    %vm1720 = vcmp.eq.f32.partialorder %v1719, 8.507059e+37
    %v1721 = vand.u32 %v1709, 2147483648
    %v1722 = vor.u32 1.1754944e-38, %v1721
    %v1723 = vsel %vm1720, %v1722, %v1718
    %v1724 = vmul.f32 1.0, %v1723
    %v1725 = vtanh.pop %v1705
    %v1726 = vmul.f32 %v1724, %v1503
    %1728 = vrot.lane.b32.xlu0 %v1725, 104
    %v1729 = vpop.permute.xlu0 %1728
    %v1731 = vmul.f32 %v1724, %v1729
    %1733 = vrot.lane.b32.xlu0 %v1731, 8
    %v1734 = vpop.permute.xlu0 %1733
    %v1736 = vadd.f32 %v1726, %v1734
    %v1737 = vtanh.pop %v1736
    %1739 = vrot.lane.b32.xlu0 %v1737, 8
    %v1740 = vpop.permute.xlu0 %1739
    %v1742 = vmul.f32 %v1724, %v1740
    %v1743 = vperm.slane %v92, 7
    %v1744 = vsel %vm101, %v1743, 0.0
    %v1745 = vperm.slane %v95, 7
    %v1746 = vsel %vm106, %v1745, %v1744
    %1747 = vmatpush.msra.mxu0 0.0
    %1748 = vmatpush.msra.mxu0 0.0
    %1749 = vmatpush.msra.mxu0 0.0
    %1750 = vmatpush.msra.mxu0 0.0
    %1751 = vmatpush.msra.mxu0 0.0
    %1752 = vmatpush.msra.mxu0 0.0
    %1753 = vmatpush.msra.mxu0 0.0
    %1754 = vmatpush.msra.mxu0 0.0
    %1755 = vmatpush.msra.mxu0 0.0
    %1756 = vmatpush.msra.mxu0 0.0
    %1757 = vmatpush.msra.mxu0 0.0
    %1758 = vmatpush.msra.mxu0 0.0
    %1759 = vmatpush.msra.mxu0 %v31
    %1760 = vmatpush.msra.mxu0 %v30
    %1761 = vmatpush.msra.mxu0 %v29
    %1762 = vmatpush.msra.mxu0 %v28
    %1763 = vmatmul.f32.gmra.mxu0 %v1595
    %v1764 = vpop.f32.mrf.mxu0
    %v1765 = vadd.f32 0.0, %v1764
    %1766 = vdwg.mxu0
    %v1767 = vadd.f32 %v1746, %v1765
    %v1768 = vxor.u32 %v1767, 2147483648
    %v1769 = vmul.f32 %v1768, 1.442695
    %v1770 = vpow.pop %v1769
    %v1771 = vadd.f32 %v1770, 1.0
    %v1772 = vrcp.pop %v1771
    %v1773 = vmul.f32 %v1771, %v1772
    %v1774 = vsub.f32 1.0, %v1773
    %v1775 = vmul.f32 %v1772, %v1774
    %v1776 = vadd.f32 %v1772, %v1775
    %vm1777 = vweird.f32 %v1771
    %vm1778 = vweird.f32 %v1772
    %vm1779 = vmor %vm1777, %vm1778
    %v1780 = vsel %vm1779, %v1772, %v1776
    %v1781 = vand.u32 2147483647, %v1771
    %vm1782 = vcmp.eq.f32.partialorder %v1781, 8.507059e+37
    %v1783 = vand.u32 %v1771, 2147483648
    %v1784 = vor.u32 1.1754944e-38, %v1783
    %v1785 = vsel %vm1782, %v1784, %v1780
    %v1786 = vmul.f32 1.0, %v1785
    %v1787 = vtanh.pop %v1767
    %v1788 = vmul.f32 %v1786, %v1565
    %1790 = vrot.lane.b32.xlu0 %v1787, 32
    %v1791 = vpop.permute.xlu0 %1790
    %v1793 = vmul.f32 %v1786, %v1791
    %1795 = vrot.lane.b32.xlu0 %v1793, 32
    %v1796 = vpop.permute.xlu0 %1795
    %v1798 = vadd.f32 %v1788, %v1796
    %v1799 = vtanh.pop %v1798
    %1801 = vrot.lane.b32.xlu0 %v1799, 32
    %v1802 = vpop.permute.xlu0 %1801
    %v1804 = vmul.f32 %v1786, %v1802
    %1805 = vmatpush.msra.mxu0 0.0
    %1806 = vmatpush.msra.mxu0 0.0
    %1807 = vmatpush.msra.mxu0 0.0
    %1808 = vmatpush.msra.mxu0 0.0
    %1809 = vmatpush.msra.mxu0 0.0
    %1810 = vmatpush.msra.mxu0 0.0
    %1811 = vmatpush.msra.mxu0 0.0
    %1812 = vmatpush.msra.mxu0 0.0
    %1813 = vmatpush.msra.mxu0 0.0
    %1814 = vmatpush.msra.mxu0 0.0
    %1815 = vmatpush.msra.mxu0 0.0
    %1816 = vmatpush.msra.mxu0 0.0
    %1817 = vmatpush.msra.mxu0 0.0
    %1818 = vmatpush.msra.mxu0 0.0
    %1819 = vmatpush.msra.mxu0 %v38
    %1820 = vmatpush.msra.mxu0 %v37
    %1821 = vmatmul.f32.gmra.mxu0 %v1683
    %v1822 = vpop.f32.mrf.mxu0
    %v1823 = vadd.f32 0.0, %v1822
    %1824 = vdwg.mxu0
    %1826 = vrot.lane.b32.xlu0 %v1804, 64
    %v1827 = vpop.permute.xlu0 %1826
    %v1828 = vsel %vm109, %v1827, 0
    %1830 = vmatpush.msra.mxu0 0.0
    %1831 = vmatpush.msra.mxu0 0.0
    %1832 = vmatpush.msra.mxu0 0.0
    %1833 = vmatpush.msra.mxu0 0.0
    %1834 = vmatpush.msra.mxu0 0.0
    %1835 = vmatpush.msra.mxu0 0.0
    %1836 = vmatpush.msra.mxu0 0.0
    %1837 = vmatpush.msra.mxu0 0.0
    %1838 = vmatpush.msra.mxu0 0.0
    %1839 = vmatpush.msra.mxu0 0.0
    %1840 = vmatpush.msra.mxu0 0.0
    %1841 = vmatpush.msra.mxu0 0.0
    %1842 = vmatpush.msra.mxu0 %v36
    %1843 = vmatpush.msra.mxu0 %v35
    %1844 = vmatpush.msra.mxu0 %v34
    %1845 = vmatpush.msra.mxu0 %v33
    %1846 = vmatmul.f32.gmra.mxu0 %v1828
    %v1847 = vpop.f32.mrf.mxu0
    %v1848 = vadd.f32 %v1823, %v1847
    %1849 = vdwg.mxu0
    %v1850 = vadd.f32 %v1848, %v219
    %v1851 = vxor.u32 %v1850, 2147483648
    %v1852 = vmul.f32 %v1851, 1.442695
    %v1853 = vpow.pop %v1852
    %v1854 = vadd.f32 %v1853, 1.0
    %v1855 = vrcp.pop %v1854
    %v1856 = vmul.f32 %v1854, %v1855
    %v1857 = vsub.f32 1.0, %v1856
    %v1858 = vmul.f32 %v1855, %v1857
    %v1859 = vadd.f32 %v1855, %v1858
    %vm1860 = vweird.f32 %v1854
    %vm1861 = vweird.f32 %v1855
    %vm1862 = vmor %vm1860, %vm1861
    %v1863 = vsel %vm1862, %v1855, %v1859
    %v1864 = vand.u32 2147483647, %v1854
    %vm1865 = vcmp.eq.f32.partialorder %v1864, 8.507059e+37
    %v1866 = vand.u32 %v1854, 2147483648
    %v1867 = vor.u32 1.1754944e-38, %v1866
    %v1868 = vsel %vm1865, %v1867, %v1863
    %v1869 = vmul.f32 1.0, %v1868
    %v1870 = vtanh.pop %v1850
    %v1871 = vmul.f32 %v1869, %v1648
    %1873 = vrot.lane.b32.xlu0 %v1870, 80
    %v1874 = vpop.permute.xlu0 %1873
    %v1876 = vmul.f32 %v1869, %v1874
    %1878 = vrot.lane.b32.xlu0 %v1876, 16
    %v1879 = vpop.permute.xlu0 %1878
    %v1881 = vadd.f32 %v1871, %v1879
    %v1882 = vtanh.pop %v1881
    %1884 = vrot.lane.b32.xlu0 %v1882, 16
    %v1885 = vpop.permute.xlu0 %1884
    %v1887 = vmul.f32 %v1869, %v1885
    %1889 = vrot.lane.b32.xlu0 %v1742, 112
    %v1890 = vpop.permute.xlu0 %1889
    %v1891 = vsel %vm258, %v1890, 0
    %1893 = vmatpush.msra.mxu0 0.0
    %1894 = vmatpush.msra.mxu0 0.0
    %1895 = vmatpush.msra.mxu0 0.0
    %1896 = vmatpush.msra.mxu0 0.0
    %1897 = vmatpush.msra.mxu0 0.0
    %1898 = vmatpush.msra.mxu0 0.0
    %1899 = vmatpush.msra.mxu0 0.0
    %1900 = vmatpush.msra.mxu0 0.0
    %1901 = vmatpush.msra.mxu0 0.0
    %1902 = vmatpush.msra.mxu0 0.0
    %1903 = vmatpush.msra.mxu0 0.0
    %1904 = vmatpush.msra.mxu0 0.0
    %1905 = vmatpush.msra.mxu0 0.0
    %1906 = vmatpush.msra.mxu0 0.0
    %1907 = vmatpush.msra.mxu0 0.0
    %1908 = vmatpush.msra.mxu0 %v42
    %1909 = vmatmul.f32.gmra.mxu0 %v1891
    %v1910 = vpop.f32.mrf.mxu0
    %v1911 = vadd.f32 0.0, %v1910
    %1912 = vdwg.mxu0
    %1914 = vrot.lane.b32.xlu0 %v1887, 96
    %v1915 = vpop.permute.xlu0 %1914
    %v1916 = vsel %vm171, %v1915, 0
    %1918 = vmatpush.msra.mxu0 0.0
    %1919 = vmatpush.msra.mxu0 0.0
    %1920 = vmatpush.msra.mxu0 0.0
    %1921 = vmatpush.msra.mxu0 0.0
    %1922 = vmatpush.msra.mxu0 0.0
    %1923 = vmatpush.msra.mxu0 0.0
    %1924 = vmatpush.msra.mxu0 0.0
    %1925 = vmatpush.msra.mxu0 0.0
    %1926 = vmatpush.msra.mxu0 0.0
    %1927 = vmatpush.msra.mxu0 0.0
    %1928 = vmatpush.msra.mxu0 0.0
    %1929 = vmatpush.msra.mxu0 0.0
    %1930 = vmatpush.msra.mxu0 0.0
    %1931 = vmatpush.msra.mxu0 0.0
    %1932 = vmatpush.msra.mxu0 %v41
    %1933 = vmatpush.msra.mxu0 %v40
    %1934 = vmatmul.f32.gmra.mxu0 %v1916
    %v1935 = vpop.f32.mrf.mxu0
    %v1936 = vadd.f32 %v1911, %v1935
    %1937 = vdwg.mxu0
    %v1938 = vadd.f32 %v1936, %v306
    %v1939 = vxor.u32 %v1938, 2147483648
    %v1940 = vmul.f32 %v1939, 1.442695
    %v1941 = vpow.pop %v1940
    %v1942 = vadd.f32 %v1941, 1.0
    %v1943 = vrcp.pop %v1942
    %v1944 = vmul.f32 %v1942, %v1943
    %v1945 = vsub.f32 1.0, %v1944
    %v1946 = vmul.f32 %v1943, %v1945
    %v1947 = vadd.f32 %v1943, %v1946
    %vm1948 = vweird.f32 %v1942
    %vm1949 = vweird.f32 %v1943
    %vm1950 = vmor %vm1948, %vm1949
    %v1951 = vsel %vm1950, %v1943, %v1947
    %v1952 = vand.u32 2147483647, %v1942
    %vm1953 = vcmp.eq.f32.partialorder %v1952, 8.507059e+37
    %v1954 = vand.u32 %v1942, 2147483648
    %v1955 = vor.u32 1.1754944e-38, %v1954
    %v1956 = vsel %vm1953, %v1955, %v1951
    %v1957 = vmul.f32 1.0, %v1956
    %v1958 = vtanh.pop %v1938
    %v1959 = vmul.f32 %v1957, %v1736
    %1961 = vrot.lane.b32.xlu0 %v1958, 104
    %v1962 = vpop.permute.xlu0 %1961
    %v1964 = vmul.f32 %v1957, %v1962
    %1966 = vrot.lane.b32.xlu0 %v1964, 8
    %v1967 = vpop.permute.xlu0 %1966
    %v1969 = vadd.f32 %v1959, %v1967
    %v1970 = vtanh.pop %v1969
    %1972 = vrot.lane.b32.xlu0 %v1970, 8
    %v1973 = vpop.permute.xlu0 %1972
    %v1975 = vmul.f32 %v1957, %v1973
    %v1976 = vperm.slane %v1975, 0
    %v1977 = vsel %vm101, %v1976, 0.0
    %v1978 = vsel %vm106, %v1976, %v1977
    %1979 = vmatpush.msra.mxu0 0.0
    %1980 = vmatpush.msra.mxu0 0.0
    %1981 = vmatpush.msra.mxu0 0.0
    %1982 = vmatpush.msra.mxu0 0.0
    %1983 = vmatpush.msra.mxu0 0.0
    %1984 = vmatpush.msra.mxu0 0.0
    %1985 = vmatpush.msra.mxu0 0.0
    %1986 = vmatpush.msra.mxu0 0.0
    %1987 = vmatpush.msra.mxu0 0.0
    %1988 = vmatpush.msra.mxu0 0.0
    %1989 = vmatpush.msra.mxu0 0.0
    %1990 = vmatpush.msra.mxu0 0.0
    %1991 = vmatpush.msra.mxu0 0.0
    %1992 = vmatpush.msra.mxu0 0.0
    %1993 = vmatpush.msra.mxu0 %v46
    %1994 = vmatpush.msra.mxu0 %v45
    %1995 = vmatmul.f32.gmra.mxu0 %v172
    %v1996 = vpop.f32.mrf.mxu0
    %v1997 = vadd.f32 0.0, %v1996
    %1998 = vdwg.mxu0
    %2000 = vrot.lane.b32.xlu0 %v1978, 112
    %v2001 = vpop.permute.xlu0 %2000
    %v2002 = vsel %vm258, %v2001, 0
    %2004 = vmatpush.msra.mxu0 0.0
    %2005 = vmatpush.msra.mxu0 0.0
    %2006 = vmatpush.msra.mxu0 0.0
    %2007 = vmatpush.msra.mxu0 0.0
    %2008 = vmatpush.msra.mxu0 0.0
    %2009 = vmatpush.msra.mxu0 0.0
    %2010 = vmatpush.msra.mxu0 0.0
    %2011 = vmatpush.msra.mxu0 0.0
    %2012 = vmatpush.msra.mxu0 0.0
    %2013 = vmatpush.msra.mxu0 0.0
    %2014 = vmatpush.msra.mxu0 0.0
    %2015 = vmatpush.msra.mxu0 0.0
    %2016 = vmatpush.msra.mxu0 0.0
    %2017 = vmatpush.msra.mxu0 0.0
    %2018 = vmatpush.msra.mxu0 0.0
    %2019 = vmatpush.msra.mxu0 %v44
    %2020 = vmatmul.f32.gmra.mxu0 %v2002
    %v2021 = vpop.f32.mrf.mxu0
    %v2022 = vadd.f32 %v1997, %v2021
    %2023 = vdwg.mxu0
    %v2024 = vperm.slane %v47, 0
    %v2025 = vadd.f32 %v2022, %v2024
    %v2026 = vxor.u32 %v2025, 2147483648
    %v2027 = vmul.f32 %v2026, 1.442695
    %v2028 = vpow.pop %v2027
    %v2029 = vadd.f32 %v2028, 1.0
    %v2030 = vrcp.pop %v2029
    %v2031 = vmul.f32 %v2029, %v2030
    %v2032 = vsub.f32 1.0, %v2031
    %v2033 = vmul.f32 %v2030, %v2032
    %v2034 = vadd.f32 %v2030, %v2033
    %vm2035 = vweird.f32 %v2029
    %vm2036 = vweird.f32 %v2030
    %vm2037 = vmor %vm2035, %vm2036
    %v2038 = vsel %vm2037, %v2030, %v2034
    %v2039 = vand.u32 2147483647, %v2029
    %vm2040 = vcmp.eq.f32.partialorder %v2039, 8.507059e+37
    %v2041 = vand.u32 %v2029, 2147483648
    %v2042 = vor.u32 1.1754944e-38, %v2041
    %v2043 = vsel %vm2040, %v2042, %v2038
    %v2044 = vmul.f32 1.0, %v2043
    %v2045 = vtanh.pop %v2025
    %v2046 = vmul.f32 %v2044, 0.0
    %2048 = vrot.lane.b32.xlu0 %v2045, 80
    %v2049 = vpop.permute.xlu0 %2048
    %v2051 = vmul.f32 %v2044, %v2049
    %2053 = vrot.lane.b32.xlu0 %v2051, 16
    %v2054 = vpop.permute.xlu0 %2053
    %v2056 = vadd.f32 %v2046, %v2054
    %v2057 = vtanh.pop %v2056
    %2059 = vrot.lane.b32.xlu0 %v2057, 16
    %v2060 = vpop.permute.xlu0 %2059
    %v2062 = vmul.f32 %v2044, %v2060
    %2063 = vmatpush.msra.mxu0 0.0
    %2064 = vmatpush.msra.mxu0 0.0
    %2065 = vmatpush.msra.mxu0 0.0
    %2066 = vmatpush.msra.mxu0 0.0
    %2067 = vmatpush.msra.mxu0 0.0
    %2068 = vmatpush.msra.mxu0 0.0
    %2069 = vmatpush.msra.mxu0 0.0
    %2070 = vmatpush.msra.mxu0 0.0
    %2071 = vmatpush.msra.mxu0 0.0
    %2072 = vmatpush.msra.mxu0 0.0
    %2073 = vmatpush.msra.mxu0 0.0
    %2074 = vmatpush.msra.mxu0 0.0
    %2075 = vmatpush.msra.mxu0 %v53
    %2076 = vmatpush.msra.mxu0 %v52
    %2077 = vmatpush.msra.mxu0 %v51
    %2078 = vmatpush.msra.mxu0 %v50
    %2079 = vmatmul.f32.gmra.mxu0 %v111
    %v2080 = vpop.f32.mrf.mxu0
    %v2081 = vadd.f32 0.0, %v2080
    %2082 = vdwg.mxu0
    %2084 = vrot.lane.b32.xlu0 %v2062, 96
    %v2085 = vpop.permute.xlu0 %2084
    %v2086 = vsel %vm171, %v2085, 0
    %2088 = vmatpush.msra.mxu0 0.0
    %2089 = vmatpush.msra.mxu0 0.0
    %2090 = vmatpush.msra.mxu0 0.0
    %2091 = vmatpush.msra.mxu0 0.0
    %2092 = vmatpush.msra.mxu0 0.0
    %2093 = vmatpush.msra.mxu0 0.0
    %2094 = vmatpush.msra.mxu0 0.0
    %2095 = vmatpush.msra.mxu0 0.0
    %2096 = vmatpush.msra.mxu0 0.0
    %2097 = vmatpush.msra.mxu0 0.0
    %2098 = vmatpush.msra.mxu0 0.0
    %2099 = vmatpush.msra.mxu0 0.0
    %2100 = vmatpush.msra.mxu0 0.0
    %2101 = vmatpush.msra.mxu0 0.0
    %2102 = vmatpush.msra.mxu0 %v49
    %2103 = vmatpush.msra.mxu0 %v48
    %2104 = vmatmul.f32.gmra.mxu0 %v2086
    %v2105 = vpop.f32.mrf.mxu0
    %v2106 = vadd.f32 %v2081, %v2105
    %2107 = vdwg.mxu0
    %v2108 = vperm.slane %v54, 0
    %v2109 = vadd.f32 %v2106, %v2108
    %v2110 = vxor.u32 %v2109, 2147483648
    %v2111 = vmul.f32 %v2110, 1.442695
    %v2112 = vpow.pop %v2111
    %v2113 = vadd.f32 %v2112, 1.0
    %v2114 = vrcp.pop %v2113
    %v2115 = vmul.f32 %v2113, %v2114
    %v2116 = vsub.f32 1.0, %v2115
    %v2117 = vmul.f32 %v2114, %v2116
    %v2118 = vadd.f32 %v2114, %v2117
    %vm2119 = vweird.f32 %v2113
    %vm2120 = vweird.f32 %v2114
    %vm2121 = vmor %vm2119, %vm2120
    %v2122 = vsel %vm2121, %v2114, %v2118
    %v2123 = vand.u32 2147483647, %v2113
    %vm2124 = vcmp.eq.f32.partialorder %v2123, 8.507059e+37
    %v2125 = vand.u32 %v2113, 2147483648
    %v2126 = vor.u32 1.1754944e-38, %v2125
    %v2127 = vsel %vm2124, %v2126, %v2122
    %v2128 = vmul.f32 1.0, %v2127
    %v2129 = vtanh.pop %v2109
    %v2130 = vmul.f32 %v2128, 0.0
    %2132 = vrot.lane.b32.xlu0 %v2129, 32
    %v2133 = vpop.permute.xlu0 %2132
    %v2135 = vmul.f32 %v2128, %v2133
    %2137 = vrot.lane.b32.xlu0 %v2135, 32
    %v2138 = vpop.permute.xlu0 %2137
    %v2140 = vadd.f32 %v2130, %v2138
    %v2141 = vtanh.pop %v2140
    %2143 = vrot.lane.b32.xlu0 %v2141, 32
    %v2144 = vpop.permute.xlu0 %2143
    %v2146 = vmul.f32 %v2128, %v2144
    %v2147 = vperm.slane %v59, 0
    %2149 = vrot.lane.b32.xlu0 %v2146, 64
    %v2150 = vpop.permute.xlu0 %2149
    %v2151 = vsel %vm109, %v2150, 0
    %2153 = vmatpush.msra.mxu0 0.0
    %2154 = vmatpush.msra.mxu0 0.0
    %2155 = vmatpush.msra.mxu0 0.0
    %2156 = vmatpush.msra.mxu0 0.0
    %2157 = vmatpush.msra.mxu0 0.0
    %2158 = vmatpush.msra.mxu0 0.0
    %2159 = vmatpush.msra.mxu0 0.0
    %2160 = vmatpush.msra.mxu0 0.0
    %2161 = vmatpush.msra.mxu0 0.0
    %2162 = vmatpush.msra.mxu0 0.0
    %2163 = vmatpush.msra.mxu0 0.0
    %2164 = vmatpush.msra.mxu0 0.0
    %2165 = vmatpush.msra.mxu0 %v58
    %2166 = vmatpush.msra.mxu0 %v57
    %2167 = vmatpush.msra.mxu0 %v56
    %2168 = vmatpush.msra.mxu0 %v55
    %2169 = vmatmul.f32.gmra.mxu0 %v2151
    %v2170 = vpop.f32.mrf.mxu0
    %v2171 = vadd.f32 %v2147, %v2170
    %2172 = vdwg.mxu0
    %2173 = vst [vmem:[%s2] sm:$0xff] %v2171
    %v2174 = vperm.slane %v1975, 1
    %v2175 = vsel %vm101, %v2174, 0.0
    %v2176 = vsel %vm106, %v2174, %v2175
    %2177 = vmatpush.msra.mxu0 0.0
    %2178 = vmatpush.msra.mxu0 0.0
    %2179 = vmatpush.msra.mxu0 0.0
    %2180 = vmatpush.msra.mxu0 0.0
    %2181 = vmatpush.msra.mxu0 0.0
    %2182 = vmatpush.msra.mxu0 0.0
    %2183 = vmatpush.msra.mxu0 0.0
    %2184 = vmatpush.msra.mxu0 0.0
    %2185 = vmatpush.msra.mxu0 0.0
    %2186 = vmatpush.msra.mxu0 0.0
    %2187 = vmatpush.msra.mxu0 0.0
    %2188 = vmatpush.msra.mxu0 0.0
    %2189 = vmatpush.msra.mxu0 0.0
    %2190 = vmatpush.msra.mxu0 0.0
    %2191 = vmatpush.msra.mxu0 %v46
    %2192 = vmatpush.msra.mxu0 %v45
    %2193 = vmatmul.f32.gmra.mxu0 %v2086
    %v2194 = vpop.f32.mrf.mxu0
    %v2195 = vadd.f32 0.0, %v2194
    %2196 = vdwg.mxu0
    %2198 = vrot.lane.b32.xlu0 %v2176, 112
    %v2199 = vpop.permute.xlu0 %2198
    %v2200 = vsel %vm258, %v2199, 0
    %2202 = vmatpush.msra.mxu0 0.0
    %2203 = vmatpush.msra.mxu0 0.0
    %2204 = vmatpush.msra.mxu0 0.0
    %2205 = vmatpush.msra.mxu0 0.0
    %2206 = vmatpush.msra.mxu0 0.0
    %2207 = vmatpush.msra.mxu0 0.0
    %2208 = vmatpush.msra.mxu0 0.0
    %2209 = vmatpush.msra.mxu0 0.0
    %2210 = vmatpush.msra.mxu0 0.0
    %2211 = vmatpush.msra.mxu0 0.0
    %2212 = vmatpush.msra.mxu0 0.0
    %2213 = vmatpush.msra.mxu0 0.0
    %2214 = vmatpush.msra.mxu0 0.0
    %2215 = vmatpush.msra.mxu0 0.0
    %2216 = vmatpush.msra.mxu0 0.0
    %2217 = vmatpush.msra.mxu0 %v44
    %2218 = vmatmul.f32.gmra.mxu0 %v2200
    %v2219 = vpop.f32.mrf.mxu0
    %v2220 = vadd.f32 %v2195, %v2219
    %2221 = vdwg.mxu0
    %v2222 = vadd.f32 %v2220, %v2024
    %v2223 = vxor.u32 %v2222, 2147483648
    %v2224 = vmul.f32 %v2223, 1.442695
    %v2225 = vpow.pop %v2224
    %v2226 = vadd.f32 %v2225, 1.0
    %v2227 = vrcp.pop %v2226
    %v2228 = vmul.f32 %v2226, %v2227
    %v2229 = vsub.f32 1.0, %v2228
    %v2230 = vmul.f32 %v2227, %v2229
    %v2231 = vadd.f32 %v2227, %v2230
    %vm2232 = vweird.f32 %v2226
    %vm2233 = vweird.f32 %v2227
    %vm2234 = vmor %vm2232, %vm2233
    %v2235 = vsel %vm2234, %v2227, %v2231
    %v2236 = vand.u32 2147483647, %v2226
    %vm2237 = vcmp.eq.f32.partialorder %v2236, 8.507059e+37
    %v2238 = vand.u32 %v2226, 2147483648
    %v2239 = vor.u32 1.1754944e-38, %v2238
    %v2240 = vsel %vm2237, %v2239, %v2235
    %v2241 = vmul.f32 1.0, %v2240
    %v2242 = vtanh.pop %v2222
    %v2243 = vmul.f32 %v2241, %v2056
    %2245 = vrot.lane.b32.xlu0 %v2242, 80
    %v2246 = vpop.permute.xlu0 %2245
    %v2248 = vmul.f32 %v2241, %v2246
    %2250 = vrot.lane.b32.xlu0 %v2248, 16
    %v2251 = vpop.permute.xlu0 %2250
    %v2253 = vadd.f32 %v2243, %v2251
    %v2254 = vtanh.pop %v2253
    %2256 = vrot.lane.b32.xlu0 %v2254, 16
    %v2257 = vpop.permute.xlu0 %2256
    %v2259 = vmul.f32 %v2241, %v2257
    %2260 = vmatpush.msra.mxu0 0.0
    %2261 = vmatpush.msra.mxu0 0.0
    %2262 = vmatpush.msra.mxu0 0.0
    %2263 = vmatpush.msra.mxu0 0.0
    %2264 = vmatpush.msra.mxu0 0.0
    %2265 = vmatpush.msra.mxu0 0.0
    %2266 = vmatpush.msra.mxu0 0.0
    %2267 = vmatpush.msra.mxu0 0.0
    %2268 = vmatpush.msra.mxu0 0.0
    %2269 = vmatpush.msra.mxu0 0.0
    %2270 = vmatpush.msra.mxu0 0.0
    %2271 = vmatpush.msra.mxu0 0.0
    %2272 = vmatpush.msra.mxu0 %v53
    %2273 = vmatpush.msra.mxu0 %v52
    %2274 = vmatpush.msra.mxu0 %v51
    %2275 = vmatpush.msra.mxu0 %v50
    %2276 = vmatmul.f32.gmra.mxu0 %v2151
    %v2277 = vpop.f32.mrf.mxu0
    %v2278 = vadd.f32 0.0, %v2277
    %2279 = vdwg.mxu0
    %2281 = vrot.lane.b32.xlu0 %v2259, 96
    %v2282 = vpop.permute.xlu0 %2281
    %v2283 = vsel %vm171, %v2282, 0
    %2285 = vmatpush.msra.mxu0 0.0
    %2286 = vmatpush.msra.mxu0 0.0
    %2287 = vmatpush.msra.mxu0 0.0
    %2288 = vmatpush.msra.mxu0 0.0
    %2289 = vmatpush.msra.mxu0 0.0
    %2290 = vmatpush.msra.mxu0 0.0
    %2291 = vmatpush.msra.mxu0 0.0
    %2292 = vmatpush.msra.mxu0 0.0
    %2293 = vmatpush.msra.mxu0 0.0
    %2294 = vmatpush.msra.mxu0 0.0
    %2295 = vmatpush.msra.mxu0 0.0
    %2296 = vmatpush.msra.mxu0 0.0
    %2297 = vmatpush.msra.mxu0 0.0
    %2298 = vmatpush.msra.mxu0 0.0
    %2299 = vmatpush.msra.mxu0 %v49
    %2300 = vmatpush.msra.mxu0 %v48
    %2301 = vmatmul.f32.gmra.mxu0 %v2283
    %v2302 = vpop.f32.mrf.mxu0
    %v2303 = vadd.f32 %v2278, %v2302
    %2304 = vdwg.mxu0
    %v2305 = vadd.f32 %v2303, %v2108
    %v2306 = vxor.u32 %v2305, 2147483648
    %v2307 = vmul.f32 %v2306, 1.442695
    %v2308 = vpow.pop %v2307
    %v2309 = vadd.f32 %v2308, 1.0
    %v2310 = vrcp.pop %v2309
    %v2311 = vmul.f32 %v2309, %v2310
    %v2312 = vsub.f32 1.0, %v2311
    %v2313 = vmul.f32 %v2310, %v2312
    %v2314 = vadd.f32 %v2310, %v2313
    %vm2315 = vweird.f32 %v2309
    %vm2316 = vweird.f32 %v2310
    %vm2317 = vmor %vm2315, %vm2316
    %v2318 = vsel %vm2317, %v2310, %v2314
    %v2319 = vand.u32 2147483647, %v2309
    %vm2320 = vcmp.eq.f32.partialorder %v2319, 8.507059e+37
    %v2321 = vand.u32 %v2309, 2147483648
    %v2322 = vor.u32 1.1754944e-38, %v2321
    %v2323 = vsel %vm2320, %v2322, %v2318
    %v2324 = vmul.f32 1.0, %v2323
    %v2325 = vtanh.pop %v2305
    %v2326 = vmul.f32 %v2324, %v2140
    %2328 = vrot.lane.b32.xlu0 %v2325, 32
    %v2329 = vpop.permute.xlu0 %2328
    %v2331 = vmul.f32 %v2324, %v2329
    %2333 = vrot.lane.b32.xlu0 %v2331, 32
    %v2334 = vpop.permute.xlu0 %2333
    %v2336 = vadd.f32 %v2326, %v2334
    %v2337 = vtanh.pop %v2336
    %2339 = vrot.lane.b32.xlu0 %v2337, 32
    %v2340 = vpop.permute.xlu0 %2339
    %v2342 = vmul.f32 %v2324, %v2340
    %2344 = vrot.lane.b32.xlu0 %v2342, 64
    %v2345 = vpop.permute.xlu0 %2344
    %v2346 = vsel %vm109, %v2345, 0
    %2348 = vmatpush.msra.mxu0 0.0
    %2349 = vmatpush.msra.mxu0 0.0
    %2350 = vmatpush.msra.mxu0 0.0
    %2351 = vmatpush.msra.mxu0 0.0
    %2352 = vmatpush.msra.mxu0 0.0
    %2353 = vmatpush.msra.mxu0 0.0
    %2354 = vmatpush.msra.mxu0 0.0
    %2355 = vmatpush.msra.mxu0 0.0
    %2356 = vmatpush.msra.mxu0 0.0
    %2357 = vmatpush.msra.mxu0 0.0
    %2358 = vmatpush.msra.mxu0 0.0
    %2359 = vmatpush.msra.mxu0 0.0
    %2360 = vmatpush.msra.mxu0 %v58
    %2361 = vmatpush.msra.mxu0 %v57
    %2362 = vmatpush.msra.mxu0 %v56
    %2363 = vmatpush.msra.mxu0 %v55
    %2364 = vmatmul.f32.gmra.mxu0 %v2346
    %v2365 = vpop.f32.mrf.mxu0
    %v2366 = vadd.f32 %v2147, %v2365
    %2367 = vdwg.mxu0
    %2368 = vst [vmem:[%s2 + $0x8] sm:$0xff] %v2366
    %2369 = vmatpush.msra.mxu0 0.0
    %2370 = vmatpush.msra.mxu0 0.0
    %2371 = vmatpush.msra.mxu0 0.0
    %2372 = vmatpush.msra.mxu0 0.0
    %2373 = vmatpush.msra.mxu0 0.0
    %2374 = vmatpush.msra.mxu0 0.0
    %2375 = vmatpush.msra.mxu0 0.0
    %2376 = vmatpush.msra.mxu0 0.0
    %2377 = vmatpush.msra.mxu0 0.0
    %2378 = vmatpush.msra.mxu0 0.0
    %2379 = vmatpush.msra.mxu0 0.0
    %2380 = vmatpush.msra.mxu0 0.0
    %2381 = vmatpush.msra.mxu0 0.0
    %2382 = vmatpush.msra.mxu0 0.0
    %2383 = vmatpush.msra.mxu0 %v46
    %2384 = vmatpush.msra.mxu0 %v45
    %2385 = vmatmul.f32.gmra.mxu0 %v2283
    %v2386 = vpop.f32.mrf.mxu0
    %v2387 = vadd.f32 0.0, %v2386
    %2388 = vdwg.mxu0
    %2389 = vmatpush.msra.mxu0 0.0
    %2390 = vmatpush.msra.mxu0 0.0
    %2391 = vmatpush.msra.mxu0 0.0
    %2392 = vmatpush.msra.mxu0 0.0
    %2393 = vmatpush.msra.mxu0 0.0
    %2394 = vmatpush.msra.mxu0 0.0
    %2395 = vmatpush.msra.mxu0 0.0
    %2396 = vmatpush.msra.mxu0 0.0
    %2397 = vmatpush.msra.mxu0 0.0
    %2398 = vmatpush.msra.mxu0 0.0
    %2399 = vmatpush.msra.mxu0 0.0
    %2400 = vmatpush.msra.mxu0 0.0
    %2401 = vmatpush.msra.mxu0 0.0
    %2402 = vmatpush.msra.mxu0 0.0
    %2403 = vmatpush.msra.mxu0 0.0
    %2404 = vmatpush.msra.mxu0 %v44
    %2405 = vmatmul.f32.gmra.mxu0 %v2002
    %v2406 = vpop.f32.mrf.mxu0
    %v2407 = vadd.f32 %v2387, %v2406
    %2408 = vdwg.mxu0
    %v2409 = vadd.f32 %v2407, %v2024
    %v2410 = vxor.u32 %v2409, 2147483648
    %v2411 = vmul.f32 %v2410, 1.442695
    %v2412 = vpow.pop %v2411
    %v2413 = vadd.f32 %v2412, 1.0
    %v2414 = vrcp.pop %v2413
    %v2415 = vmul.f32 %v2413, %v2414
    %v2416 = vsub.f32 1.0, %v2415
    %v2417 = vmul.f32 %v2414, %v2416
    %v2418 = vadd.f32 %v2414, %v2417
    %vm2419 = vweird.f32 %v2413
    %vm2420 = vweird.f32 %v2414
    %vm2421 = vmor %vm2419, %vm2420
    %v2422 = vsel %vm2421, %v2414, %v2418
    %v2423 = vand.u32 2147483647, %v2413
    %vm2424 = vcmp.eq.f32.partialorder %v2423, 8.507059e+37
    %v2425 = vand.u32 %v2413, 2147483648
    %v2426 = vor.u32 1.1754944e-38, %v2425
    %v2427 = vsel %vm2424, %v2426, %v2422
    %v2428 = vmul.f32 1.0, %v2427
    %v2429 = vtanh.pop %v2409
    %v2430 = vmul.f32 %v2428, %v2253
    %2432 = vrot.lane.b32.xlu0 %v2429, 80
    %v2433 = vpop.permute.xlu0 %2432
    %v2435 = vmul.f32 %v2428, %v2433
    %2437 = vrot.lane.b32.xlu0 %v2435, 16
    %v2438 = vpop.permute.xlu0 %2437
    %v2440 = vadd.f32 %v2430, %v2438
    %v2441 = vtanh.pop %v2440
    %2443 = vrot.lane.b32.xlu0 %v2441, 16
    %v2444 = vpop.permute.xlu0 %2443
    %v2446 = vmul.f32 %v2428, %v2444
    %2447 = vmatpush.msra.mxu0 0.0
    %2448 = vmatpush.msra.mxu0 0.0
    %2449 = vmatpush.msra.mxu0 0.0
    %2450 = vmatpush.msra.mxu0 0.0
    %2451 = vmatpush.msra.mxu0 0.0
    %2452 = vmatpush.msra.mxu0 0.0
    %2453 = vmatpush.msra.mxu0 0.0
    %2454 = vmatpush.msra.mxu0 0.0
    %2455 = vmatpush.msra.mxu0 0.0
    %2456 = vmatpush.msra.mxu0 0.0
    %2457 = vmatpush.msra.mxu0 0.0
    %2458 = vmatpush.msra.mxu0 0.0
    %2459 = vmatpush.msra.mxu0 %v53
    %2460 = vmatpush.msra.mxu0 %v52
    %2461 = vmatpush.msra.mxu0 %v51
    %2462 = vmatpush.msra.mxu0 %v50
    %2463 = vmatmul.f32.gmra.mxu0 %v2346
    %v2464 = vpop.f32.mrf.mxu0
    %v2465 = vadd.f32 0.0, %v2464
    %2466 = vdwg.mxu0
    %2468 = vrot.lane.b32.xlu0 %v2446, 96
    %v2469 = vpop.permute.xlu0 %2468
    %v2470 = vsel %vm171, %v2469, 0
    %2472 = vmatpush.msra.mxu0 0.0
    %2473 = vmatpush.msra.mxu0 0.0
    %2474 = vmatpush.msra.mxu0 0.0
    %2475 = vmatpush.msra.mxu0 0.0
    %2476 = vmatpush.msra.mxu0 0.0
    %2477 = vmatpush.msra.mxu0 0.0
    %2478 = vmatpush.msra.mxu0 0.0
    %2479 = vmatpush.msra.mxu0 0.0
    %2480 = vmatpush.msra.mxu0 0.0
    %2481 = vmatpush.msra.mxu0 0.0
    %2482 = vmatpush.msra.mxu0 0.0
    %2483 = vmatpush.msra.mxu0 0.0
    %2484 = vmatpush.msra.mxu0 0.0
    %2485 = vmatpush.msra.mxu0 0.0
    %2486 = vmatpush.msra.mxu0 %v49
    %2487 = vmatpush.msra.mxu0 %v48
    %2488 = vmatmul.f32.gmra.mxu0 %v2470
    %v2489 = vpop.f32.mrf.mxu0
    %v2490 = vadd.f32 %v2465, %v2489
    %2491 = vdwg.mxu0
    %v2492 = vadd.f32 %v2490, %v2108
    %v2493 = vxor.u32 %v2492, 2147483648
    %v2494 = vmul.f32 %v2493, 1.442695
    %v2495 = vpow.pop %v2494
    %v2496 = vadd.f32 %v2495, 1.0
    %v2497 = vrcp.pop %v2496
    %v2498 = vmul.f32 %v2496, %v2497
    %v2499 = vsub.f32 1.0, %v2498
    %v2500 = vmul.f32 %v2497, %v2499
    %v2501 = vadd.f32 %v2497, %v2500
    %vm2502 = vweird.f32 %v2496
    %vm2503 = vweird.f32 %v2497
    %vm2504 = vmor %vm2502, %vm2503
    %v2505 = vsel %vm2504, %v2497, %v2501
    %v2506 = vand.u32 2147483647, %v2496
    %vm2507 = vcmp.eq.f32.partialorder %v2506, 8.507059e+37
    %v2508 = vand.u32 %v2496, 2147483648
    %v2509 = vor.u32 1.1754944e-38, %v2508
    %v2510 = vsel %vm2507, %v2509, %v2505
    %v2511 = vmul.f32 1.0, %v2510
    %v2512 = vtanh.pop %v2492
    %v2513 = vmul.f32 %v2511, %v2336
    %2515 = vrot.lane.b32.xlu0 %v2512, 32
    %v2516 = vpop.permute.xlu0 %2515
    %v2518 = vmul.f32 %v2511, %v2516
    %2520 = vrot.lane.b32.xlu0 %v2518, 32
    %v2521 = vpop.permute.xlu0 %2520
    %v2523 = vadd.f32 %v2513, %v2521
    %v2524 = vtanh.pop %v2523
    %2526 = vrot.lane.b32.xlu0 %v2524, 32
    %v2527 = vpop.permute.xlu0 %2526
    %v2529 = vmul.f32 %v2511, %v2527
    %2531 = vrot.lane.b32.xlu0 %v2529, 64
    %v2532 = vpop.permute.xlu0 %2531
    %v2533 = vsel %vm109, %v2532, 0
    %2535 = vmatpush.msra.mxu0 0.0
    %2536 = vmatpush.msra.mxu0 0.0
    %2537 = vmatpush.msra.mxu0 0.0
    %2538 = vmatpush.msra.mxu0 0.0
    %2539 = vmatpush.msra.mxu0 0.0
    %2540 = vmatpush.msra.mxu0 0.0
    %2541 = vmatpush.msra.mxu0 0.0
    %2542 = vmatpush.msra.mxu0 0.0
    %2543 = vmatpush.msra.mxu0 0.0
    %2544 = vmatpush.msra.mxu0 0.0
    %2545 = vmatpush.msra.mxu0 0.0
    %2546 = vmatpush.msra.mxu0 0.0
    %2547 = vmatpush.msra.mxu0 %v58
    %2548 = vmatpush.msra.mxu0 %v57
    %2549 = vmatpush.msra.mxu0 %v56
    %2550 = vmatpush.msra.mxu0 %v55
    %2551 = vmatmul.f32.gmra.mxu0 %v2533
    %v2552 = vpop.f32.mrf.mxu0
    %v2553 = vadd.f32 %v2147, %v2552
    %2554 = vdwg.mxu0
    %2555 = vst [vmem:[%s2 + $0x10] sm:$0xff] %v2553
    %2556 = vmatpush.msra.mxu0 0.0
    %2557 = vmatpush.msra.mxu0 0.0
    %2558 = vmatpush.msra.mxu0 0.0
    %2559 = vmatpush.msra.mxu0 0.0
    %2560 = vmatpush.msra.mxu0 0.0
    %2561 = vmatpush.msra.mxu0 0.0
    %2562 = vmatpush.msra.mxu0 0.0
    %2563 = vmatpush.msra.mxu0 0.0
    %2564 = vmatpush.msra.mxu0 0.0
    %2565 = vmatpush.msra.mxu0 0.0
    %2566 = vmatpush.msra.mxu0 0.0
    %2567 = vmatpush.msra.mxu0 0.0
    %2568 = vmatpush.msra.mxu0 0.0
    %2569 = vmatpush.msra.mxu0 0.0
    %2570 = vmatpush.msra.mxu0 %v46
    %2571 = vmatpush.msra.mxu0 %v45
    %2572 = vmatmul.f32.gmra.mxu0 %v2470
    %v2573 = vpop.f32.mrf.mxu0
    %v2574 = vadd.f32 0.0, %v2573
    %2575 = vdwg.mxu0
    %2576 = vmatpush.msra.mxu0 0.0
    %2577 = vmatpush.msra.mxu0 0.0
    %2578 = vmatpush.msra.mxu0 0.0
    %2579 = vmatpush.msra.mxu0 0.0
    %2580 = vmatpush.msra.mxu0 0.0
    %2581 = vmatpush.msra.mxu0 0.0
    %2582 = vmatpush.msra.mxu0 0.0
    %2583 = vmatpush.msra.mxu0 0.0
    %2584 = vmatpush.msra.mxu0 0.0
    %2585 = vmatpush.msra.mxu0 0.0
    %2586 = vmatpush.msra.mxu0 0.0
    %2587 = vmatpush.msra.mxu0 0.0
    %2588 = vmatpush.msra.mxu0 0.0
    %2589 = vmatpush.msra.mxu0 0.0
    %2590 = vmatpush.msra.mxu0 0.0
    %2591 = vmatpush.msra.mxu0 %v44
    %2592 = vmatmul.f32.gmra.mxu0 %v2200
    %v2593 = vpop.f32.mrf.mxu0
    %v2594 = vadd.f32 %v2574, %v2593
    %2595 = vdwg.mxu0
    %v2596 = vadd.f32 %v2594, %v2024
    %v2597 = vxor.u32 %v2596, 2147483648
    %v2598 = vmul.f32 %v2597, 1.442695
    %v2599 = vpow.pop %v2598
    %v2600 = vadd.f32 %v2599, 1.0
    %v2601 = vrcp.pop %v2600
    %v2602 = vmul.f32 %v2600, %v2601
    %v2603 = vsub.f32 1.0, %v2602
    %v2604 = vmul.f32 %v2601, %v2603
    %v2605 = vadd.f32 %v2601, %v2604
    %vm2606 = vweird.f32 %v2600
    %vm2607 = vweird.f32 %v2601
    %vm2608 = vmor %vm2606, %vm2607
    %v2609 = vsel %vm2608, %v2601, %v2605
    %v2610 = vand.u32 2147483647, %v2600
    %vm2611 = vcmp.eq.f32.partialorder %v2610, 8.507059e+37
    %v2612 = vand.u32 %v2600, 2147483648
    %v2613 = vor.u32 1.1754944e-38, %v2612
    %v2614 = vsel %vm2611, %v2613, %v2609
    %v2615 = vmul.f32 1.0, %v2614
    %v2616 = vtanh.pop %v2596
    %v2617 = vmul.f32 %v2615, %v2440
    %2619 = vrot.lane.b32.xlu0 %v2616, 80
    %v2620 = vpop.permute.xlu0 %2619
    %v2622 = vmul.f32 %v2615, %v2620
    %2624 = vrot.lane.b32.xlu0 %v2622, 16
    %v2625 = vpop.permute.xlu0 %2624
    %v2627 = vadd.f32 %v2617, %v2625
    %v2628 = vtanh.pop %v2627
    %2630 = vrot.lane.b32.xlu0 %v2628, 16
    %v2631 = vpop.permute.xlu0 %2630
    %v2633 = vmul.f32 %v2615, %v2631
    %2634 = vmatpush.msra.mxu0 0.0
    %2635 = vmatpush.msra.mxu0 0.0
    %2636 = vmatpush.msra.mxu0 0.0
    %2637 = vmatpush.msra.mxu0 0.0
    %2638 = vmatpush.msra.mxu0 0.0
    %2639 = vmatpush.msra.mxu0 0.0
    %2640 = vmatpush.msra.mxu0 0.0
    %2641 = vmatpush.msra.mxu0 0.0
    %2642 = vmatpush.msra.mxu0 0.0
    %2643 = vmatpush.msra.mxu0 0.0
    %2644 = vmatpush.msra.mxu0 0.0
    %2645 = vmatpush.msra.mxu0 0.0
    %2646 = vmatpush.msra.mxu0 %v53
    %2647 = vmatpush.msra.mxu0 %v52
    %2648 = vmatpush.msra.mxu0 %v51
    %2649 = vmatpush.msra.mxu0 %v50
    %2650 = vmatmul.f32.gmra.mxu0 %v2533
    %v2651 = vpop.f32.mrf.mxu0
    %v2652 = vadd.f32 0.0, %v2651
    %2653 = vdwg.mxu0
    %2655 = vrot.lane.b32.xlu0 %v2633, 96
    %v2656 = vpop.permute.xlu0 %2655
    %v2657 = vsel %vm171, %v2656, 0
    %2659 = vmatpush.msra.mxu0 0.0
    %2660 = vmatpush.msra.mxu0 0.0
    %2661 = vmatpush.msra.mxu0 0.0
    %2662 = vmatpush.msra.mxu0 0.0
    %2663 = vmatpush.msra.mxu0 0.0
    %2664 = vmatpush.msra.mxu0 0.0
    %2665 = vmatpush.msra.mxu0 0.0
    %2666 = vmatpush.msra.mxu0 0.0
    %2667 = vmatpush.msra.mxu0 0.0
    %2668 = vmatpush.msra.mxu0 0.0
    %2669 = vmatpush.msra.mxu0 0.0
    %2670 = vmatpush.msra.mxu0 0.0
    %2671 = vmatpush.msra.mxu0 0.0
    %2672 = vmatpush.msra.mxu0 0.0
    %2673 = vmatpush.msra.mxu0 %v49
    %2674 = vmatpush.msra.mxu0 %v48
    %2675 = vmatmul.f32.gmra.mxu0 %v2657
    %v2676 = vpop.f32.mrf.mxu0
    %v2677 = vadd.f32 %v2652, %v2676
    %2678 = vdwg.mxu0
    %v2679 = vadd.f32 %v2677, %v2108
    %v2680 = vxor.u32 %v2679, 2147483648
    %v2681 = vmul.f32 %v2680, 1.442695
    %v2682 = vpow.pop %v2681
    %v2683 = vadd.f32 %v2682, 1.0
    %v2684 = vrcp.pop %v2683
    %v2685 = vmul.f32 %v2683, %v2684
    %v2686 = vsub.f32 1.0, %v2685
    %v2687 = vmul.f32 %v2684, %v2686
    %v2688 = vadd.f32 %v2684, %v2687
    %vm2689 = vweird.f32 %v2683
    %vm2690 = vweird.f32 %v2684
    %vm2691 = vmor %vm2689, %vm2690
    %v2692 = vsel %vm2691, %v2684, %v2688
    %v2693 = vand.u32 2147483647, %v2683
    %vm2694 = vcmp.eq.f32.partialorder %v2693, 8.507059e+37
    %v2695 = vand.u32 %v2683, 2147483648
    %v2696 = vor.u32 1.1754944e-38, %v2695
    %v2697 = vsel %vm2694, %v2696, %v2692
    %v2698 = vmul.f32 1.0, %v2697
    %v2699 = vtanh.pop %v2679
    %v2700 = vmul.f32 %v2698, %v2523
    %2702 = vrot.lane.b32.xlu0 %v2699, 32
    %v2703 = vpop.permute.xlu0 %2702
    %v2705 = vmul.f32 %v2698, %v2703
    %2707 = vrot.lane.b32.xlu0 %v2705, 32
    %v2708 = vpop.permute.xlu0 %2707
    %v2710 = vadd.f32 %v2700, %v2708
    %v2711 = vtanh.pop %v2710
    %2713 = vrot.lane.b32.xlu0 %v2711, 32
    %v2714 = vpop.permute.xlu0 %2713
    %v2716 = vmul.f32 %v2698, %v2714
    %2718 = vrot.lane.b32.xlu0 %v2716, 64
    %v2719 = vpop.permute.xlu0 %2718
    %v2720 = vsel %vm109, %v2719, 0
    %2722 = vmatpush.msra.mxu0 0.0
    %2723 = vmatpush.msra.mxu0 0.0
    %2724 = vmatpush.msra.mxu0 0.0
    %2725 = vmatpush.msra.mxu0 0.0
    %2726 = vmatpush.msra.mxu0 0.0
    %2727 = vmatpush.msra.mxu0 0.0
    %2728 = vmatpush.msra.mxu0 0.0
    %2729 = vmatpush.msra.mxu0 0.0
    %2730 = vmatpush.msra.mxu0 0.0
    %2731 = vmatpush.msra.mxu0 0.0
    %2732 = vmatpush.msra.mxu0 0.0
    %2733 = vmatpush.msra.mxu0 0.0
    %2734 = vmatpush.msra.mxu0 %v58
    %2735 = vmatpush.msra.mxu0 %v57
    %2736 = vmatpush.msra.mxu0 %v56
    %2737 = vmatpush.msra.mxu0 %v55
    %2738 = vmatmul.f32.gmra.mxu0 %v2720
    %v2739 = vpop.f32.mrf.mxu0
    %v2740 = vadd.f32 %v2147, %v2739
    %2741 = vdwg.mxu0
    %2742 = vst [vmem:[%s2 + $0x18] sm:$0xff] %v2740
    %2743 = vmatpush.msra.mxu0 0.0
    %2744 = vmatpush.msra.mxu0 0.0
    %2745 = vmatpush.msra.mxu0 0.0
    %2746 = vmatpush.msra.mxu0 0.0
    %2747 = vmatpush.msra.mxu0 0.0
    %2748 = vmatpush.msra.mxu0 0.0
    %2749 = vmatpush.msra.mxu0 0.0
    %2750 = vmatpush.msra.mxu0 0.0
    %2751 = vmatpush.msra.mxu0 0.0
    %2752 = vmatpush.msra.mxu0 0.0
    %2753 = vmatpush.msra.mxu0 0.0
    %2754 = vmatpush.msra.mxu0 0.0
    %2755 = vmatpush.msra.mxu0 0.0
    %2756 = vmatpush.msra.mxu0 0.0
    %2757 = vmatpush.msra.mxu0 %v46
    %2758 = vmatpush.msra.mxu0 %v45
    %2759 = vmatmul.f32.gmra.mxu0 %v2657
    %v2760 = vpop.f32.mrf.mxu0
    %v2761 = vadd.f32 0.0, %v2760
    %2762 = vdwg.mxu0
    %2763 = vmatpush.msra.mxu0 0.0
    %2764 = vmatpush.msra.mxu0 0.0
    %2765 = vmatpush.msra.mxu0 0.0
    %2766 = vmatpush.msra.mxu0 0.0
    %2767 = vmatpush.msra.mxu0 0.0
    %2768 = vmatpush.msra.mxu0 0.0
    %2769 = vmatpush.msra.mxu0 0.0
    %2770 = vmatpush.msra.mxu0 0.0
    %2771 = vmatpush.msra.mxu0 0.0
    %2772 = vmatpush.msra.mxu0 0.0
    %2773 = vmatpush.msra.mxu0 0.0
    %2774 = vmatpush.msra.mxu0 0.0
    %2775 = vmatpush.msra.mxu0 0.0
    %2776 = vmatpush.msra.mxu0 0.0
    %2777 = vmatpush.msra.mxu0 0.0
    %2778 = vmatpush.msra.mxu0 %v44
    %2779 = vmatmul.f32.gmra.mxu0 %v2002
    %v2780 = vpop.f32.mrf.mxu0
    %v2781 = vadd.f32 %v2761, %v2780
    %2782 = vdwg.mxu0
    %v2783 = vadd.f32 %v2781, %v2024
    %v2784 = vxor.u32 %v2783, 2147483648
    %v2785 = vmul.f32 %v2784, 1.442695
    %v2786 = vpow.pop %v2785
    %v2787 = vadd.f32 %v2786, 1.0
    %v2788 = vrcp.pop %v2787
    %v2789 = vmul.f32 %v2787, %v2788
    %v2790 = vsub.f32 1.0, %v2789
    %v2791 = vmul.f32 %v2788, %v2790
    %v2792 = vadd.f32 %v2788, %v2791
    %vm2793 = vweird.f32 %v2787
    %vm2794 = vweird.f32 %v2788
    %vm2795 = vmor %vm2793, %vm2794
    %v2796 = vsel %vm2795, %v2788, %v2792
    %v2797 = vand.u32 2147483647, %v2787
    %vm2798 = vcmp.eq.f32.partialorder %v2797, 8.507059e+37
    %v2799 = vand.u32 %v2787, 2147483648
    %v2800 = vor.u32 1.1754944e-38, %v2799
    %v2801 = vsel %vm2798, %v2800, %v2796
    %v2802 = vmul.f32 1.0, %v2801
    %v2803 = vtanh.pop %v2783
    %v2804 = vmul.f32 %v2802, %v2627
    %2806 = vrot.lane.b32.xlu0 %v2803, 80
    %v2807 = vpop.permute.xlu0 %2806
    %v2809 = vmul.f32 %v2802, %v2807
    %2811 = vrot.lane.b32.xlu0 %v2809, 16
    %v2812 = vpop.permute.xlu0 %2811
    %v2814 = vadd.f32 %v2804, %v2812
    %v2815 = vtanh.pop %v2814
    %2817 = vrot.lane.b32.xlu0 %v2815, 16
    %v2818 = vpop.permute.xlu0 %2817
    %v2820 = vmul.f32 %v2802, %v2818
    %2821 = vmatpush.msra.mxu0 0.0
    %2822 = vmatpush.msra.mxu0 0.0
    %2823 = vmatpush.msra.mxu0 0.0
    %2824 = vmatpush.msra.mxu0 0.0
    %2825 = vmatpush.msra.mxu0 0.0
    %2826 = vmatpush.msra.mxu0 0.0
    %2827 = vmatpush.msra.mxu0 0.0
    %2828 = vmatpush.msra.mxu0 0.0
    %2829 = vmatpush.msra.mxu0 0.0
    %2830 = vmatpush.msra.mxu0 0.0
    %2831 = vmatpush.msra.mxu0 0.0
    %2832 = vmatpush.msra.mxu0 0.0
    %2833 = vmatpush.msra.mxu0 %v53
    %2834 = vmatpush.msra.mxu0 %v52
    %2835 = vmatpush.msra.mxu0 %v51
    %2836 = vmatpush.msra.mxu0 %v50
    %2837 = vmatmul.f32.gmra.mxu0 %v2720
    %v2838 = vpop.f32.mrf.mxu0
    %v2839 = vadd.f32 0.0, %v2838
    %2840 = vdwg.mxu0
    %2842 = vrot.lane.b32.xlu0 %v2820, 96
    %v2843 = vpop.permute.xlu0 %2842
    %v2844 = vsel %vm171, %v2843, 0
    %2846 = vmatpush.msra.mxu0 0.0
    %2847 = vmatpush.msra.mxu0 0.0
    %2848 = vmatpush.msra.mxu0 0.0
    %2849 = vmatpush.msra.mxu0 0.0
    %2850 = vmatpush.msra.mxu0 0.0
    %2851 = vmatpush.msra.mxu0 0.0
    %2852 = vmatpush.msra.mxu0 0.0
    %2853 = vmatpush.msra.mxu0 0.0
    %2854 = vmatpush.msra.mxu0 0.0
    %2855 = vmatpush.msra.mxu0 0.0
    %2856 = vmatpush.msra.mxu0 0.0
    %2857 = vmatpush.msra.mxu0 0.0
    %2858 = vmatpush.msra.mxu0 0.0
    %2859 = vmatpush.msra.mxu0 0.0
    %2860 = vmatpush.msra.mxu0 %v49
    %2861 = vmatpush.msra.mxu0 %v48
    %2862 = vmatmul.f32.gmra.mxu0 %v2844
    %v2863 = vpop.f32.mrf.mxu0
    %v2864 = vadd.f32 %v2839, %v2863
    %2865 = vdwg.mxu0
    %v2866 = vadd.f32 %v2864, %v2108
    %v2867 = vxor.u32 %v2866, 2147483648
    %v2868 = vmul.f32 %v2867, 1.442695
    %v2869 = vpow.pop %v2868
    %v2870 = vadd.f32 %v2869, 1.0
    %v2871 = vrcp.pop %v2870
    %v2872 = vmul.f32 %v2870, %v2871
    %v2873 = vsub.f32 1.0, %v2872
    %v2874 = vmul.f32 %v2871, %v2873
    %v2875 = vadd.f32 %v2871, %v2874
    %vm2876 = vweird.f32 %v2870
    %vm2877 = vweird.f32 %v2871
    %vm2878 = vmor %vm2876, %vm2877
    %v2879 = vsel %vm2878, %v2871, %v2875
    %v2880 = vand.u32 2147483647, %v2870
    %vm2881 = vcmp.eq.f32.partialorder %v2880, 8.507059e+37
    %v2882 = vand.u32 %v2870, 2147483648
    %v2883 = vor.u32 1.1754944e-38, %v2882
    %v2884 = vsel %vm2881, %v2883, %v2879
    %v2885 = vmul.f32 1.0, %v2884
    %v2886 = vtanh.pop %v2866
    %v2887 = vmul.f32 %v2885, %v2710
    %2889 = vrot.lane.b32.xlu0 %v2886, 32
    %v2890 = vpop.permute.xlu0 %2889
    %v2892 = vmul.f32 %v2885, %v2890
    %2894 = vrot.lane.b32.xlu0 %v2892, 32
    %v2895 = vpop.permute.xlu0 %2894
    %v2897 = vadd.f32 %v2887, %v2895
    %v2898 = vtanh.pop %v2897
    %2900 = vrot.lane.b32.xlu0 %v2898, 32
    %v2901 = vpop.permute.xlu0 %2900
    %v2903 = vmul.f32 %v2885, %v2901
    %2905 = vrot.lane.b32.xlu0 %v2903, 64
    %v2906 = vpop.permute.xlu0 %2905
    %v2907 = vsel %vm109, %v2906, 0
    %2909 = vmatpush.msra.mxu0 0.0
    %2910 = vmatpush.msra.mxu0 0.0
    %2911 = vmatpush.msra.mxu0 0.0
    %2912 = vmatpush.msra.mxu0 0.0
    %2913 = vmatpush.msra.mxu0 0.0
    %2914 = vmatpush.msra.mxu0 0.0
    %2915 = vmatpush.msra.mxu0 0.0
    %2916 = vmatpush.msra.mxu0 0.0
    %2917 = vmatpush.msra.mxu0 0.0
    %2918 = vmatpush.msra.mxu0 0.0
    %2919 = vmatpush.msra.mxu0 0.0
    %2920 = vmatpush.msra.mxu0 0.0
    %2921 = vmatpush.msra.mxu0 %v58
    %2922 = vmatpush.msra.mxu0 %v57
    %2923 = vmatpush.msra.mxu0 %v56
    %2924 = vmatpush.msra.mxu0 %v55
    %2925 = vmatmul.f32.gmra.mxu0 %v2907
    %v2926 = vpop.f32.mrf.mxu0
    %v2927 = vadd.f32 %v2147, %v2926
    %2928 = vdwg.mxu0
    %2929 = vst [vmem:[%s2 + $0x20] sm:$0xff] %v2927
    %2930 = vmatpush.msra.mxu0 0.0
    %2931 = vmatpush.msra.mxu0 0.0
    %2932 = vmatpush.msra.mxu0 0.0
    %2933 = vmatpush.msra.mxu0 0.0
    %2934 = vmatpush.msra.mxu0 0.0
    %2935 = vmatpush.msra.mxu0 0.0
    %2936 = vmatpush.msra.mxu0 0.0
    %2937 = vmatpush.msra.mxu0 0.0
    %2938 = vmatpush.msra.mxu0 0.0
    %2939 = vmatpush.msra.mxu0 0.0
    %2940 = vmatpush.msra.mxu0 0.0
    %2941 = vmatpush.msra.mxu0 0.0
    %2942 = vmatpush.msra.mxu0 0.0
    %2943 = vmatpush.msra.mxu0 0.0
    %2944 = vmatpush.msra.mxu0 %v46
    %2945 = vmatpush.msra.mxu0 %v45
    %2946 = vmatmul.f32.gmra.mxu0 %v2844
    %v2947 = vpop.f32.mrf.mxu0
    %v2948 = vadd.f32 0.0, %v2947
    %2949 = vdwg.mxu0
    %2950 = vmatpush.msra.mxu0 0.0
    %2951 = vmatpush.msra.mxu0 0.0
    %2952 = vmatpush.msra.mxu0 0.0
    %2953 = vmatpush.msra.mxu0 0.0
    %2954 = vmatpush.msra.mxu0 0.0
    %2955 = vmatpush.msra.mxu0 0.0
    %2956 = vmatpush.msra.mxu0 0.0
    %2957 = vmatpush.msra.mxu0 0.0
    %2958 = vmatpush.msra.mxu0 0.0
    %2959 = vmatpush.msra.mxu0 0.0
    %2960 = vmatpush.msra.mxu0 0.0
    %2961 = vmatpush.msra.mxu0 0.0
    %2962 = vmatpush.msra.mxu0 0.0
    %2963 = vmatpush.msra.mxu0 0.0
    %2964 = vmatpush.msra.mxu0 0.0
    %2965 = vmatpush.msra.mxu0 %v44
    %2966 = vmatmul.f32.gmra.mxu0 %v2200
    %v2967 = vpop.f32.mrf.mxu0
    %v2968 = vadd.f32 %v2948, %v2967
    %2969 = vdwg.mxu0
    %v2970 = vadd.f32 %v2968, %v2024
    %v2971 = vxor.u32 %v2970, 2147483648
    %v2972 = vmul.f32 %v2971, 1.442695
    %v2973 = vpow.pop %v2972
    %v2974 = vadd.f32 %v2973, 1.0
    %v2975 = vrcp.pop %v2974
    %v2976 = vmul.f32 %v2974, %v2975
    %v2977 = vsub.f32 1.0, %v2976
    %v2978 = vmul.f32 %v2975, %v2977
    %v2979 = vadd.f32 %v2975, %v2978
    %vm2980 = vweird.f32 %v2974
    %vm2981 = vweird.f32 %v2975
    %vm2982 = vmor %vm2980, %vm2981
    %v2983 = vsel %vm2982, %v2975, %v2979
    %v2984 = vand.u32 2147483647, %v2974
    %vm2985 = vcmp.eq.f32.partialorder %v2984, 8.507059e+37
    %v2986 = vand.u32 %v2974, 2147483648
    %v2987 = vor.u32 1.1754944e-38, %v2986
    %v2988 = vsel %vm2985, %v2987, %v2983
    %v2989 = vmul.f32 1.0, %v2988
    %v2990 = vtanh.pop %v2970
    %v2991 = vmul.f32 %v2989, %v2814
    %2993 = vrot.lane.b32.xlu0 %v2990, 80
    %v2994 = vpop.permute.xlu0 %2993
    %v2996 = vmul.f32 %v2989, %v2994
    %2998 = vrot.lane.b32.xlu0 %v2996, 16
    %v2999 = vpop.permute.xlu0 %2998
    %v3001 = vadd.f32 %v2991, %v2999
    %v3002 = vtanh.pop %v3001
    %3004 = vrot.lane.b32.xlu0 %v3002, 16
    %v3005 = vpop.permute.xlu0 %3004
    %v3007 = vmul.f32 %v2989, %v3005
    %3008 = vmatpush.msra.mxu0 0.0
    %3009 = vmatpush.msra.mxu0 0.0
    %3010 = vmatpush.msra.mxu0 0.0
    %3011 = vmatpush.msra.mxu0 0.0
    %3012 = vmatpush.msra.mxu0 0.0
    %3013 = vmatpush.msra.mxu0 0.0
    %3014 = vmatpush.msra.mxu0 0.0
    %3015 = vmatpush.msra.mxu0 0.0
    %3016 = vmatpush.msra.mxu0 0.0
    %3017 = vmatpush.msra.mxu0 0.0
    %3018 = vmatpush.msra.mxu0 0.0
    %3019 = vmatpush.msra.mxu0 0.0
    %3020 = vmatpush.msra.mxu0 %v53
    %3021 = vmatpush.msra.mxu0 %v52
    %3022 = vmatpush.msra.mxu0 %v51
    %3023 = vmatpush.msra.mxu0 %v50
    %3024 = vmatmul.f32.gmra.mxu0 %v2907
    %v3025 = vpop.f32.mrf.mxu0
    %v3026 = vadd.f32 0.0, %v3025
    %3027 = vdwg.mxu0
    %3029 = vrot.lane.b32.xlu0 %v3007, 96
    %v3030 = vpop.permute.xlu0 %3029
    %v3031 = vsel %vm171, %v3030, 0
    %3033 = vmatpush.msra.mxu0 0.0
    %3034 = vmatpush.msra.mxu0 0.0
    %3035 = vmatpush.msra.mxu0 0.0
    %3036 = vmatpush.msra.mxu0 0.0
    %3037 = vmatpush.msra.mxu0 0.0
    %3038 = vmatpush.msra.mxu0 0.0
    %3039 = vmatpush.msra.mxu0 0.0
    %3040 = vmatpush.msra.mxu0 0.0
    %3041 = vmatpush.msra.mxu0 0.0
    %3042 = vmatpush.msra.mxu0 0.0
    %3043 = vmatpush.msra.mxu0 0.0
    %3044 = vmatpush.msra.mxu0 0.0
    %3045 = vmatpush.msra.mxu0 0.0
    %3046 = vmatpush.msra.mxu0 0.0
    %3047 = vmatpush.msra.mxu0 %v49
    %3048 = vmatpush.msra.mxu0 %v48
    %3049 = vmatmul.f32.gmra.mxu0 %v3031
    %v3050 = vpop.f32.mrf.mxu0
    %v3051 = vadd.f32 %v3026, %v3050
    %3052 = vdwg.mxu0
    %v3053 = vadd.f32 %v3051, %v2108
    %v3054 = vxor.u32 %v3053, 2147483648
    %v3055 = vmul.f32 %v3054, 1.442695
    %v3056 = vpow.pop %v3055
    %v3057 = vadd.f32 %v3056, 1.0
    %v3058 = vrcp.pop %v3057
    %v3059 = vmul.f32 %v3057, %v3058
    %v3060 = vsub.f32 1.0, %v3059
    %v3061 = vmul.f32 %v3058, %v3060
    %v3062 = vadd.f32 %v3058, %v3061
    %vm3063 = vweird.f32 %v3057
    %vm3064 = vweird.f32 %v3058
    %vm3065 = vmor %vm3063, %vm3064
    %v3066 = vsel %vm3065, %v3058, %v3062
    %v3067 = vand.u32 2147483647, %v3057
    %vm3068 = vcmp.eq.f32.partialorder %v3067, 8.507059e+37
    %v3069 = vand.u32 %v3057, 2147483648
    %v3070 = vor.u32 1.1754944e-38, %v3069
    %v3071 = vsel %vm3068, %v3070, %v3066
    %v3072 = vmul.f32 1.0, %v3071
    %v3073 = vtanh.pop %v3053
    %v3074 = vmul.f32 %v3072, %v2897
    %3076 = vrot.lane.b32.xlu0 %v3073, 32
    %v3077 = vpop.permute.xlu0 %3076
    %v3079 = vmul.f32 %v3072, %v3077
    %3081 = vrot.lane.b32.xlu0 %v3079, 32
    %v3082 = vpop.permute.xlu0 %3081
    %v3084 = vadd.f32 %v3074, %v3082
    %v3085 = vtanh.pop %v3084
    %3087 = vrot.lane.b32.xlu0 %v3085, 32
    %v3088 = vpop.permute.xlu0 %3087
    %v3090 = vmul.f32 %v3072, %v3088
    %3092 = vrot.lane.b32.xlu0 %v3090, 64
    %v3093 = vpop.permute.xlu0 %3092
    %v3094 = vsel %vm109, %v3093, 0
    %3096 = vmatpush.msra.mxu0 0.0
    %3097 = vmatpush.msra.mxu0 0.0
    %3098 = vmatpush.msra.mxu0 0.0
    %3099 = vmatpush.msra.mxu0 0.0
    %3100 = vmatpush.msra.mxu0 0.0
    %3101 = vmatpush.msra.mxu0 0.0
    %3102 = vmatpush.msra.mxu0 0.0
    %3103 = vmatpush.msra.mxu0 0.0
    %3104 = vmatpush.msra.mxu0 0.0
    %3105 = vmatpush.msra.mxu0 0.0
    %3106 = vmatpush.msra.mxu0 0.0
    %3107 = vmatpush.msra.mxu0 0.0
    %3108 = vmatpush.msra.mxu0 %v58
    %3109 = vmatpush.msra.mxu0 %v57
    %3110 = vmatpush.msra.mxu0 %v56
    %3111 = vmatpush.msra.mxu0 %v55
    %3112 = vmatmul.f32.gmra.mxu0 %v3094
    %v3113 = vpop.f32.mrf.mxu0
    %v3114 = vadd.f32 %v2147, %v3113
    %3115 = vdwg.mxu0
    %3116 = vst [vmem:[%s2 + $0x28] sm:$0xff] %v3114
    %3117 = vmatpush.msra.mxu0 0.0
    %3118 = vmatpush.msra.mxu0 0.0
    %3119 = vmatpush.msra.mxu0 0.0
    %3120 = vmatpush.msra.mxu0 0.0
    %3121 = vmatpush.msra.mxu0 0.0
    %3122 = vmatpush.msra.mxu0 0.0
    %3123 = vmatpush.msra.mxu0 0.0
    %3124 = vmatpush.msra.mxu0 0.0
    %3125 = vmatpush.msra.mxu0 0.0
    %3126 = vmatpush.msra.mxu0 0.0
    %3127 = vmatpush.msra.mxu0 0.0
    %3128 = vmatpush.msra.mxu0 0.0
    %3129 = vmatpush.msra.mxu0 0.0
    %3130 = vmatpush.msra.mxu0 0.0
    %3131 = vmatpush.msra.mxu0 %v46
    %3132 = vmatpush.msra.mxu0 %v45
    %3133 = vmatmul.f32.gmra.mxu0 %v3031
    %v3134 = vpop.f32.mrf.mxu0
    %v3135 = vadd.f32 0.0, %v3134
    %3136 = vdwg.mxu0
    %3137 = vmatpush.msra.mxu0 0.0
    %3138 = vmatpush.msra.mxu0 0.0
    %3139 = vmatpush.msra.mxu0 0.0
    %3140 = vmatpush.msra.mxu0 0.0
    %3141 = vmatpush.msra.mxu0 0.0
    %3142 = vmatpush.msra.mxu0 0.0
    %3143 = vmatpush.msra.mxu0 0.0
    %3144 = vmatpush.msra.mxu0 0.0
    %3145 = vmatpush.msra.mxu0 0.0
    %3146 = vmatpush.msra.mxu0 0.0
    %3147 = vmatpush.msra.mxu0 0.0
    %3148 = vmatpush.msra.mxu0 0.0
    %3149 = vmatpush.msra.mxu0 0.0
    %3150 = vmatpush.msra.mxu0 0.0
    %3151 = vmatpush.msra.mxu0 0.0
    %3152 = vmatpush.msra.mxu0 %v44
    %3153 = vmatmul.f32.gmra.mxu0 %v2002
    %v3154 = vpop.f32.mrf.mxu0
    %v3155 = vadd.f32 %v3135, %v3154
    %3156 = vdwg.mxu0
    %v3157 = vadd.f32 %v3155, %v2024
    %v3158 = vxor.u32 %v3157, 2147483648
    %v3159 = vmul.f32 %v3158, 1.442695
    %v3160 = vpow.pop %v3159
    %v3161 = vadd.f32 %v3160, 1.0
    %v3162 = vrcp.pop %v3161
    %v3163 = vmul.f32 %v3161, %v3162
    %v3164 = vsub.f32 1.0, %v3163
    %v3165 = vmul.f32 %v3162, %v3164
    %v3166 = vadd.f32 %v3162, %v3165
    %vm3167 = vweird.f32 %v3161
    %vm3168 = vweird.f32 %v3162
    %vm3169 = vmor %vm3167, %vm3168
    %v3170 = vsel %vm3169, %v3162, %v3166
    %v3171 = vand.u32 2147483647, %v3161
    %vm3172 = vcmp.eq.f32.partialorder %v3171, 8.507059e+37
    %v3173 = vand.u32 %v3161, 2147483648
    %v3174 = vor.u32 1.1754944e-38, %v3173
    %v3175 = vsel %vm3172, %v3174, %v3170
    %v3176 = vmul.f32 1.0, %v3175
    %v3177 = vtanh.pop %v3157
    %v3178 = vmul.f32 %v3176, %v3001
    %3180 = vrot.lane.b32.xlu0 %v3177, 80
    %v3181 = vpop.permute.xlu0 %3180
    %v3183 = vmul.f32 %v3176, %v3181
    %3185 = vrot.lane.b32.xlu0 %v3183, 16
    %v3186 = vpop.permute.xlu0 %3185
    %v3188 = vadd.f32 %v3178, %v3186
    %v3189 = vtanh.pop %v3188
    %3191 = vrot.lane.b32.xlu0 %v3189, 16
    %v3192 = vpop.permute.xlu0 %3191
    %v3194 = vmul.f32 %v3176, %v3192
    %3195 = vmatpush.msra.mxu0 0.0
    %3196 = vmatpush.msra.mxu0 0.0
    %3197 = vmatpush.msra.mxu0 0.0
    %3198 = vmatpush.msra.mxu0 0.0
    %3199 = vmatpush.msra.mxu0 0.0
    %3200 = vmatpush.msra.mxu0 0.0
    %3201 = vmatpush.msra.mxu0 0.0
    %3202 = vmatpush.msra.mxu0 0.0
    %3203 = vmatpush.msra.mxu0 0.0
    %3204 = vmatpush.msra.mxu0 0.0
    %3205 = vmatpush.msra.mxu0 0.0
    %3206 = vmatpush.msra.mxu0 0.0
    %3207 = vmatpush.msra.mxu0 %v53
    %3208 = vmatpush.msra.mxu0 %v52
    %3209 = vmatpush.msra.mxu0 %v51
    %3210 = vmatpush.msra.mxu0 %v50
    %3211 = vmatmul.f32.gmra.mxu0 %v3094
    %v3212 = vpop.f32.mrf.mxu0
    %v3213 = vadd.f32 0.0, %v3212
    %3214 = vdwg.mxu0
    %3216 = vrot.lane.b32.xlu0 %v3194, 96
    %v3217 = vpop.permute.xlu0 %3216
    %v3218 = vsel %vm171, %v3217, 0
    %3220 = vmatpush.msra.mxu0 0.0
    %3221 = vmatpush.msra.mxu0 0.0
    %3222 = vmatpush.msra.mxu0 0.0
    %3223 = vmatpush.msra.mxu0 0.0
    %3224 = vmatpush.msra.mxu0 0.0
    %3225 = vmatpush.msra.mxu0 0.0
    %3226 = vmatpush.msra.mxu0 0.0
    %3227 = vmatpush.msra.mxu0 0.0
    %3228 = vmatpush.msra.mxu0 0.0
    %3229 = vmatpush.msra.mxu0 0.0
    %3230 = vmatpush.msra.mxu0 0.0
    %3231 = vmatpush.msra.mxu0 0.0
    %3232 = vmatpush.msra.mxu0 0.0
    %3233 = vmatpush.msra.mxu0 0.0
    %3234 = vmatpush.msra.mxu0 %v49
    %3235 = vmatpush.msra.mxu0 %v48
    %3236 = vmatmul.f32.gmra.mxu0 %v3218
    %v3237 = vpop.f32.mrf.mxu0
    %v3238 = vadd.f32 %v3213, %v3237
    %3239 = vdwg.mxu0
    %v3240 = vadd.f32 %v3238, %v2108
    %v3241 = vxor.u32 %v3240, 2147483648
    %v3242 = vmul.f32 %v3241, 1.442695
    %v3243 = vpow.pop %v3242
    %v3244 = vadd.f32 %v3243, 1.0
    %v3245 = vrcp.pop %v3244
    %v3246 = vmul.f32 %v3244, %v3245
    %v3247 = vsub.f32 1.0, %v3246
    %v3248 = vmul.f32 %v3245, %v3247
    %v3249 = vadd.f32 %v3245, %v3248
    %vm3250 = vweird.f32 %v3244
    %vm3251 = vweird.f32 %v3245
    %vm3252 = vmor %vm3250, %vm3251
    %v3253 = vsel %vm3252, %v3245, %v3249
    %v3254 = vand.u32 2147483647, %v3244
    %vm3255 = vcmp.eq.f32.partialorder %v3254, 8.507059e+37
    %v3256 = vand.u32 %v3244, 2147483648
    %v3257 = vor.u32 1.1754944e-38, %v3256
    %v3258 = vsel %vm3255, %v3257, %v3253
    %v3259 = vmul.f32 1.0, %v3258
    %v3260 = vtanh.pop %v3240
    %v3261 = vmul.f32 %v3259, %v3084
    %3263 = vrot.lane.b32.xlu0 %v3260, 32
    %v3264 = vpop.permute.xlu0 %3263
    %v3266 = vmul.f32 %v3259, %v3264
    %3268 = vrot.lane.b32.xlu0 %v3266, 32
    %v3269 = vpop.permute.xlu0 %3268
    %v3271 = vadd.f32 %v3261, %v3269
    %v3272 = vtanh.pop %v3271
    %3274 = vrot.lane.b32.xlu0 %v3272, 32
    %v3275 = vpop.permute.xlu0 %3274
    %v3277 = vmul.f32 %v3259, %v3275
    %3279 = vrot.lane.b32.xlu0 %v3277, 64
    %v3280 = vpop.permute.xlu0 %3279
    %v3281 = vsel %vm109, %v3280, 0
    %3283 = vmatpush.msra.mxu0 0.0
    %3284 = vmatpush.msra.mxu0 0.0
    %3285 = vmatpush.msra.mxu0 0.0
    %3286 = vmatpush.msra.mxu0 0.0
    %3287 = vmatpush.msra.mxu0 0.0
    %3288 = vmatpush.msra.mxu0 0.0
    %3289 = vmatpush.msra.mxu0 0.0
    %3290 = vmatpush.msra.mxu0 0.0
    %3291 = vmatpush.msra.mxu0 0.0
    %3292 = vmatpush.msra.mxu0 0.0
    %3293 = vmatpush.msra.mxu0 0.0
    %3294 = vmatpush.msra.mxu0 0.0
    %3295 = vmatpush.msra.mxu0 %v58
    %3296 = vmatpush.msra.mxu0 %v57
    %3297 = vmatpush.msra.mxu0 %v56
    %3298 = vmatpush.msra.mxu0 %v55
    %3299 = vmatmul.f32.gmra.mxu0 %v3281
    %v3300 = vpop.f32.mrf.mxu0
    %v3301 = vadd.f32 %v2147, %v3300
    %3302 = vdwg.mxu0
    %3303 = vst [vmem:[%s2 + $0x30] sm:$0xff] %v3301
    %3304 = vmatpush.msra.mxu0 0.0
    %3305 = vmatpush.msra.mxu0 0.0
    %3306 = vmatpush.msra.mxu0 0.0
    %3307 = vmatpush.msra.mxu0 0.0
    %3308 = vmatpush.msra.mxu0 0.0
    %3309 = vmatpush.msra.mxu0 0.0
    %3310 = vmatpush.msra.mxu0 0.0
    %3311 = vmatpush.msra.mxu0 0.0
    %3312 = vmatpush.msra.mxu0 0.0
    %3313 = vmatpush.msra.mxu0 0.0
    %3314 = vmatpush.msra.mxu0 0.0
    %3315 = vmatpush.msra.mxu0 0.0
    %3316 = vmatpush.msra.mxu0 0.0
    %3317 = vmatpush.msra.mxu0 0.0
    %3318 = vmatpush.msra.mxu0 %v46
    %3319 = vmatpush.msra.mxu0 %v45
    %3320 = vmatmul.f32.gmra.mxu0 %v3218
    %v3321 = vpop.f32.mrf.mxu0
    %v3322 = vadd.f32 0.0, %v3321
    %3323 = vdwg.mxu0
    %3324 = vmatpush.msra.mxu0 0.0
    %3325 = vmatpush.msra.mxu0 0.0
    %3326 = vmatpush.msra.mxu0 0.0
    %3327 = vmatpush.msra.mxu0 0.0
    %3328 = vmatpush.msra.mxu0 0.0
    %3329 = vmatpush.msra.mxu0 0.0
    %3330 = vmatpush.msra.mxu0 0.0
    %3331 = vmatpush.msra.mxu0 0.0
    %3332 = vmatpush.msra.mxu0 0.0
    %3333 = vmatpush.msra.mxu0 0.0
    %3334 = vmatpush.msra.mxu0 0.0
    %3335 = vmatpush.msra.mxu0 0.0
    %3336 = vmatpush.msra.mxu0 0.0
    %3337 = vmatpush.msra.mxu0 0.0
    %3338 = vmatpush.msra.mxu0 0.0
    %3339 = vmatpush.msra.mxu0 %v44
    %3340 = vmatmul.f32.gmra.mxu0 %v2200
    %v3341 = vpop.f32.mrf.mxu0
    %v3342 = vadd.f32 %v3322, %v3341
    %3343 = vdwg.mxu0
    %v3344 = vadd.f32 %v3342, %v2024
    %v3345 = vxor.u32 %v3344, 2147483648
    %v3346 = vmul.f32 %v3345, 1.442695
    %v3347 = vpow.pop %v3346
    %v3348 = vadd.f32 %v3347, 1.0
    %v3349 = vrcp.pop %v3348
    %v3350 = vmul.f32 %v3348, %v3349
    %v3351 = vsub.f32 1.0, %v3350
    %v3352 = vmul.f32 %v3349, %v3351
    %v3353 = vadd.f32 %v3349, %v3352
    %vm3354 = vweird.f32 %v3348
    %vm3355 = vweird.f32 %v3349
    %vm3356 = vmor %vm3354, %vm3355
    %v3357 = vsel %vm3356, %v3349, %v3353
    %v3358 = vand.u32 2147483647, %v3348
    %vm3359 = vcmp.eq.f32.partialorder %v3358, 8.507059e+37
    %v3360 = vand.u32 %v3348, 2147483648
    %v3361 = vor.u32 1.1754944e-38, %v3360
    %v3362 = vsel %vm3359, %v3361, %v3357
    %v3363 = vmul.f32 1.0, %v3362
    %v3364 = vtanh.pop %v3344
    %v3365 = vmul.f32 %v3363, %v3188
    %3367 = vrot.lane.b32.xlu0 %v3364, 80
    %v3368 = vpop.permute.xlu0 %3367
    %v3370 = vmul.f32 %v3363, %v3368
    %3372 = vrot.lane.b32.xlu0 %v3370, 16
    %v3373 = vpop.permute.xlu0 %3372
    %v3375 = vadd.f32 %v3365, %v3373
    %v3376 = vtanh.pop %v3375
    %3378 = vrot.lane.b32.xlu0 %v3376, 16
    %v3379 = vpop.permute.xlu0 %3378
    %v3381 = vmul.f32 %v3363, %v3379
    %3382 = vmatpush.msra.mxu0 0.0
    %3383 = vmatpush.msra.mxu0 0.0
    %3384 = vmatpush.msra.mxu0 0.0
    %3385 = vmatpush.msra.mxu0 0.0
    %3386 = vmatpush.msra.mxu0 0.0
    %3387 = vmatpush.msra.mxu0 0.0
    %3388 = vmatpush.msra.mxu0 0.0
    %3389 = vmatpush.msra.mxu0 0.0
    %3390 = vmatpush.msra.mxu0 0.0
    %3391 = vmatpush.msra.mxu0 0.0
    %3392 = vmatpush.msra.mxu0 0.0
    %3393 = vmatpush.msra.mxu0 0.0
    %3394 = vmatpush.msra.mxu0 %v53
    %3395 = vmatpush.msra.mxu0 %v52
    %3396 = vmatpush.msra.mxu0 %v51
    %3397 = vmatpush.msra.mxu0 %v50
    %3398 = vmatmul.f32.gmra.mxu0 %v3281
    %v3399 = vpop.f32.mrf.mxu0
    %v3400 = vadd.f32 0.0, %v3399
    %3401 = vdwg.mxu0
    %3403 = vrot.lane.b32.xlu0 %v3381, 96
    %v3404 = vpop.permute.xlu0 %3403
    %v3405 = vsel %vm171, %v3404, 0
    %3407 = vmatpush.msra.mxu0 0.0
    %3408 = vmatpush.msra.mxu0 0.0
    %3409 = vmatpush.msra.mxu0 0.0
    %3410 = vmatpush.msra.mxu0 0.0
    %3411 = vmatpush.msra.mxu0 0.0
    %3412 = vmatpush.msra.mxu0 0.0
    %3413 = vmatpush.msra.mxu0 0.0
    %3414 = vmatpush.msra.mxu0 0.0
    %3415 = vmatpush.msra.mxu0 0.0
    %3416 = vmatpush.msra.mxu0 0.0
    %3417 = vmatpush.msra.mxu0 0.0
    %3418 = vmatpush.msra.mxu0 0.0
    %3419 = vmatpush.msra.mxu0 0.0
    %3420 = vmatpush.msra.mxu0 0.0
    %3421 = vmatpush.msra.mxu0 %v49
    %3422 = vmatpush.msra.mxu0 %v48
    %3423 = vmatmul.f32.gmra.mxu0 %v3405
    %v3424 = vpop.f32.mrf.mxu0
    %v3425 = vadd.f32 %v3400, %v3424
    %3426 = vdwg.mxu0
    %v3427 = vadd.f32 %v3425, %v2108
    %v3428 = vxor.u32 %v3427, 2147483648
    %v3429 = vmul.f32 %v3428, 1.442695
    %v3430 = vpow.pop %v3429
    %v3431 = vadd.f32 %v3430, 1.0
    %v3432 = vrcp.pop %v3431
    %v3433 = vmul.f32 %v3431, %v3432
    %v3434 = vsub.f32 1.0, %v3433
    %v3435 = vmul.f32 %v3432, %v3434
    %v3436 = vadd.f32 %v3432, %v3435
    %vm3437 = vweird.f32 %v3431
    %vm3438 = vweird.f32 %v3432
    %vm3439 = vmor %vm3437, %vm3438
    %v3440 = vsel %vm3439, %v3432, %v3436
    %v3441 = vand.u32 2147483647, %v3431
    %vm3442 = vcmp.eq.f32.partialorder %v3441, 8.507059e+37
    %v3443 = vand.u32 %v3431, 2147483648
    %v3444 = vor.u32 1.1754944e-38, %v3443
    %v3445 = vsel %vm3442, %v3444, %v3440
    %v3446 = vmul.f32 1.0, %v3445
    %v3447 = vtanh.pop %v3427
    %v3448 = vmul.f32 %v3446, %v3271
    %3450 = vrot.lane.b32.xlu0 %v3447, 32
    %v3451 = vpop.permute.xlu0 %3450
    %v3453 = vmul.f32 %v3446, %v3451
    %3455 = vrot.lane.b32.xlu0 %v3453, 32
    %v3456 = vpop.permute.xlu0 %3455
    %v3458 = vadd.f32 %v3448, %v3456
    %v3459 = vtanh.pop %v3458
    %3461 = vrot.lane.b32.xlu0 %v3459, 32
    %v3462 = vpop.permute.xlu0 %3461
    %v3464 = vmul.f32 %v3446, %v3462
    %3466 = vrot.lane.b32.xlu0 %v3464, 64
    %v3467 = vpop.permute.xlu0 %3466
    %v3468 = vsel %vm109, %v3467, 0
    %3470 = vmatpush.msra.mxu0 0.0
    %3471 = vmatpush.msra.mxu0 0.0
    %3472 = vmatpush.msra.mxu0 0.0
    %3473 = vmatpush.msra.mxu0 0.0
    %3474 = vmatpush.msra.mxu0 0.0
    %3475 = vmatpush.msra.mxu0 0.0
    %3476 = vmatpush.msra.mxu0 0.0
    %3477 = vmatpush.msra.mxu0 0.0
    %3478 = vmatpush.msra.mxu0 0.0
    %3479 = vmatpush.msra.mxu0 0.0
    %3480 = vmatpush.msra.mxu0 0.0
    %3481 = vmatpush.msra.mxu0 0.0
    %3482 = vmatpush.msra.mxu0 %v58
    %3483 = vmatpush.msra.mxu0 %v57
    %3484 = vmatpush.msra.mxu0 %v56
    %3485 = vmatpush.msra.mxu0 %v55
    %3486 = vmatmul.f32.gmra.mxu0 %v3468
    %v3487 = vpop.f32.mrf.mxu0
    %v3488 = vadd.f32 %v2147, %v3487
    %3489 = vdwg.mxu0
    %3490 = vst [vmem:[%s2 + $0x38] sm:$0xff] %v3488
    // Predicated region
    $region14: #{lstm_autoencoder.1} parent=1 // pred_check
      _
    $region15: #{lstm_autoencoder.1} parent=1 // pred_check_branch
      %3492 = sbr.rel (0) target = $region17
    $region16: #{lstm_autoencoder.1} parent=1 // pred_region
      _
    $region17: #{lstm_autoencoder.1} parent=1 // pred_fallthru
      _
    // Predicated region
    $region18: #{lstm_autoencoder.1} parent=1 // pred_check
      _
    $region19: #{lstm_autoencoder.1} parent=1 // pred_check_branch
      %3494 = sbr.rel (0) target = $region21
    $region20: #{lstm_autoencoder.1} parent=1 // pred_region
      _
    $region21: #{lstm_autoencoder.1} parent=1 // pred_fallthru
      _
    %3495 = vsyncpa [#allocation3], 1

</llo_original>
